<compile_context>
chip_gen: v5e
topology: v5e:2x2
jax: 0.10.0
libtpu: 0.0.40
codegen_flags: <defaults>
</compile_context>

<pallas_src>
import math

import jax
import jax.numpy as jnp
from jax.experimental import pallas as pl
from jax.experimental.pallas import tpu as pltpu

# ----------------------------- model config ---------------------------------
NUM_BLOCKS = 2
D_MODEL = 32
NUM_HEADS = 4
HEAD_DIM = D_MODEL // NUM_HEADS
D_FF = 64
LN_EPS = 1e-5
NEG_INF = -1e9
MXU_DTYPE = jnp.bfloat16        # MXU operand dtype (f32 accumulate)

# Order in which stacked parameter arrays are fed to the kernel.
_PARAM_ORDER = (
    "wqkv_self", "bqkv_self", "wo_self", "bo_self",
    "wqkv_cross", "bqkv_cross", "wo_cross", "bo_cross",
    "w1", "b1", "w2", "b2",
    "ln1_g", "ln1_b", "ln2_g", "ln2_b", "ln3_g", "ln3_b",
)
# Weight matrices that are cast to bf16 for the MXU; biases/LN params stay f32.
_MAT_NAMES = frozenset({"wqkv_self", "wo_self", "wqkv_cross", "wo_cross", "w1", "w2"})


# ------------------------------ kernel helpers --------------------------------
def _mxu(a_bf16, w_bf16):
    """MXU matmul: bf16 operands, f32 accumulation."""
    return jnp.dot(a_bf16, w_bf16, preferred_element_type=jnp.float32)


def _layer_norm(y, g, b):
    """LayerNorm over the last dim (all f32 vector math)."""
    mu = jnp.mean(y, axis=-1, keepdims=True)
    var = jnp.mean((y - mu) ** 2, axis=-1, keepdims=True)
    return (y - mu) * jax.lax.rsqrt(var + LN_EPS) * g + b


def _attention(xq_bf, xkv_bf, mask, wqkv, bqkv, wo, bo):
    """Multi-head attention for one batch element.

    xq_bf:  (Tq, D) bf16 (already cast once by the caller).
    xkv_bf: (Tk, D) bf16.
    mask:   (Tq, Tk) f32 additive mask.
    wqkv:   (D, 3D) bf16, columns ordered [Q heads | K heads | V heads].
    bqkv:   (1, 3D) f32.
    wo:     (D, D)  bf16, rows grouped by head.
    bo:     (1, D)  f32.
    """
    H, hd, D = NUM_HEADS, HEAD_DIM, D_MODEL
    scale = 1.0 / math.sqrt(hd)

    if xq_bf is xkv_bf:
        # Self-attention: one fused (Tq, D) x (D, 3D) matmul for Q, K, V.
        qkv = _mxu(xq_bf, wqkv) + bqkv                       # (Tq, 3D) f32
        q_all = qkv[:, :D]
        k_all = qkv[:, D:2 * D]
        v_all = qkv[:, 2 * D:]
    else:
        # Cross-attention: Q from the target, fused K|V from memory.
        q_all = _mxu(xq_bf, wqkv[:, :D]) + bqkv[:, :D]       # (Tq, D) f32
        kv = _mxu(xkv_bf, wqkv[:, D:]) + bqkv[:, D:]         # (Tk, 2D) f32
        k_all = kv[:, :D]
        v_all = kv[:, D:]

    # Scale folded into Q once (per attention call), then single bf16 casts.
    q_bf = (q_all * scale).astype(MXU_DTYPE)
    k_bf = k_all.astype(MXU_DTYPE)
    v_bf = v_all.astype(MXU_DTYPE)

    ctx = []
    for h in range(H):
        sl = slice(h * hd, (h + 1) * hd)
        # q @ k^T via dot_general contracting the last dims (no explicit .T).
        s = jax.lax.dot_general(
            q_bf[:, sl], k_bf[:, sl], (((1,), (1,)), ((), ())),
            preferred_element_type=jnp.float32) + mask       # (Tq, Tk) f32
        s = s - jnp.max(s, axis=-1, keepdims=True)
        p = jnp.exp(s)
        p = p * pl.reciprocal(jnp.sum(p, axis=-1, keepdims=True), approx=True)
        ctx.append(jnp.dot(p.astype(MXU_DTYPE), v_bf[:, sl],
                           preferred_element_type=jnp.float32))  # (Tq, hd)

    # One fused output projection over all heads: (Tq, D) x (D, D).
    ctx_bf = jnp.concatenate(ctx, axis=-1).astype(MXU_DTYPE)
    return _mxu(ctx_bf, wo) + bo


# ------------------------------ fused kernel ----------------------------------
def _decoder_stack_kernel(
        tgt_ref, mem_ref, sa_mask_ref, ca_mask_ref,
        wqkv_s_ref, bqkv_s_ref, wo_s_ref, bo_s_ref,
        wqkv_c_ref, bqkv_c_ref, wo_c_ref, bo_c_ref,
        w1_ref, b1_ref, w2_ref, b2_ref,
        ln1_g_ref, ln1_b_ref, ln2_g_ref, ln2_b_ref,
        ln3_g_ref, ln3_b_ref,
        out_ref):
    x = tgt_ref[0]                                  # (T, D) f32 — one batch elem
    mem_bf = mem_ref[0].astype(MXU_DTYPE)           # (S, D) bf16 — cast ONCE
    sa_mask = sa_mask_ref[...]                      # (T, T) f32 additive
    ca_mask = ca_mask_ref[...]                      # (T, S) f32 additive

    num_blocks = wqkv_s_ref.shape[0]                # static — unrolls at trace time
    # TODO(synk): for large NUM_BLOCKS switch to lax.fori_loop with dynamic
    #   indexing of the stacked weight refs to bound live ranges / vreg pressure.
    for l in range(num_blocks):
        # ---- masked self-attention + residual + LN ----
        x_bf = x.astype(MXU_DTYPE)
        sa = _attention(x_bf, x_bf, sa_mask,
                        wqkv_s_ref[l], bqkv_s_ref[l], wo_s_ref[l], bo_s_ref[l])
        x = _layer_norm(x + sa, ln1_g_ref[l], ln1_b_ref[l])

        # ---- cross-attention over memory + residual + LN ----
        x_bf = x.astype(MXU_DTYPE)
        ca = _attention(x_bf, mem_bf, ca_mask,
                        wqkv_c_ref[l], bqkv_c_ref[l], wo_c_ref[l], bo_c_ref[l])
        x = _layer_norm(x + ca, ln2_g_ref[l], ln2_b_ref[l])

        # ---- feed-forward + residual + LN ----
        x_bf = x.astype(MXU_DTYPE)
        h1 = jnp.maximum(_mxu(x_bf, w1_ref[l]) + b1_ref[l], 0.0)
        ff = _mxu(h1.astype(MXU_DTYPE), w2_ref[l]) + b2_ref[l]
        x = _layer_norm(x + ff, ln3_g_ref[l], ln3_b_ref[l])

    out_ref[0] = x.astype(out_ref.dtype)


# ------------------------------- wrapper ---------------------------------------
def transformer_decoder(tgt, memory, params, sa_mask=None, ca_mask=None):
    """tgt: (B, T, D), memory: (B, S, D); masks: additive float (Tq, Tk) or None."""
    B, T, D = tgt.shape
    S = memory.shape[1]
    if sa_mask is None:
        sa_mask = jnp.zeros((T, T), jnp.float32)
    if ca_mask is None:
        ca_mask = jnp.zeros((T, S), jnp.float32)
    sa_mask = sa_mask.astype(jnp.float32)
    ca_mask = ca_mask.astype(jnp.float32)

    # Weight matrices -> bf16 for the MXU (halves weight DMA); biases/LN stay f32.
    weights = [params[n].astype(MXU_DTYPE) if n in _MAT_NAMES else params[n]
               for n in _PARAM_ORDER]

    def full_spec(a):
        # Resident (constant index_map) weight tile; entire array lives in VMEM.
        return pl.BlockSpec(a.shape, lambda b: (0,) * a.ndim)

    return pl.pallas_call(
        _decoder_stack_kernel,
        out_shape=jax.ShapeDtypeStruct((B, T, D), tgt.dtype),
        grid=(B,),
        in_specs=[
            pl.BlockSpec((1, T, D), lambda b: (b, 0, 0)),   # tgt (per-batch tile)
            pl.BlockSpec((1, S, D), lambda b: (b, 0, 0)),   # memory
            pl.BlockSpec((T, T), lambda b: (0, 0)),         # self-attn mask
            pl.BlockSpec((T, S), lambda b: (0, 0)),         # cross-attn mask
        ] + [full_spec(w) for w in weights],                # resident weights
        out_specs=pl.BlockSpec((1, T, D), lambda b: (b, 0, 0)),
        compiler_params=pltpu.CompilerParams(
            dimension_semantics=("parallel",),              # batch across cores
            vmem_limit_bytes=32 * 1024 * 1024),
    )(tgt, memory, sa_mask, ca_mask, *weights)


# ----------------------------- param init --------------------------------------
def init_params(key, num_blocks):
    """Packed layout: wqkv (L, D, 3D) = [Q heads | K heads | V heads] columns,
    wo (L, D, D) rows grouped by head."""
    L, D, F = num_blocks, D_MODEL, D_FF

    def dense(k, fan_in, shape):
        return jax.random.normal(k, shape, jnp.float32) * (1.0 / math.sqrt(fan_in))

    ks = iter(jax.random.split(key, 6))
    p = {
        "wqkv_self": dense(next(ks), D, (L, D, 3 * D)),
        "bqkv_self": jnp.zeros((L, 1, 3 * D), jnp.float32),
        "wo_self": dense(next(ks), D, (L, D, D)),
        "bo_self": jnp.zeros((L, 1, D), jnp.float32),
        "wqkv_cross": dense(next(ks), D, (L, D, 3 * D)),
        "bqkv_cross": jnp.zeros((L, 1, 3 * D), jnp.float32),
        "wo_cross": dense(next(ks), D, (L, D, D)),
        "bo_cross": jnp.zeros((L, 1, D), jnp.float32),
        "w1": dense(next(ks), D, (L, D, F)),
        "b1": jnp.zeros((L, 1, F), jnp.float32),
        "w2": dense(next(ks), F, (L, F, D)),
        "b2": jnp.zeros((L, 1, D), jnp.float32),
    }
    for name in ("ln1", "ln2", "ln3"):
        p[name + "_g"] = jnp.ones((L, 1, D), jnp.float32)
        p[name + "_b"] = jnp.zeros((L, 1, D), jnp.float32)
    return p


# --------------------------- pure-JAX reference ---------------------------------
def reference_decoder(tgt, memory, params, sa_mask, ca_mask):
    H, hd, D = NUM_HEADS, HEAD_DIM, D_MODEL
    L = params["w1"].shape[0]

    def ln(y, g, b):
        mu = y.mean(-1, keepdims=True)
        var = ((y - mu) ** 2).mean(-1, keepdims=True)
        return (y - mu) / jnp.sqrt(var + LN_EPS) * g + b

    def mha(xq, xkv, mask, wqkv, bqkv, wo, bo):
        q = xq @ wqkv[:, :D] + bqkv[:, :D]
        k = xkv @ wqkv[:, D:2 * D] + bqkv[:, D:2 * D]
        v = xkv @ wqkv[:, 2 * D:] + bqkv[:, 2 * D:]
        ctx = []
        for h in range(H):
            sl = slice(h * hd, (h + 1) * hd)
            s = q[:, sl] @ k[:, sl].T / math.sqrt(hd) + mask
            p = jax.nn.softmax(s, axis=-1)
            ctx.append(p @ v[:, sl])
        return jnp.concatenate(ctx, axis=-1) @ wo + bo

    outs = []
    for b in range(tgt.shape[0]):
        x, mem = tgt[b], memory[b]
        for l in range(L):
            sa = mha(x, x, sa_mask, params["wqkv_self"][l], params["bqkv_self"][l],
                     params["wo_self"][l], params["bo_self"][l])
            x = ln(x + sa, params["ln1_g"][l], params["ln1_b"][l])
            ca = mha(x, mem, ca_mask, params["wqkv_cross"][l], params["bqkv_cross"][l],
                     params["wo_cross"][l], params["bo_cross"][l])
            x = ln(x + ca, params["ln2_g"][l], params["ln2_b"][l])
            ff = (jnp.maximum(x @ params["w1"][l] + params["b1"][l], 0.0)
                  @ params["w2"][l] + params["b2"][l])
            x = ln(x + ff, params["ln3_g"][l], params["ln3_b"][l])
        outs.append(x)
    return jnp.stack(outs, axis=0)


# ---------------------------------- main -----------------------------------------
if __name__ == "__main__":
    B, T, S = 2, 8, 8  # batch, target seq len, memory seq len

    key = jax.random.PRNGKey(0)
    k_tgt, k_mem, k_par = jax.random.split(key, 3)

    tgt = jax.random.normal(k_tgt, (B, T, D_MODEL), jnp.float32)
    memory = jax.random.normal(k_mem, (B, S, D_MODEL), jnp.float32)

    # causal additive self-attention mask, no cross-attention mask
    sa_mask = jnp.where(
        jnp.triu(jnp.ones((T, T), dtype=bool), k=1), NEG_INF, 0.0
    ).astype(jnp.float32)

    params = init_params(k_par, NUM_BLOCKS)

    out = jax.jit(transformer_decoder)(tgt, memory, params, sa_mask, None)
    out = jax.block_until_ready(out)

    assert out.shape == (B, T, D_MODEL)
    assert bool(jnp.all(jnp.isfinite(out)))

    # Loose sanity check vs a pure-JAX f32 reference (kernel runs matmuls with
    # bf16 operands + approx reciprocal, so allow a generous tolerance).
    ref = reference_decoder(tgt, memory, params, sa_mask,
                            jnp.zeros((T, S), jnp.float32))
    assert float(jnp.max(jnp.abs(out - ref))) < 0.5

    print("KERNEL_OK")
</pallas_src>

<mosaic_0001>
module attributes {stable_mosaic.version = 11 : i64} {
  func.func @_decoder_stack_kernel(%arg0: i32, %arg1: memref<1x8x32xf32, #tpu.memory_space<vmem>>, %arg2: memref<1x8x32xf32, #tpu.memory_space<vmem>>, %arg3: memref<8x8xf32, #tpu.memory_space<vmem>>, %arg4: memref<8x8xf32, #tpu.memory_space<vmem>>, %arg5: memref<2x32x96xbf16, #tpu.memory_space<vmem>>, %arg6: memref<2x1x96xf32, #tpu.memory_space<vmem>>, %arg7: memref<2x32x32xbf16, #tpu.memory_space<vmem>>, %arg8: memref<2x1x32xf32, #tpu.memory_space<vmem>>, %arg9: memref<2x32x96xbf16, #tpu.memory_space<vmem>>, %arg10: memref<2x1x96xf32, #tpu.memory_space<vmem>>, %arg11: memref<2x32x32xbf16, #tpu.memory_space<vmem>>, %arg12: memref<2x1x32xf32, #tpu.memory_space<vmem>>, %arg13: memref<2x32x64xbf16, #tpu.memory_space<vmem>>, %arg14: memref<2x1x64xf32, #tpu.memory_space<vmem>>, %arg15: memref<2x64x32xbf16, #tpu.memory_space<vmem>>, %arg16: memref<2x1x32xf32, #tpu.memory_space<vmem>>, %arg17: memref<2x1x32xf32, #tpu.memory_space<vmem>>, %arg18: memref<2x1x32xf32, #tpu.memory_space<vmem>>, %arg19: memref<2x1x32xf32, #tpu.memory_space<vmem>>, %arg20: memref<2x1x32xf32, #tpu.memory_space<vmem>>, %arg21: memref<2x1x32xf32, #tpu.memory_space<vmem>>, %arg22: memref<2x1x32xf32, #tpu.memory_space<vmem>>, %arg23: memref<1x8x32xf32, #tpu.memory_space<vmem>>) attributes {dimension_semantics = [#tpu.dimension_semantics<parallel>], iteration_bounds = array<i64: 2>, scalar_prefetch = 0 : i64, scratch_operands = 0 : i64, tpu.core_type = #tpu.core_type<tc>, window_params = [{transform_indices = @transform_0, window_bounds = array<i64: 1, 8, 32>}, {transform_indices = @transform_1, window_bounds = array<i64: 1, 8, 32>}, {pipeline_mode = #tpu.pipeline_mode<synchronous>, transform_indices = @transform_2, window_bounds = array<i64: 8, 8>}, {pipeline_mode = #tpu.pipeline_mode<synchronous>, transform_indices = @transform_3, window_bounds = array<i64: 8, 8>}, {pipeline_mode = #tpu.pipeline_mode<synchronous>, transform_indices = @transform_4, window_bounds = array<i64: 2, 32, 96>}, {pipeline_mode = #tpu.pipeline_mode<synchronous>, transform_indices = @transform_5, window_bounds = array<i64: 2, 1, 96>}, {pipeline_mode = #tpu.pipeline_mode<synchronous>, transform_indices = @transform_6, window_bounds = array<i64: 2, 32, 32>}, {pipeline_mode = #tpu.pipeline_mode<synchronous>, transform_indices = @transform_7, window_bounds = array<i64: 2, 1, 32>}, {pipeline_mode = #tpu.pipeline_mode<synchronous>, transform_indices = @transform_8, window_bounds = array<i64: 2, 32, 96>}, {pipeline_mode = #tpu.pipeline_mode<synchronous>, transform_indices = @transform_9, window_bounds = array<i64: 2, 1, 96>}, {pipeline_mode = #tpu.pipeline_mode<synchronous>, transform_indices = @transform_10, window_bounds = array<i64: 2, 32, 32>}, {pipeline_mode = #tpu.pipeline_mode<synchronous>, transform_indices = @transform_11, window_bounds = array<i64: 2, 1, 32>}, {pipeline_mode = #tpu.pipeline_mode<synchronous>, transform_indices = @transform_12, window_bounds = array<i64: 2, 32, 64>}, {pipeline_mode = #tpu.pipeline_mode<synchronous>, transform_indices = @transform_13, window_bounds = array<i64: 2, 1, 64>}, {pipeline_mode = #tpu.pipeline_mode<synchronous>, transform_indices = @transform_14, window_bounds = array<i64: 2, 64, 32>}, {pipeline_mode = #tpu.pipeline_mode<synchronous>, transform_indices = @transform_15, window_bounds = array<i64: 2, 1, 32>}, {pipeline_mode = #tpu.pipeline_mode<synchronous>, transform_indices = @transform_16, window_bounds = array<i64: 2, 1, 32>}, {pipeline_mode = #tpu.pipeline_mode<synchronous>, transform_indices = @transform_17, window_bounds = array<i64: 2, 1, 32>}, {pipeline_mode = #tpu.pipeline_mode<synchronous>, transform_indices = @transform_18, window_bounds = array<i64: 2, 1, 32>}, {pipeline_mode = #tpu.pipeline_mode<synchronous>, transform_indices = @transform_19, window_bounds = array<i64: 2, 1, 32>}, {pipeline_mode = #tpu.pipeline_mode<synchronous>, transform_indices = @transform_20, window_bounds = array<i64: 2, 1, 32>}, {pipeline_mode = #tpu.pipeline_mode<synchronous>, transform_indices = @transform_21, window_bounds = array<i64: 2, 1, 32>}, {transform_indices = @transform_22, window_bounds = array<i64: 1, 8, 32>}]} {
    %c0 = arith.constant 0 : index
    %c0_0 = arith.constant 0 : index
    %c0_1 = arith.constant 0 : index
    %0 = vector.load %arg1[%c0, %c0_0, %c0_1] : memref<1x8x32xf32, #tpu.memory_space<vmem>>, vector<1x8x32xf32>
    %1 = vector.shape_cast %0 : vector<1x8x32xf32> to vector<8x32xf32>
    %c0_2 = arith.constant 0 : index
    %c0_3 = arith.constant 0 : index
    %c0_4 = arith.constant 0 : index
    %2 = vector.load %arg2[%c0_2, %c0_3, %c0_4] : memref<1x8x32xf32, #tpu.memory_space<vmem>>, vector<1x8x32xf32>
    %3 = vector.shape_cast %2 : vector<1x8x32xf32> to vector<8x32xf32>
    %4 = arith.truncf %3 : vector<8x32xf32> to vector<8x32xbf16>
    %c0_5 = arith.constant 0 : index
    %c0_6 = arith.constant 0 : index
    %5 = vector.load %arg3[%c0_5, %c0_6] : memref<8x8xf32, #tpu.memory_space<vmem>>, vector<8x8xf32>
    %c0_7 = arith.constant 0 : index
    %c0_8 = arith.constant 0 : index
    %6 = vector.load %arg4[%c0_7, %c0_8] : memref<8x8xf32, #tpu.memory_space<vmem>>, vector<8x8xf32>
    %7 = arith.truncf %1 : vector<8x32xf32> to vector<8x32xbf16>
    %c0_9 = arith.constant 0 : index
    %c0_10 = arith.constant 0 : index
    %c0_11 = arith.constant 0 : index
    %8 = vector.load %arg5[%c0_9, %c0_10, %c0_11] : memref<2x32x96xbf16, #tpu.memory_space<vmem>>, vector<1x32x96xbf16>
    %9 = vector.shape_cast %8 : vector<1x32x96xbf16> to vector<32x96xbf16>
    %c0_12 = arith.constant 0 : index
    %c0_13 = arith.constant 0 : index
    %c0_14 = arith.constant 0 : index
    %10 = vector.load %arg6[%c0_12, %c0_13, %c0_14] : memref<2x1x96xf32, #tpu.memory_space<vmem>>, vector<1x1x96xf32>
    %11 = vector.shape_cast %10 : vector<1x1x96xf32> to vector<1x96xf32>
    %c0_15 = arith.constant 0 : index
    %c0_16 = arith.constant 0 : index
    %c0_17 = arith.constant 0 : index
    %12 = vector.load %arg7[%c0_15, %c0_16, %c0_17] : memref<2x32x32xbf16, #tpu.memory_space<vmem>>, vector<1x32x32xbf16>
    %13 = vector.shape_cast %12 : vector<1x32x32xbf16> to vector<32x32xbf16>
    %c0_18 = arith.constant 0 : index
    %c0_19 = arith.constant 0 : index
    %c0_20 = arith.constant 0 : index
    %14 = vector.load %arg8[%c0_18, %c0_19, %c0_20] : memref<2x1x32xf32, #tpu.memory_space<vmem>>, vector<1x1x32xf32>
    %15 = vector.shape_cast %14 : vector<1x1x32xf32> to vector<1x32xf32>
    %cst = arith.constant dense<0.000000e+00> : vector<8x96xf32>
    %16 = tpu.matmul %7, %9, %cst {dimension_numbers = #tpu.dot_dimension_numbers<[1], [0], [0], [1], [0, 0, 1, 1], [], []>} : vector<8x32xbf16>, vector<32x96xbf16>, vector<8x96xf32> -> vector<8x96xf32>
    %17 = vector.broadcast %11 : vector<1x96xf32> to vector<8x96xf32>
    %18 = arith.addf %16, %17 : vector<8x96xf32>
    %19 = vector.extract_strided_slice %18 {offsets = [0, 0], sizes = [8, 32], strides = [1, 1]} : vector<8x96xf32> to vector<8x32xf32>
    %20 = vector.extract_strided_slice %18 {offsets = [0, 32], sizes = [8, 32], strides = [1, 1]} : vector<8x96xf32> to vector<8x32xf32>
    %21 = vector.extract_strided_slice %18 {offsets = [0, 64], sizes = [8, 32], strides = [1, 1]} : vector<8x96xf32> to vector<8x32xf32>
    %cst_21 = arith.constant 0.353553385 : f32
    %22 = vector.broadcast %cst_21 : f32 to vector<8x32xf32>
    %23 = arith.mulf %19, %22 : vector<8x32xf32>
    %24 = arith.truncf %23 : vector<8x32xf32> to vector<8x32xbf16>
    %25 = arith.truncf %20 : vector<8x32xf32> to vector<8x32xbf16>
    %26 = arith.truncf %21 : vector<8x32xf32> to vector<8x32xbf16>
    %27 = vector.extract_strided_slice %24 {offsets = [0, 0], sizes = [8, 8], strides = [1, 1]} : vector<8x32xbf16> to vector<8x8xbf16>
    %28 = vector.extract_strided_slice %25 {offsets = [0, 0], sizes = [8, 8], strides = [1, 1]} : vector<8x32xbf16> to vector<8x8xbf16>
    %cst_22 = arith.constant dense<0.000000e+00> : vector<8x8xf32>
    %29 = tpu.matmul %27, %28, %cst_22 {dimension_numbers = #tpu.dot_dimension_numbers<[1], [1], [0], [0], [0, 0, 1, 0], [], []>} : vector<8x8xbf16>, vector<8x8xbf16>, vector<8x8xf32> -> vector<8x8xf32>
    %30 = arith.addf %29, %5 : vector<8x8xf32>
    %cst_23 = arith.constant dense<0xFF800000> : vector<8xf32>
    %31 = vector.multi_reduction <maximumf>, %30, %cst_23 [1] : vector<8x8xf32> to vector<8xf32>
    %32 = vector.shape_cast %31 : vector<8xf32> to vector<8x1xf32>
    %33 = vector.broadcast %32 : vector<8x1xf32> to vector<8x8xf32>
    %34 = arith.subf %30, %33 : vector<8x8xf32>
    %35 = math.exp %34 : vector<8x8xf32>
    %cst_24 = arith.constant dense<0.000000e+00> : vector<8xf32>
    %36 = vector.multi_reduction <add>, %35, %cst_24 [1] : vector<8x8xf32> to vector<8xf32>
    %37 = vector.shape_cast %36 : vector<8xf32> to vector<8x1xf32>
    %38 = tpu.reciprocal %37 {approx = true} : vector<8x1xf32> -> vector<8x1xf32>
    %39 = vector.broadcast %38 : vector<8x1xf32> to vector<8x8xf32>
    %40 = arith.mulf %35, %39 : vector<8x8xf32>
    %41 = arith.truncf %40 : vector<8x8xf32> to vector<8x8xbf16>
    %42 = vector.extract_strided_slice %26 {offsets = [0, 0], sizes = [8, 8], strides = [1, 1]} : vector<8x32xbf16> to vector<8x8xbf16>
    %cst_25 = arith.constant dense<0.000000e+00> : vector<8x8xf32>
    %43 = tpu.matmul %41, %42, %cst_25 {dimension_numbers = #tpu.dot_dimension_numbers<[1], [0], [0], [1], [0, 0, 1, 1], [], []>} : vector<8x8xbf16>, vector<8x8xbf16>, vector<8x8xf32> -> vector<8x8xf32>
    %44 = vector.extract_strided_slice %24 {offsets = [0, 8], sizes = [8, 8], strides = [1, 1]} : vector<8x32xbf16> to vector<8x8xbf16>
    %45 = vector.extract_strided_slice %25 {offsets = [0, 8], sizes = [8, 8], strides = [1, 1]} : vector<8x32xbf16> to vector<8x8xbf16>
    %cst_26 = arith.constant dense<0.000000e+00> : vector<8x8xf32>
    %46 = tpu.matmul %44, %45, %cst_26 {dimension_numbers = #tpu.dot_dimension_numbers<[1], [1], [0], [0], [0, 0, 1, 0], [], []>} : vector<8x8xbf16>, vector<8x8xbf16>, vector<8x8xf32> -> vector<8x8xf32>
    %47 = arith.addf %46, %5 : vector<8x8xf32>
    %cst_27 = arith.constant dense<0xFF800000> : vector<8xf32>
    %48 = vector.multi_reduction <maximumf>, %47, %cst_27 [1] : vector<8x8xf32> to vector<8xf32>
    %49 = vector.shape_cast %48 : vector<8xf32> to vector<8x1xf32>
    %50 = vector.broadcast %49 : vector<8x1xf32> to vector<8x8xf32>
    %51 = arith.subf %47, %50 : vector<8x8xf32>
    %52 = math.exp %51 : vector<8x8xf32>
    %cst_28 = arith.constant dense<0.000000e+00> : vector<8xf32>
    %53 = vector.multi_reduction <add>, %52, %cst_28 [1] : vector<8x8xf32> to vector<8xf32>
    %54 = vector.shape_cast %53 : vector<8xf32> to vector<8x1xf32>
    %55 = tpu.reciprocal %54 {approx = true} : vector<8x1xf32> -> vector<8x1xf32>
    %56 = vector.broadcast %55 : vector<8x1xf32> to vector<8x8xf32>
    %57 = arith.mulf %52, %56 : vector<8x8xf32>
    %58 = arith.truncf %57 : vector<8x8xf32> to vector<8x8xbf16>
    %59 = vector.extract_strided_slice %26 {offsets = [0, 8], sizes = [8, 8], strides = [1, 1]} : vector<8x32xbf16> to vector<8x8xbf16>
    %cst_29 = arith.constant dense<0.000000e+00> : vector<8x8xf32>
    %60 = tpu.matmul %58, %59, %cst_29 {dimension_numbers = #tpu.dot_dimension_numbers<[1], [0], [0], [1], [0, 0, 1, 1], [], []>} : vector<8x8xbf16>, vector<8x8xbf16>, vector<8x8xf32> -> vector<8x8xf32>
    %61 = vector.extract_strided_slice %24 {offsets = [0, 16], sizes = [8, 8], strides = [1, 1]} : vector<8x32xbf16> to vector<8x8xbf16>
    %62 = vector.extract_strided_slice %25 {offsets = [0, 16], sizes = [8, 8], strides = [1, 1]} : vector<8x32xbf16> to vector<8x8xbf16>
    %cst_30 = arith.constant dense<0.000000e+00> : vector<8x8xf32>
    %63 = tpu.matmul %61, %62, %cst_30 {dimension_numbers = #tpu.dot_dimension_numbers<[1], [1], [0], [0], [0, 0, 1, 0], [], []>} : vector<8x8xbf16>, vector<8x8xbf16>, vector<8x8xf32> -> vector<8x8xf32>
    %64 = arith.addf %63, %5 : vector<8x8xf32>
    %cst_31 = arith.constant dense<0xFF800000> : vector<8xf32>
    %65 = vector.multi_reduction <maximumf>, %64, %cst_31 [1] : vector<8x8xf32> to vector<8xf32>
    %66 = vector.shape_cast %65 : vector<8xf32> to vector<8x1xf32>
    %67 = vector.broadcast %66 : vector<8x1xf32> to vector<8x8xf32>
    %68 = arith.subf %64, %67 : vector<8x8xf32>
    %69 = math.exp %68 : vector<8x8xf32>
    %cst_32 = arith.constant dense<0.000000e+00> : vector<8xf32>
    %70 = vector.multi_reduction <add>, %69, %cst_32 [1] : vector<8x8xf32> to vector<8xf32>
    %71 = vector.shape_cast %70 : vector<8xf32> to vector<8x1xf32>
    %72 = tpu.reciprocal %71 {approx = true} : vector<8x1xf32> -> vector<8x1xf32>
    %73 = vector.broadcast %72 : vector<8x1xf32> to vector<8x8xf32>
    %74 = arith.mulf %69, %73 : vector<8x8xf32>
    %75 = arith.truncf %74 : vector<8x8xf32> to vector<8x8xbf16>
    %76 = vector.extract_strided_slice %26 {offsets = [0, 16], sizes = [8, 8], strides = [1, 1]} : vector<8x32xbf16> to vector<8x8xbf16>
    %cst_33 = arith.constant dense<0.000000e+00> : vector<8x8xf32>
    %77 = tpu.matmul %75, %76, %cst_33 {dimension_numbers = #tpu.dot_dimension_numbers<[1], [0], [0], [1], [0, 0, 1, 1], [], []>} : vector<8x8xbf16>, vector<8x8xbf16>, vector<8x8xf32> -> vector<8x8xf32>
    %78 = vector.extract_strided_slice %24 {offsets = [0, 24], sizes = [8, 8], strides = [1, 1]} : vector<8x32xbf16> to vector<8x8xbf16>
    %79 = vector.extract_strided_slice %25 {offsets = [0, 24], sizes = [8, 8], strides = [1, 1]} : vector<8x32xbf16> to vector<8x8xbf16>
    %cst_34 = arith.constant dense<0.000000e+00> : vector<8x8xf32>
    %80 = tpu.matmul %78, %79, %cst_34 {dimension_numbers = #tpu.dot_dimension_numbers<[1], [1], [0], [0], [0, 0, 1, 0], [], []>} : vector<8x8xbf16>, vector<8x8xbf16>, vector<8x8xf32> -> vector<8x8xf32>
    %81 = arith.addf %80, %5 : vector<8x8xf32>
    %cst_35 = arith.constant dense<0xFF800000> : vector<8xf32>
    %82 = vector.multi_reduction <maximumf>, %81, %cst_35 [1] : vector<8x8xf32> to vector<8xf32>
    %83 = vector.shape_cast %82 : vector<8xf32> to vector<8x1xf32>
    %84 = vector.broadcast %83 : vector<8x1xf32> to vector<8x8xf32>
    %85 = arith.subf %81, %84 : vector<8x8xf32>
    %86 = math.exp %85 : vector<8x8xf32>
    %cst_36 = arith.constant dense<0.000000e+00> : vector<8xf32>
    %87 = vector.multi_reduction <add>, %86, %cst_36 [1] : vector<8x8xf32> to vector<8xf32>
    %88 = vector.shape_cast %87 : vector<8xf32> to vector<8x1xf32>
    %89 = tpu.reciprocal %88 {approx = true} : vector<8x1xf32> -> vector<8x1xf32>
    %90 = vector.broadcast %89 : vector<8x1xf32> to vector<8x8xf32>
    %91 = arith.mulf %86, %90 : vector<8x8xf32>
    %92 = arith.truncf %91 : vector<8x8xf32> to vector<8x8xbf16>
    %93 = vector.extract_strided_slice %26 {offsets = [0, 24], sizes = [8, 8], strides = [1, 1]} : vector<8x32xbf16> to vector<8x8xbf16>
    %cst_37 = arith.constant dense<0.000000e+00> : vector<8x8xf32>
    %94 = tpu.matmul %92, %93, %cst_37 {dimension_numbers = #tpu.dot_dimension_numbers<[1], [0], [0], [1], [0, 0, 1, 1], [], []>} : vector<8x8xbf16>, vector<8x8xbf16>, vector<8x8xf32> -> vector<8x8xf32>
    %95 = tpu.concatenate %43, %60, %77, %94 in 1 : vector<8x8xf32>, vector<8x8xf32>, vector<8x8xf32>, vector<8x8xf32> -> vector<8x32xf32>
    %96 = arith.truncf %95 : vector<8x32xf32> to vector<8x32xbf16>
    %cst_38 = arith.constant dense<0.000000e+00> : vector<8x32xf32>
    %97 = tpu.matmul %96, %13, %cst_38 {dimension_numbers = #tpu.dot_dimension_numbers<[1], [0], [0], [1], [0, 0, 1, 1], [], []>} : vector<8x32xbf16>, vector<32x32xbf16>, vector<8x32xf32> -> vector<8x32xf32>
    %98 = vector.broadcast %15 : vector<1x32xf32> to vector<8x32xf32>
    %99 = arith.addf %97, %98 : vector<8x32xf32>
    %100 = arith.addf %1, %99 : vector<8x32xf32>
    %c0_39 = arith.constant 0 : index
    %c0_40 = arith.constant 0 : index
    %c0_41 = arith.constant 0 : index
    %101 = vector.load %arg17[%c0_39, %c0_40, %c0_41] : memref<2x1x32xf32, #tpu.memory_space<vmem>>, vector<1x1x32xf32>
    %102 = vector.shape_cast %101 : vector<1x1x32xf32> to vector<1x32xf32>
    %c0_42 = arith.constant 0 : index
    %c0_43 = arith.constant 0 : index
    %c0_44 = arith.constant 0 : index
    %103 = vector.load %arg18[%c0_42, %c0_43, %c0_44] : memref<2x1x32xf32, #tpu.memory_space<vmem>>, vector<1x1x32xf32>
    %104 = vector.shape_cast %103 : vector<1x1x32xf32> to vector<1x32xf32>
    %cst_45 = arith.constant dense<0.000000e+00> : vector<8xf32>
    %105 = vector.multi_reduction <add>, %100, %cst_45 [1] : vector<8x32xf32> to vector<8xf32>
    %106 = vector.shape_cast %105 : vector<8xf32> to vector<8x1xf32>
    %cst_46 = arith.constant 3.200000e+01 : f32
    %107 = vector.broadcast %cst_46 : f32 to vector<8x1xf32>
    %108 = arith.divf %106, %107 : vector<8x1xf32>
    %109 = vector.broadcast %108 : vector<8x1xf32> to vector<8x32xf32>
    %110 = arith.subf %100, %109 : vector<8x32xf32>
    %111 = arith.mulf %110, %110 : vector<8x32xf32>
    %cst_47 = arith.constant dense<0.000000e+00> : vector<8xf32>
    %112 = vector.multi_reduction <add>, %111, %cst_47 [1] : vector<8x32xf32> to vector<8xf32>
    %113 = vector.shape_cast %112 : vector<8xf32> to vector<8x1xf32>
    %cst_48 = arith.constant 3.200000e+01 : f32
    %114 = vector.broadcast %cst_48 : f32 to vector<8x1xf32>
    %115 = arith.divf %113, %114 : vector<8x1xf32>
    %116 = vector.broadcast %108 : vector<8x1xf32> to vector<8x32xf32>
    %117 = arith.subf %100, %116 : vector<8x32xf32>
    %cst_49 = arith.constant 9.99999974E-6 : f32
    %118 = vector.broadcast %cst_49 : f32 to vector<8x1xf32>
    %119 = arith.addf %115, %118 : vector<8x1xf32>
    %120 = math.rsqrt %119 : vector<8x1xf32>
    %121 = vector.broadcast %120 : vector<8x1xf32> to vector<8x32xf32>
    %122 = arith.mulf %117, %121 : vector<8x32xf32>
    %123 = vector.broadcast %102 : vector<1x32xf32> to vector<8x32xf32>
    %124 = arith.mulf %122, %123 : vector<8x32xf32>
    %125 = vector.broadcast %104 : vector<1x32xf32> to vector<8x32xf32>
    %126 = arith.addf %124, %125 : vector<8x32xf32>
    %127 = arith.truncf %126 : vector<8x32xf32> to vector<8x32xbf16>
    %c0_50 = arith.constant 0 : index
    %c0_51 = arith.constant 0 : index
    %c0_52 = arith.constant 0 : index
    %128 = vector.load %arg9[%c0_50, %c0_51, %c0_52] : memref<2x32x96xbf16, #tpu.memory_space<vmem>>, vector<1x32x96xbf16>
    %129 = vector.shape_cast %128 : vector<1x32x96xbf16> to vector<32x96xbf16>
    %c0_53 = arith.constant 0 : index
    %c0_54 = arith.constant 0 : index
    %c0_55 = arith.constant 0 : index
    %130 = vector.load %arg10[%c0_53, %c0_54, %c0_55] : memref<2x1x96xf32, #tpu.memory_space<vmem>>, vector<1x1x96xf32>
    %131 = vector.shape_cast %130 : vector<1x1x96xf32> to vector<1x96xf32>
    %c0_56 = arith.constant 0 : index
    %c0_57 = arith.constant 0 : index
    %c0_58 = arith.constant 0 : index
    %132 = vector.load %arg11[%c0_56, %c0_57, %c0_58] : memref<2x32x32xbf16, #tpu.memory_space<vmem>>, vector<1x32x32xbf16>
    %133 = vector.shape_cast %132 : vector<1x32x32xbf16> to vector<32x32xbf16>
    %c0_59 = arith.constant 0 : index
    %c0_60 = arith.constant 0 : index
    %c0_61 = arith.constant 0 : index
    %134 = vector.load %arg12[%c0_59, %c0_60, %c0_61] : memref<2x1x32xf32, #tpu.memory_space<vmem>>, vector<1x1x32xf32>
    %135 = vector.shape_cast %134 : vector<1x1x32xf32> to vector<1x32xf32>
    %136 = vector.extract_strided_slice %129 {offsets = [0, 0], sizes = [32, 32], strides = [1, 1]} : vector<32x96xbf16> to vector<32x32xbf16>
    %cst_62 = arith.constant dense<0.000000e+00> : vector<8x32xf32>
    %137 = tpu.matmul %127, %136, %cst_62 {dimension_numbers = #tpu.dot_dimension_numbers<[1], [0], [0], [1], [0, 0, 1, 1], [], []>} : vector<8x32xbf16>, vector<32x32xbf16>, vector<8x32xf32> -> vector<8x32xf32>
    %138 = vector.extract_strided_slice %131 {offsets = [0, 0], sizes = [1, 32], strides = [1, 1]} : vector<1x96xf32> to vector<1x32xf32>
    %139 = vector.broadcast %138 : vector<1x32xf32> to vector<8x32xf32>
    %140 = arith.addf %137, %139 : vector<8x32xf32>
    %141 = vector.extract_strided_slice %129 {offsets = [0, 32], sizes = [32, 64], strides = [1, 1]} : vector<32x96xbf16> to vector<32x64xbf16>
    %cst_63 = arith.constant dense<0.000000e+00> : vector<8x64xf32>
    %142 = tpu.matmul %4, %141, %cst_63 {dimension_numbers = #tpu.dot_dimension_numbers<[1], [0], [0], [1], [0, 0, 1, 1], [], []>} : vector<8x32xbf16>, vector<32x64xbf16>, vector<8x64xf32> -> vector<8x64xf32>
    %143 = vector.extract_strided_slice %131 {offsets = [0, 32], sizes = [1, 64], strides = [1, 1]} : vector<1x96xf32> to vector<1x64xf32>
    %144 = vector.broadcast %143 : vector<1x64xf32> to vector<8x64xf32>
    %145 = arith.addf %142, %144 : vector<8x64xf32>
    %146 = vector.extract_strided_slice %145 {offsets = [0, 0], sizes = [8, 32], strides = [1, 1]} : vector<8x64xf32> to vector<8x32xf32>
    %147 = vector.extract_strided_slice %145 {offsets = [0, 32], sizes = [8, 32], strides = [1, 1]} : vector<8x64xf32> to vector<8x32xf32>
    %cst_64 = arith.constant 0.353553385 : f32
    %148 = vector.broadcast %cst_64 : f32 to vector<8x32xf32>
    %149 = arith.mulf %140, %148 : vector<8x32xf32>
    %150 = arith.truncf %149 : vector<8x32xf32> to vector<8x32xbf16>
    %151 = arith.truncf %146 : vector<8x32xf32> to vector<8x32xbf16>
    %152 = arith.truncf %147 : vector<8x32xf32> to vector<8x32xbf16>
    %153 = vector.extract_strided_slice %150 {offsets = [0, 0], sizes = [8, 8], strides = [1, 1]} : vector<8x32xbf16> to vector<8x8xbf16>
    %154 = vector.extract_strided_slice %151 {offsets = [0, 0], sizes = [8, 8], strides = [1, 1]} : vector<8x32xbf16> to vector<8x8xbf16>
    %cst_65 = arith.constant dense<0.000000e+00> : vector<8x8xf32>
    %155 = tpu.matmul %153, %154, %cst_65 {dimension_numbers = #tpu.dot_dimension_numbers<[1], [1], [0], [0], [0, 0, 1, 0], [], []>} : vector<8x8xbf16>, vector<8x8xbf16>, vector<8x8xf32> -> vector<8x8xf32>
    %156 = arith.addf %155, %6 : vector<8x8xf32>
    %cst_66 = arith.constant dense<0xFF800000> : vector<8xf32>
    %157 = vector.multi_reduction <maximumf>, %156, %cst_66 [1] : vector<8x8xf32> to vector<8xf32>
    %158 = vector.shape_cast %157 : vector<8xf32> to vector<8x1xf32>
    %159 = vector.broadcast %158 : vector<8x1xf32> to vector<8x8xf32>
    %160 = arith.subf %156, %159 : vector<8x8xf32>
    %161 = math.exp %160 : vector<8x8xf32>
    %cst_67 = arith.constant dense<0.000000e+00> : vector<8xf32>
    %162 = vector.multi_reduction <add>, %161, %cst_67 [1] : vector<8x8xf32> to vector<8xf32>
    %163 = vector.shape_cast %162 : vector<8xf32> to vector<8x1xf32>
    %164 = tpu.reciprocal %163 {approx = true} : vector<8x1xf32> -> vector<8x1xf32>
    %165 = vector.broadcast %164 : vector<8x1xf32> to vector<8x8xf32>
    %166 = arith.mulf %161, %165 : vector<8x8xf32>
    %167 = arith.truncf %166 : vector<8x8xf32> to vector<8x8xbf16>
    %168 = vector.extract_strided_slice %152 {offsets = [0, 0], sizes = [8, 8], strides = [1, 1]} : vector<8x32xbf16> to vector<8x8xbf16>
    %cst_68 = arith.constant dense<0.000000e+00> : vector<8x8xf32>
    %169 = tpu.matmul %167, %168, %cst_68 {dimension_numbers = #tpu.dot_dimension_numbers<[1], [0], [0], [1], [0, 0, 1, 1], [], []>} : vector<8x8xbf16>, vector<8x8xbf16>, vector<8x8xf32> -> vector<8x8xf32>
    %170 = vector.extract_strided_slice %150 {offsets = [0, 8], sizes = [8, 8], strides = [1, 1]} : vector<8x32xbf16> to vector<8x8xbf16>
    %171 = vector.extract_strided_slice %151 {offsets = [0, 8], sizes = [8, 8], strides = [1, 1]} : vector<8x32xbf16> to vector<8x8xbf16>
    %cst_69 = arith.constant dense<0.000000e+00> : vector<8x8xf32>
    %172 = tpu.matmul %170, %171, %cst_69 {dimension_numbers = #tpu.dot_dimension_numbers<[1], [1], [0], [0], [0, 0, 1, 0], [], []>} : vector<8x8xbf16>, vector<8x8xbf16>, vector<8x8xf32> -> vector<8x8xf32>
    %173 = arith.addf %172, %6 : vector<8x8xf32>
    %cst_70 = arith.constant dense<0xFF800000> : vector<8xf32>
    %174 = vector.multi_reduction <maximumf>, %173, %cst_70 [1] : vector<8x8xf32> to vector<8xf32>
    %175 = vector.shape_cast %174 : vector<8xf32> to vector<8x1xf32>
    %176 = vector.broadcast %175 : vector<8x1xf32> to vector<8x8xf32>
    %177 = arith.subf %173, %176 : vector<8x8xf32>
    %178 = math.exp %177 : vector<8x8xf32>
    %cst_71 = arith.constant dense<0.000000e+00> : vector<8xf32>
    %179 = vector.multi_reduction <add>, %178, %cst_71 [1] : vector<8x8xf32> to vector<8xf32>
    %180 = vector.shape_cast %179 : vector<8xf32> to vector<8x1xf32>
    %181 = tpu.reciprocal %180 {approx = true} : vector<8x1xf32> -> vector<8x1xf32>
    %182 = vector.broadcast %181 : vector<8x1xf32> to vector<8x8xf32>
    %183 = arith.mulf %178, %182 : vector<8x8xf32>
    %184 = arith.truncf %183 : vector<8x8xf32> to vector<8x8xbf16>
    %185 = vector.extract_strided_slice %152 {offsets = [0, 8], sizes = [8, 8], strides = [1, 1]} : vector<8x32xbf16> to vector<8x8xbf16>
    %cst_72 = arith.constant dense<0.000000e+00> : vector<8x8xf32>
    %186 = tpu.matmul %184, %185, %cst_72 {dimension_numbers = #tpu.dot_dimension_numbers<[1], [0], [0], [1], [0, 0, 1, 1], [], []>} : vector<8x8xbf16>, vector<8x8xbf16>, vector<8x8xf32> -> vector<8x8xf32>
    %187 = vector.extract_strided_slice %150 {offsets = [0, 16], sizes = [8, 8], strides = [1, 1]} : vector<8x32xbf16> to vector<8x8xbf16>
    %188 = vector.extract_strided_slice %151 {offsets = [0, 16], sizes = [8, 8], strides = [1, 1]} : vector<8x32xbf16> to vector<8x8xbf16>
    %cst_73 = arith.constant dense<0.000000e+00> : vector<8x8xf32>
    %189 = tpu.matmul %187, %188, %cst_73 {dimension_numbers = #tpu.dot_dimension_numbers<[1], [1], [0], [0], [0, 0, 1, 0], [], []>} : vector<8x8xbf16>, vector<8x8xbf16>, vector<8x8xf32> -> vector<8x8xf32>
    %190 = arith.addf %189, %6 : vector<8x8xf32>
    %cst_74 = arith.constant dense<0xFF800000> : vector<8xf32>
    %191 = vector.multi_reduction <maximumf>, %190, %cst_74 [1] : vector<8x8xf32> to vector<8xf32>
    %192 = vector.shape_cast %191 : vector<8xf32> to vector<8x1xf32>
    %193 = vector.broadcast %192 : vector<8x1xf32> to vector<8x8xf32>
    %194 = arith.subf %190, %193 : vector<8x8xf32>
    %195 = math.exp %194 : vector<8x8xf32>
    %cst_75 = arith.constant dense<0.000000e+00> : vector<8xf32>
    %196 = vector.multi_reduction <add>, %195, %cst_75 [1] : vector<8x8xf32> to vector<8xf32>
    %197 = vector.shape_cast %196 : vector<8xf32> to vector<8x1xf32>
    %198 = tpu.reciprocal %197 {approx = true} : vector<8x1xf32> -> vector<8x1xf32>
    %199 = vector.broadcast %198 : vector<8x1xf32> to vector<8x8xf32>
    %200 = arith.mulf %195, %199 : vector<8x8xf32>
    %201 = arith.truncf %200 : vector<8x8xf32> to vector<8x8xbf16>
    %202 = vector.extract_strided_slice %152 {offsets = [0, 16], sizes = [8, 8], strides = [1, 1]} : vector<8x32xbf16> to vector<8x8xbf16>
    %cst_76 = arith.constant dense<0.000000e+00> : vector<8x8xf32>
    %203 = tpu.matmul %201, %202, %cst_76 {dimension_numbers = #tpu.dot_dimension_numbers<[1], [0], [0], [1], [0, 0, 1, 1], [], []>} : vector<8x8xbf16>, vector<8x8xbf16>, vector<8x8xf32> -> vector<8x8xf32>
    %204 = vector.extract_strided_slice %150 {offsets = [0, 24], sizes = [8, 8], strides = [1, 1]} : vector<8x32xbf16> to vector<8x8xbf16>
    %205 = vector.extract_strided_slice %151 {offsets = [0, 24], sizes = [8, 8], strides = [1, 1]} : vector<8x32xbf16> to vector<8x8xbf16>
    %cst_77 = arith.constant dense<0.000000e+00> : vector<8x8xf32>
    %206 = tpu.matmul %204, %205, %cst_77 {dimension_numbers = #tpu.dot_dimension_numbers<[1], [1], [0], [0], [0, 0, 1, 0], [], []>} : vector<8x8xbf16>, vector<8x8xbf16>, vector<8x8xf32> -> vector<8x8xf32>
    %207 = arith.addf %206, %6 : vector<8x8xf32>
    %cst_78 = arith.constant dense<0xFF800000> : vector<8xf32>
    %208 = vector.multi_reduction <maximumf>, %207, %cst_78 [1] : vector<8x8xf32> to vector<8xf32>
    %209 = vector.shape_cast %208 : vector<8xf32> to vector<8x1xf32>
    %210 = vector.broadcast %209 : vector<8x1xf32> to vector<8x8xf32>
    %211 = arith.subf %207, %210 : vector<8x8xf32>
    %212 = math.exp %211 : vector<8x8xf32>
    %cst_79 = arith.constant dense<0.000000e+00> : vector<8xf32>
    %213 = vector.multi_reduction <add>, %212, %cst_79 [1] : vector<8x8xf32> to vector<8xf32>
    %214 = vector.shape_cast %213 : vector<8xf32> to vector<8x1xf32>
    %215 = tpu.reciprocal %214 {approx = true} : vector<8x1xf32> -> vector<8x1xf32>
    %216 = vector.broadcast %215 : vector<8x1xf32> to vector<8x8xf32>
    %217 = arith.mulf %212, %216 : vector<8x8xf32>
    %218 = arith.truncf %217 : vector<8x8xf32> to vector<8x8xbf16>
    %219 = vector.extract_strided_slice %152 {offsets = [0, 24], sizes = [8, 8], strides = [1, 1]} : vector<8x32xbf16> to vector<8x8xbf16>
    %cst_80 = arith.constant dense<0.000000e+00> : vector<8x8xf32>
    %220 = tpu.matmul %218, %219, %cst_80 {dimension_numbers = #tpu.dot_dimension_numbers<[1], [0], [0], [1], [0, 0, 1, 1], [], []>} : vector<8x8xbf16>, vector<8x8xbf16>, vector<8x8xf32> -> vector<8x8xf32>
    %221 = tpu.concatenate %169, %186, %203, %220 in 1 : vector<8x8xf32>, vector<8x8xf32>, vector<8x8xf32>, vector<8x8xf32> -> vector<8x32xf32>
    %222 = arith.truncf %221 : vector<8x32xf32> to vector<8x32xbf16>
    %cst_81 = arith.constant dense<0.000000e+00> : vector<8x32xf32>
    %223 = tpu.matmul %222, %133, %cst_81 {dimension_numbers = #tpu.dot_dimension_numbers<[1], [0], [0], [1], [0, 0, 1, 1], [], []>} : vector<8x32xbf16>, vector<32x32xbf16>, vector<8x32xf32> -> vector<8x32xf32>
    %224 = vector.broadcast %135 : vector<1x32xf32> to vector<8x32xf32>
    %225 = arith.addf %223, %224 : vector<8x32xf32>
    %226 = arith.addf %126, %225 : vector<8x32xf32>
    %c0_82 = arith.constant 0 : index
    %c0_83 = arith.constant 0 : index
    %c0_84 = arith.constant 0 : index
    %227 = vector.load %arg19[%c0_82, %c0_83, %c0_84] : memref<2x1x32xf32, #tpu.memory_space<vmem>>, vector<1x1x32xf32>
    %228 = vector.shape_cast %227 : vector<1x1x32xf32> to vector<1x32xf32>
    %c0_85 = arith.constant 0 : index
    %c0_86 = arith.constant 0 : index
    %c0_87 = arith.constant 0 : index
    %229 = vector.load %arg20[%c0_85, %c0_86, %c0_87] : memref<2x1x32xf32, #tpu.memory_space<vmem>>, vector<1x1x32xf32>
    %230 = vector.shape_cast %229 : vector<1x1x32xf32> to vector<1x32xf32>
    %cst_88 = arith.constant dense<0.000000e+00> : vector<8xf32>
    %231 = vector.multi_reduction <add>, %226, %cst_88 [1] : vector<8x32xf32> to vector<8xf32>
    %232 = vector.shape_cast %231 : vector<8xf32> to vector<8x1xf32>
    %cst_89 = arith.constant 3.200000e+01 : f32
    %233 = vector.broadcast %cst_89 : f32 to vector<8x1xf32>
    %234 = arith.divf %232, %233 : vector<8x1xf32>
    %235 = vector.broadcast %234 : vector<8x1xf32> to vector<8x32xf32>
    %236 = arith.subf %226, %235 : vector<8x32xf32>
    %237 = arith.mulf %236, %236 : vector<8x32xf32>
    %cst_90 = arith.constant dense<0.000000e+00> : vector<8xf32>
    %238 = vector.multi_reduction <add>, %237, %cst_90 [1] : vector<8x32xf32> to vector<8xf32>
    %239 = vector.shape_cast %238 : vector<8xf32> to vector<8x1xf32>
    %cst_91 = arith.constant 3.200000e+01 : f32
    %240 = vector.broadcast %cst_91 : f32 to vector<8x1xf32>
    %241 = arith.divf %239, %240 : vector<8x1xf32>
    %242 = vector.broadcast %234 : vector<8x1xf32> to vector<8x32xf32>
    %243 = arith.subf %226, %242 : vector<8x32xf32>
    %cst_92 = arith.constant 9.99999974E-6 : f32
    %244 = vector.broadcast %cst_92 : f32 to vector<8x1xf32>
    %245 = arith.addf %241, %244 : vector<8x1xf32>
    %246 = math.rsqrt %245 : vector<8x1xf32>
    %247 = vector.broadcast %246 : vector<8x1xf32> to vector<8x32xf32>
    %248 = arith.mulf %243, %247 : vector<8x32xf32>
    %249 = vector.broadcast %228 : vector<1x32xf32> to vector<8x32xf32>
    %250 = arith.mulf %248, %249 : vector<8x32xf32>
    %251 = vector.broadcast %230 : vector<1x32xf32> to vector<8x32xf32>
    %252 = arith.addf %250, %251 : vector<8x32xf32>
    %253 = arith.truncf %252 : vector<8x32xf32> to vector<8x32xbf16>
    %c0_93 = arith.constant 0 : index
    %c0_94 = arith.constant 0 : index
    %c0_95 = arith.constant 0 : index
    %254 = vector.load %arg13[%c0_93, %c0_94, %c0_95] : memref<2x32x64xbf16, #tpu.memory_space<vmem>>, vector<1x32x64xbf16>
    %255 = vector.shape_cast %254 : vector<1x32x64xbf16> to vector<32x64xbf16>
    %cst_96 = arith.constant dense<0.000000e+00> : vector<8x64xf32>
    %256 = tpu.matmul %253, %255, %cst_96 {dimension_numbers = #tpu.dot_dimension_numbers<[1], [0], [0], [1], [0, 0, 1, 1], [], []>} : vector<8x32xbf16>, vector<32x64xbf16>, vector<8x64xf32> -> vector<8x64xf32>
    %c0_97 = arith.constant 0 : index
    %c0_98 = arith.constant 0 : index
    %c0_99 = arith.constant 0 : index
    %257 = vector.load %arg14[%c0_97, %c0_98, %c0_99] : memref<2x1x64xf32, #tpu.memory_space<vmem>>, vector<1x1x64xf32>
    %258 = vector.shape_cast %257 : vector<1x1x64xf32> to vector<1x64xf32>
    %259 = vector.broadcast %258 : vector<1x64xf32> to vector<8x64xf32>
    %260 = arith.addf %256, %259 : vector<8x64xf32>
    %cst_100 = arith.constant 0.000000e+00 : f32
    %261 = vector.broadcast %cst_100 : f32 to vector<8x64xf32>
    %262 = arith.maximumf %260, %261 : vector<8x64xf32>
    %263 = arith.truncf %262 : vector<8x64xf32> to vector<8x64xbf16>
    %c0_101 = arith.constant 0 : index
    %c0_102 = arith.constant 0 : index
    %c0_103 = arith.constant 0 : index
    %264 = vector.load %arg15[%c0_101, %c0_102, %c0_103] : memref<2x64x32xbf16, #tpu.memory_space<vmem>>, vector<1x64x32xbf16>
    %265 = vector.shape_cast %264 : vector<1x64x32xbf16> to vector<64x32xbf16>
    %cst_104 = arith.constant dense<0.000000e+00> : vector<8x32xf32>
    %266 = tpu.matmul %263, %265, %cst_104 {dimension_numbers = #tpu.dot_dimension_numbers<[1], [0], [0], [1], [0, 0, 1, 1], [], []>} : vector<8x64xbf16>, vector<64x32xbf16>, vector<8x32xf32> -> vector<8x32xf32>
    %c0_105 = arith.constant 0 : index
    %c0_106 = arith.constant 0 : index
    %c0_107 = arith.constant 0 : index
    %267 = vector.load %arg16[%c0_105, %c0_106, %c0_107] : memref<2x1x32xf32, #tpu.memory_space<vmem>>, vector<1x1x32xf32>
    %268 = vector.shape_cast %267 : vector<1x1x32xf32> to vector<1x32xf32>
    %269 = vector.broadcast %268 : vector<1x32xf32> to vector<8x32xf32>
    %270 = arith.addf %266, %269 : vector<8x32xf32>
    %271 = arith.addf %252, %270 : vector<8x32xf32>
    %c0_108 = arith.constant 0 : index
    %c0_109 = arith.constant 0 : index
    %c0_110 = arith.constant 0 : index
    %272 = vector.load %arg21[%c0_108, %c0_109, %c0_110] : memref<2x1x32xf32, #tpu.memory_space<vmem>>, vector<1x1x32xf32>
    %273 = vector.shape_cast %272 : vector<1x1x32xf32> to vector<1x32xf32>
    %c0_111 = arith.constant 0 : index
    %c0_112 = arith.constant 0 : index
    %c0_113 = arith.constant 0 : index
    %274 = vector.load %arg22[%c0_111, %c0_112, %c0_113] : memref<2x1x32xf32, #tpu.memory_space<vmem>>, vector<1x1x32xf32>
    %275 = vector.shape_cast %274 : vector<1x1x32xf32> to vector<1x32xf32>
    %cst_114 = arith.constant dense<0.000000e+00> : vector<8xf32>
    %276 = vector.multi_reduction <add>, %271, %cst_114 [1] : vector<8x32xf32> to vector<8xf32>
    %277 = vector.shape_cast %276 : vector<8xf32> to vector<8x1xf32>
    %cst_115 = arith.constant 3.200000e+01 : f32
    %278 = vector.broadcast %cst_115 : f32 to vector<8x1xf32>
    %279 = arith.divf %277, %278 : vector<8x1xf32>
    %280 = vector.broadcast %279 : vector<8x1xf32> to vector<8x32xf32>
    %281 = arith.subf %271, %280 : vector<8x32xf32>
    %282 = arith.mulf %281, %281 : vector<8x32xf32>
    %cst_116 = arith.constant dense<0.000000e+00> : vector<8xf32>
    %283 = vector.multi_reduction <add>, %282, %cst_116 [1] : vector<8x32xf32> to vector<8xf32>
    %284 = vector.shape_cast %283 : vector<8xf32> to vector<8x1xf32>
    %cst_117 = arith.constant 3.200000e+01 : f32
    %285 = vector.broadcast %cst_117 : f32 to vector<8x1xf32>
    %286 = arith.divf %284, %285 : vector<8x1xf32>
    %287 = vector.broadcast %279 : vector<8x1xf32> to vector<8x32xf32>
    %288 = arith.subf %271, %287 : vector<8x32xf32>
    %cst_118 = arith.constant 9.99999974E-6 : f32
    %289 = vector.broadcast %cst_118 : f32 to vector<8x1xf32>
    %290 = arith.addf %286, %289 : vector<8x1xf32>
    %291 = math.rsqrt %290 : vector<8x1xf32>
    %292 = vector.broadcast %291 : vector<8x1xf32> to vector<8x32xf32>
    %293 = arith.mulf %288, %292 : vector<8x32xf32>
    %294 = vector.broadcast %273 : vector<1x32xf32> to vector<8x32xf32>
    %295 = arith.mulf %293, %294 : vector<8x32xf32>
    %296 = vector.broadcast %275 : vector<1x32xf32> to vector<8x32xf32>
    %297 = arith.addf %295, %296 : vector<8x32xf32>
    %298 = arith.truncf %297 : vector<8x32xf32> to vector<8x32xbf16>
    %c1 = arith.constant 1 : index
    %c0_119 = arith.constant 0 : index
    %c0_120 = arith.constant 0 : index
    %299 = vector.load %arg5[%c1, %c0_119, %c0_120] : memref<2x32x96xbf16, #tpu.memory_space<vmem>>, vector<1x32x96xbf16>
    %300 = vector.shape_cast %299 : vector<1x32x96xbf16> to vector<32x96xbf16>
    %c1_121 = arith.constant 1 : index
    %c0_122 = arith.constant 0 : index
    %c0_123 = arith.constant 0 : index
    %301 = vector.load %arg6[%c1_121, %c0_122, %c0_123] : memref<2x1x96xf32, #tpu.memory_space<vmem>>, vector<1x1x96xf32>
    %302 = vector.shape_cast %301 : vector<1x1x96xf32> to vector<1x96xf32>
    %c1_124 = arith.constant 1 : index
    %c0_125 = arith.constant 0 : index
    %c0_126 = arith.constant 0 : index
    %303 = vector.load %arg7[%c1_124, %c0_125, %c0_126] : memref<2x32x32xbf16, #tpu.memory_space<vmem>>, vector<1x32x32xbf16>
    %304 = vector.shape_cast %303 : vector<1x32x32xbf16> to vector<32x32xbf16>
    %c1_127 = arith.constant 1 : index
    %c0_128 = arith.constant 0 : index
    %c0_129 = arith.constant 0 : index
    %305 = vector.load %arg8[%c1_127, %c0_128, %c0_129] : memref<2x1x32xf32, #tpu.memory_space<vmem>>, vector<1x1x32xf32>
    %306 = vector.shape_cast %305 : vector<1x1x32xf32> to vector<1x32xf32>
    %cst_130 = arith.constant dense<0.000000e+00> : vector<8x96xf32>
    %307 = tpu.matmul %298, %300, %cst_130 {dimension_numbers = #tpu.dot_dimension_numbers<[1], [0], [0], [1], [0, 0, 1, 1], [], []>} : vector<8x32xbf16>, vector<32x96xbf16>, vector<8x96xf32> -> vector<8x96xf32>
    %308 = vector.broadcast %302 : vector<1x96xf32> to vector<8x96xf32>
    %309 = arith.addf %307, %308 : vector<8x96xf32>
    %310 = vector.extract_strided_slice %309 {offsets = [0, 0], sizes = [8, 32], strides = [1, 1]} : vector<8x96xf32> to vector<8x32xf32>
    %311 = vector.extract_strided_slice %309 {offsets = [0, 32], sizes = [8, 32], strides = [1, 1]} : vector<8x96xf32> to vector<8x32xf32>
    %312 = vector.extract_strided_slice %309 {offsets = [0, 64], sizes = [8, 32], strides = [1, 1]} : vector<8x96xf32> to vector<8x32xf32>
    %cst_131 = arith.constant 0.353553385 : f32
    %313 = vector.broadcast %cst_131 : f32 to vector<8x32xf32>
    %314 = arith.mulf %310, %313 : vector<8x32xf32>
    %315 = arith.truncf %314 : vector<8x32xf32> to vector<8x32xbf16>
    %316 = arith.truncf %311 : vector<8x32xf32> to vector<8x32xbf16>
    %317 = arith.truncf %312 : vector<8x32xf32> to vector<8x32xbf16>
    %318 = vector.extract_strided_slice %315 {offsets = [0, 0], sizes = [8, 8], strides = [1, 1]} : vector<8x32xbf16> to vector<8x8xbf16>
    %319 = vector.extract_strided_slice %316 {offsets = [0, 0], sizes = [8, 8], strides = [1, 1]} : vector<8x32xbf16> to vector<8x8xbf16>
    %cst_132 = arith.constant dense<0.000000e+00> : vector<8x8xf32>
    %320 = tpu.matmul %318, %319, %cst_132 {dimension_numbers = #tpu.dot_dimension_numbers<[1], [1], [0], [0], [0, 0, 1, 0], [], []>} : vector<8x8xbf16>, vector<8x8xbf16>, vector<8x8xf32> -> vector<8x8xf32>
    %321 = arith.addf %320, %5 : vector<8x8xf32>
    %cst_133 = arith.constant dense<0xFF800000> : vector<8xf32>
    %322 = vector.multi_reduction <maximumf>, %321, %cst_133 [1] : vector<8x8xf32> to vector<8xf32>
    %323 = vector.shape_cast %322 : vector<8xf32> to vector<8x1xf32>
    %324 = vector.broadcast %323 : vector<8x1xf32> to vector<8x8xf32>
    %325 = arith.subf %321, %324 : vector<8x8xf32>
    %326 = math.exp %325 : vector<8x8xf32>
    %cst_134 = arith.constant dense<0.000000e+00> : vector<8xf32>
    %327 = vector.multi_reduction <add>, %326, %cst_134 [1] : vector<8x8xf32> to vector<8xf32>
    %328 = vector.shape_cast %327 : vector<8xf32> to vector<8x1xf32>
    %329 = tpu.reciprocal %328 {approx = true} : vector<8x1xf32> -> vector<8x1xf32>
    %330 = vector.broadcast %329 : vector<8x1xf32> to vector<8x8xf32>
    %331 = arith.mulf %326, %330 : vector<8x8xf32>
    %332 = arith.truncf %331 : vector<8x8xf32> to vector<8x8xbf16>
    %333 = vector.extract_strided_slice %317 {offsets = [0, 0], sizes = [8, 8], strides = [1, 1]} : vector<8x32xbf16> to vector<8x8xbf16>
    %cst_135 = arith.constant dense<0.000000e+00> : vector<8x8xf32>
    %334 = tpu.matmul %332, %333, %cst_135 {dimension_numbers = #tpu.dot_dimension_numbers<[1], [0], [0], [1], [0, 0, 1, 1], [], []>} : vector<8x8xbf16>, vector<8x8xbf16>, vector<8x8xf32> -> vector<8x8xf32>
    %335 = vector.extract_strided_slice %315 {offsets = [0, 8], sizes = [8, 8], strides = [1, 1]} : vector<8x32xbf16> to vector<8x8xbf16>
    %336 = vector.extract_strided_slice %316 {offsets = [0, 8], sizes = [8, 8], strides = [1, 1]} : vector<8x32xbf16> to vector<8x8xbf16>
    %cst_136 = arith.constant dense<0.000000e+00> : vector<8x8xf32>
    %337 = tpu.matmul %335, %336, %cst_136 {dimension_numbers = #tpu.dot_dimension_numbers<[1], [1], [0], [0], [0, 0, 1, 0], [], []>} : vector<8x8xbf16>, vector<8x8xbf16>, vector<8x8xf32> -> vector<8x8xf32>
    %338 = arith.addf %337, %5 : vector<8x8xf32>
    %cst_137 = arith.constant dense<0xFF800000> : vector<8xf32>
    %339 = vector.multi_reduction <maximumf>, %338, %cst_137 [1] : vector<8x8xf32> to vector<8xf32>
    %340 = vector.shape_cast %339 : vector<8xf32> to vector<8x1xf32>
    %341 = vector.broadcast %340 : vector<8x1xf32> to vector<8x8xf32>
    %342 = arith.subf %338, %341 : vector<8x8xf32>
    %343 = math.exp %342 : vector<8x8xf32>
    %cst_138 = arith.constant dense<0.000000e+00> : vector<8xf32>
    %344 = vector.multi_reduction <add>, %343, %cst_138 [1] : vector<8x8xf32> to vector<8xf32>
    %345 = vector.shape_cast %344 : vector<8xf32> to vector<8x1xf32>
    %346 = tpu.reciprocal %345 {approx = true} : vector<8x1xf32> -> vector<8x1xf32>
    %347 = vector.broadcast %346 : vector<8x1xf32> to vector<8x8xf32>
    %348 = arith.mulf %343, %347 : vector<8x8xf32>
    %349 = arith.truncf %348 : vector<8x8xf32> to vector<8x8xbf16>
    %350 = vector.extract_strided_slice %317 {offsets = [0, 8], sizes = [8, 8], strides = [1, 1]} : vector<8x32xbf16> to vector<8x8xbf16>
    %cst_139 = arith.constant dense<0.000000e+00> : vector<8x8xf32>
    %351 = tpu.matmul %349, %350, %cst_139 {dimension_numbers = #tpu.dot_dimension_numbers<[1], [0], [0], [1], [0, 0, 1, 1], [], []>} : vector<8x8xbf16>, vector<8x8xbf16>, vector<8x8xf32> -> vector<8x8xf32>
    %352 = vector.extract_strided_slice %315 {offsets = [0, 16], sizes = [8, 8], strides = [1, 1]} : vector<8x32xbf16> to vector<8x8xbf16>
    %353 = vector.extract_strided_slice %316 {offsets = [0, 16], sizes = [8, 8], strides = [1, 1]} : vector<8x32xbf16> to vector<8x8xbf16>
    %cst_140 = arith.constant dense<0.000000e+00> : vector<8x8xf32>
    %354 = tpu.matmul %352, %353, %cst_140 {dimension_numbers = #tpu.dot_dimension_numbers<[1], [1], [0], [0], [0, 0, 1, 0], [], []>} : vector<8x8xbf16>, vector<8x8xbf16>, vector<8x8xf32> -> vector<8x8xf32>
    %355 = arith.addf %354, %5 : vector<8x8xf32>
    %cst_141 = arith.constant dense<0xFF800000> : vector<8xf32>
    %356 = vector.multi_reduction <maximumf>, %355, %cst_141 [1] : vector<8x8xf32> to vector<8xf32>
    %357 = vector.shape_cast %356 : vector<8xf32> to vector<8x1xf32>
    %358 = vector.broadcast %357 : vector<8x1xf32> to vector<8x8xf32>
    %359 = arith.subf %355, %358 : vector<8x8xf32>
    %360 = math.exp %359 : vector<8x8xf32>
    %cst_142 = arith.constant dense<0.000000e+00> : vector<8xf32>
    %361 = vector.multi_reduction <add>, %360, %cst_142 [1] : vector<8x8xf32> to vector<8xf32>
    %362 = vector.shape_cast %361 : vector<8xf32> to vector<8x1xf32>
    %363 = tpu.reciprocal %362 {approx = true} : vector<8x1xf32> -> vector<8x1xf32>
    %364 = vector.broadcast %363 : vector<8x1xf32> to vector<8x8xf32>
    %365 = arith.mulf %360, %364 : vector<8x8xf32>
    %366 = arith.truncf %365 : vector<8x8xf32> to vector<8x8xbf16>
    %367 = vector.extract_strided_slice %317 {offsets = [0, 16], sizes = [8, 8], strides = [1, 1]} : vector<8x32xbf16> to vector<8x8xbf16>
    %cst_143 = arith.constant dense<0.000000e+00> : vector<8x8xf32>
    %368 = tpu.matmul %366, %367, %cst_143 {dimension_numbers = #tpu.dot_dimension_numbers<[1], [0], [0], [1], [0, 0, 1, 1], [], []>} : vector<8x8xbf16>, vector<8x8xbf16>, vector<8x8xf32> -> vector<8x8xf32>
    %369 = vector.extract_strided_slice %315 {offsets = [0, 24], sizes = [8, 8], strides = [1, 1]} : vector<8x32xbf16> to vector<8x8xbf16>
    %370 = vector.extract_strided_slice %316 {offsets = [0, 24], sizes = [8, 8], strides = [1, 1]} : vector<8x32xbf16> to vector<8x8xbf16>
    %cst_144 = arith.constant dense<0.000000e+00> : vector<8x8xf32>
    %371 = tpu.matmul %369, %370, %cst_144 {dimension_numbers = #tpu.dot_dimension_numbers<[1], [1], [0], [0], [0, 0, 1, 0], [], []>} : vector<8x8xbf16>, vector<8x8xbf16>, vector<8x8xf32> -> vector<8x8xf32>
    %372 = arith.addf %371, %5 : vector<8x8xf32>
    %cst_145 = arith.constant dense<0xFF800000> : vector<8xf32>
    %373 = vector.multi_reduction <maximumf>, %372, %cst_145 [1] : vector<8x8xf32> to vector<8xf32>
    %374 = vector.shape_cast %373 : vector<8xf32> to vector<8x1xf32>
    %375 = vector.broadcast %374 : vector<8x1xf32> to vector<8x8xf32>
    %376 = arith.subf %372, %375 : vector<8x8xf32>
    %377 = math.exp %376 : vector<8x8xf32>
    %cst_146 = arith.constant dense<0.000000e+00> : vector<8xf32>
    %378 = vector.multi_reduction <add>, %377, %cst_146 [1] : vector<8x8xf32> to vector<8xf32>
    %379 = vector.shape_cast %378 : vector<8xf32> to vector<8x1xf32>
    %380 = tpu.reciprocal %379 {approx = true} : vector<8x1xf32> -> vector<8x1xf32>
    %381 = vector.broadcast %380 : vector<8x1xf32> to vector<8x8xf32>
    %382 = arith.mulf %377, %381 : vector<8x8xf32>
    %383 = arith.truncf %382 : vector<8x8xf32> to vector<8x8xbf16>
    %384 = vector.extract_strided_slice %317 {offsets = [0, 24], sizes = [8, 8], strides = [1, 1]} : vector<8x32xbf16> to vector<8x8xbf16>
    %cst_147 = arith.constant dense<0.000000e+00> : vector<8x8xf32>
    %385 = tpu.matmul %383, %384, %cst_147 {dimension_numbers = #tpu.dot_dimension_numbers<[1], [0], [0], [1], [0, 0, 1, 1], [], []>} : vector<8x8xbf16>, vector<8x8xbf16>, vector<8x8xf32> -> vector<8x8xf32>
    %386 = tpu.concatenate %334, %351, %368, %385 in 1 : vector<8x8xf32>, vector<8x8xf32>, vector<8x8xf32>, vector<8x8xf32> -> vector<8x32xf32>
    %387 = arith.truncf %386 : vector<8x32xf32> to vector<8x32xbf16>
    %cst_148 = arith.constant dense<0.000000e+00> : vector<8x32xf32>
    %388 = tpu.matmul %387, %304, %cst_148 {dimension_numbers = #tpu.dot_dimension_numbers<[1], [0], [0], [1], [0, 0, 1, 1], [], []>} : vector<8x32xbf16>, vector<32x32xbf16>, vector<8x32xf32> -> vector<8x32xf32>
    %389 = vector.broadcast %306 : vector<1x32xf32> to vector<8x32xf32>
    %390 = arith.addf %388, %389 : vector<8x32xf32>
    %391 = arith.addf %297, %390 : vector<8x32xf32>
    %c1_149 = arith.constant 1 : index
    %c0_150 = arith.constant 0 : index
    %c0_151 = arith.constant 0 : index
    %392 = vector.load %arg17[%c1_149, %c0_150, %c0_151] : memref<2x1x32xf32, #tpu.memory_space<vmem>>, vector<1x1x32xf32>
    %393 = vector.shape_cast %392 : vector<1x1x32xf32> to vector<1x32xf32>
    %c1_152 = arith.constant 1 : index
    %c0_153 = arith.constant 0 : index
    %c0_154 = arith.constant 0 : index
    %394 = vector.load %arg18[%c1_152, %c0_153, %c0_154] : memref<2x1x32xf32, #tpu.memory_space<vmem>>, vector<1x1x32xf32>
    %395 = vector.shape_cast %394 : vector<1x1x32xf32> to vector<1x32xf32>
    %cst_155 = arith.constant dense<0.000000e+00> : vector<8xf32>
    %396 = vector.multi_reduction <add>, %391, %cst_155 [1] : vector<8x32xf32> to vector<8xf32>
    %397 = vector.shape_cast %396 : vector<8xf32> to vector<8x1xf32>
    %cst_156 = arith.constant 3.200000e+01 : f32
    %398 = vector.broadcast %cst_156 : f32 to vector<8x1xf32>
    %399 = arith.divf %397, %398 : vector<8x1xf32>
    %400 = vector.broadcast %399 : vector<8x1xf32> to vector<8x32xf32>
    %401 = arith.subf %391, %400 : vector<8x32xf32>
    %402 = arith.mulf %401, %401 : vector<8x32xf32>
    %cst_157 = arith.constant dense<0.000000e+00> : vector<8xf32>
    %403 = vector.multi_reduction <add>, %402, %cst_157 [1] : vector<8x32xf32> to vector<8xf32>
    %404 = vector.shape_cast %403 : vector<8xf32> to vector<8x1xf32>
    %cst_158 = arith.constant 3.200000e+01 : f32
    %405 = vector.broadcast %cst_158 : f32 to vector<8x1xf32>
    %406 = arith.divf %404, %405 : vector<8x1xf32>
    %407 = vector.broadcast %399 : vector<8x1xf32> to vector<8x32xf32>
    %408 = arith.subf %391, %407 : vector<8x32xf32>
    %cst_159 = arith.constant 9.99999974E-6 : f32
    %409 = vector.broadcast %cst_159 : f32 to vector<8x1xf32>
    %410 = arith.addf %406, %409 : vector<8x1xf32>
    %411 = math.rsqrt %410 : vector<8x1xf32>
    %412 = vector.broadcast %411 : vector<8x1xf32> to vector<8x32xf32>
    %413 = arith.mulf %408, %412 : vector<8x32xf32>
    %414 = vector.broadcast %393 : vector<1x32xf32> to vector<8x32xf32>
    %415 = arith.mulf %413, %414 : vector<8x32xf32>
    %416 = vector.broadcast %395 : vector<1x32xf32> to vector<8x32xf32>
    %417 = arith.addf %415, %416 : vector<8x32xf32>
    %418 = arith.truncf %417 : vector<8x32xf32> to vector<8x32xbf16>
    %c1_160 = arith.constant 1 : index
    %c0_161 = arith.constant 0 : index
    %c0_162 = arith.constant 0 : index
    %419 = vector.load %arg9[%c1_160, %c0_161, %c0_162] : memref<2x32x96xbf16, #tpu.memory_space<vmem>>, vector<1x32x96xbf16>
    %420 = vector.shape_cast %419 : vector<1x32x96xbf16> to vector<32x96xbf16>
    %c1_163 = arith.constant 1 : index
    %c0_164 = arith.constant 0 : index
    %c0_165 = arith.constant 0 : index
    %421 = vector.load %arg10[%c1_163, %c0_164, %c0_165] : memref<2x1x96xf32, #tpu.memory_space<vmem>>, vector<1x1x96xf32>
    %422 = vector.shape_cast %421 : vector<1x1x96xf32> to vector<1x96xf32>
    %c1_166 = arith.constant 1 : index
    %c0_167 = arith.constant 0 : index
    %c0_168 = arith.constant 0 : index
    %423 = vector.load %arg11[%c1_166, %c0_167, %c0_168] : memref<2x32x32xbf16, #tpu.memory_space<vmem>>, vector<1x32x32xbf16>
    %424 = vector.shape_cast %423 : vector<1x32x32xbf16> to vector<32x32xbf16>
    %c1_169 = arith.constant 1 : index
    %c0_170 = arith.constant 0 : index
    %c0_171 = arith.constant 0 : index
    %425 = vector.load %arg12[%c1_169, %c0_170, %c0_171] : memref<2x1x32xf32, #tpu.memory_space<vmem>>, vector<1x1x32xf32>
    %426 = vector.shape_cast %425 : vector<1x1x32xf32> to vector<1x32xf32>
    %427 = vector.extract_strided_slice %420 {offsets = [0, 0], sizes = [32, 32], strides = [1, 1]} : vector<32x96xbf16> to vector<32x32xbf16>
    %cst_172 = arith.constant dense<0.000000e+00> : vector<8x32xf32>
    %428 = tpu.matmul %418, %427, %cst_172 {dimension_numbers = #tpu.dot_dimension_numbers<[1], [0], [0], [1], [0, 0, 1, 1], [], []>} : vector<8x32xbf16>, vector<32x32xbf16>, vector<8x32xf32> -> vector<8x32xf32>
    %429 = vector.extract_strided_slice %422 {offsets = [0, 0], sizes = [1, 32], strides = [1, 1]} : vector<1x96xf32> to vector<1x32xf32>
    %430 = vector.broadcast %429 : vector<1x32xf32> to vector<8x32xf32>
    %431 = arith.addf %428, %430 : vector<8x32xf32>
    %432 = vector.extract_strided_slice %420 {offsets = [0, 32], sizes = [32, 64], strides = [1, 1]} : vector<32x96xbf16> to vector<32x64xbf16>
    %cst_173 = arith.constant dense<0.000000e+00> : vector<8x64xf32>
    %433 = tpu.matmul %4, %432, %cst_173 {dimension_numbers = #tpu.dot_dimension_numbers<[1], [0], [0], [1], [0, 0, 1, 1], [], []>} : vector<8x32xbf16>, vector<32x64xbf16>, vector<8x64xf32> -> vector<8x64xf32>
    %434 = vector.extract_strided_slice %422 {offsets = [0, 32], sizes = [1, 64], strides = [1, 1]} : vector<1x96xf32> to vector<1x64xf32>
    %435 = vector.broadcast %434 : vector<1x64xf32> to vector<8x64xf32>
    %436 = arith.addf %433, %435 : vector<8x64xf32>
    %437 = vector.extract_strided_slice %436 {offsets = [0, 0], sizes = [8, 32], strides = [1, 1]} : vector<8x64xf32> to vector<8x32xf32>
    %438 = vector.extract_strided_slice %436 {offsets = [0, 32], sizes = [8, 32], strides = [1, 1]} : vector<8x64xf32> to vector<8x32xf32>
    %cst_174 = arith.constant 0.353553385 : f32
    %439 = vector.broadcast %cst_174 : f32 to vector<8x32xf32>
    %440 = arith.mulf %431, %439 : vector<8x32xf32>
    %441 = arith.truncf %440 : vector<8x32xf32> to vector<8x32xbf16>
    %442 = arith.truncf %437 : vector<8x32xf32> to vector<8x32xbf16>
    %443 = arith.truncf %438 : vector<8x32xf32> to vector<8x32xbf16>
    %444 = vector.extract_strided_slice %441 {offsets = [0, 0], sizes = [8, 8], strides = [1, 1]} : vector<8x32xbf16> to vector<8x8xbf16>
    %445 = vector.extract_strided_slice %442 {offsets = [0, 0], sizes = [8, 8], strides = [1, 1]} : vector<8x32xbf16> to vector<8x8xbf16>
    %cst_175 = arith.constant dense<0.000000e+00> : vector<8x8xf32>
    %446 = tpu.matmul %444, %445, %cst_175 {dimension_numbers = #tpu.dot_dimension_numbers<[1], [1], [0], [0], [0, 0, 1, 0], [], []>} : vector<8x8xbf16>, vector<8x8xbf16>, vector<8x8xf32> -> vector<8x8xf32>
    %447 = arith.addf %446, %6 : vector<8x8xf32>
    %cst_176 = arith.constant dense<0xFF800000> : vector<8xf32>
    %448 = vector.multi_reduction <maximumf>, %447, %cst_176 [1] : vector<8x8xf32> to vector<8xf32>
    %449 = vector.shape_cast %448 : vector<8xf32> to vector<8x1xf32>
    %450 = vector.broadcast %449 : vector<8x1xf32> to vector<8x8xf32>
    %451 = arith.subf %447, %450 : vector<8x8xf32>
    %452 = math.exp %451 : vector<8x8xf32>
    %cst_177 = arith.constant dense<0.000000e+00> : vector<8xf32>
    %453 = vector.multi_reduction <add>, %452, %cst_177 [1] : vector<8x8xf32> to vector<8xf32>
    %454 = vector.shape_cast %453 : vector<8xf32> to vector<8x1xf32>
    %455 = tpu.reciprocal %454 {approx = true} : vector<8x1xf32> -> vector<8x1xf32>
    %456 = vector.broadcast %455 : vector<8x1xf32> to vector<8x8xf32>
    %457 = arith.mulf %452, %456 : vector<8x8xf32>
    %458 = arith.truncf %457 : vector<8x8xf32> to vector<8x8xbf16>
    %459 = vector.extract_strided_slice %443 {offsets = [0, 0], sizes = [8, 8], strides = [1, 1]} : vector<8x32xbf16> to vector<8x8xbf16>
    %cst_178 = arith.constant dense<0.000000e+00> : vector<8x8xf32>
    %460 = tpu.matmul %458, %459, %cst_178 {dimension_numbers = #tpu.dot_dimension_numbers<[1], [0], [0], [1], [0, 0, 1, 1], [], []>} : vector<8x8xbf16>, vector<8x8xbf16>, vector<8x8xf32> -> vector<8x8xf32>
    %461 = vector.extract_strided_slice %441 {offsets = [0, 8], sizes = [8, 8], strides = [1, 1]} : vector<8x32xbf16> to vector<8x8xbf16>
    %462 = vector.extract_strided_slice %442 {offsets = [0, 8], sizes = [8, 8], strides = [1, 1]} : vector<8x32xbf16> to vector<8x8xbf16>
    %cst_179 = arith.constant dense<0.000000e+00> : vector<8x8xf32>
    %463 = tpu.matmul %461, %462, %cst_179 {dimension_numbers = #tpu.dot_dimension_numbers<[1], [1], [0], [0], [0, 0, 1, 0], [], []>} : vector<8x8xbf16>, vector<8x8xbf16>, vector<8x8xf32> -> vector<8x8xf32>
    %464 = arith.addf %463, %6 : vector<8x8xf32>
    %cst_180 = arith.constant dense<0xFF800000> : vector<8xf32>
    %465 = vector.multi_reduction <maximumf>, %464, %cst_180 [1] : vector<8x8xf32> to vector<8xf32>
    %466 = vector.shape_cast %465 : vector<8xf32> to vector<8x1xf32>
    %467 = vector.broadcast %466 : vector<8x1xf32> to vector<8x8xf32>
    %468 = arith.subf %464, %467 : vector<8x8xf32>
    %469 = math.exp %468 : vector<8x8xf32>
    %cst_181 = arith.constant dense<0.000000e+00> : vector<8xf32>
    %470 = vector.multi_reduction <add>, %469, %cst_181 [1] : vector<8x8xf32> to vector<8xf32>
    %471 = vector.shape_cast %470 : vector<8xf32> to vector<8x1xf32>
    %472 = tpu.reciprocal %471 {approx = true} : vector<8x1xf32> -> vector<8x1xf32>
    %473 = vector.broadcast %472 : vector<8x1xf32> to vector<8x8xf32>
    %474 = arith.mulf %469, %473 : vector<8x8xf32>
    %475 = arith.truncf %474 : vector<8x8xf32> to vector<8x8xbf16>
    %476 = vector.extract_strided_slice %443 {offsets = [0, 8], sizes = [8, 8], strides = [1, 1]} : vector<8x32xbf16> to vector<8x8xbf16>
    %cst_182 = arith.constant dense<0.000000e+00> : vector<8x8xf32>
    %477 = tpu.matmul %475, %476, %cst_182 {dimension_numbers = #tpu.dot_dimension_numbers<[1], [0], [0], [1], [0, 0, 1, 1], [], []>} : vector<8x8xbf16>, vector<8x8xbf16>, vector<8x8xf32> -> vector<8x8xf32>
    %478 = vector.extract_strided_slice %441 {offsets = [0, 16], sizes = [8, 8], strides = [1, 1]} : vector<8x32xbf16> to vector<8x8xbf16>
    %479 = vector.extract_strided_slice %442 {offsets = [0, 16], sizes = [8, 8], strides = [1, 1]} : vector<8x32xbf16> to vector<8x8xbf16>
    %cst_183 = arith.constant dense<0.000000e+00> : vector<8x8xf32>
    %480 = tpu.matmul %478, %479, %cst_183 {dimension_numbers = #tpu.dot_dimension_numbers<[1], [1], [0], [0], [0, 0, 1, 0], [], []>} : vector<8x8xbf16>, vector<8x8xbf16>, vector<8x8xf32> -> vector<8x8xf32>
    %481 = arith.addf %480, %6 : vector<8x8xf32>
    %cst_184 = arith.constant dense<0xFF800000> : vector<8xf32>
    %482 = vector.multi_reduction <maximumf>, %481, %cst_184 [1] : vector<8x8xf32> to vector<8xf32>
    %483 = vector.shape_cast %482 : vector<8xf32> to vector<8x1xf32>
    %484 = vector.broadcast %483 : vector<8x1xf32> to vector<8x8xf32>
    %485 = arith.subf %481, %484 : vector<8x8xf32>
    %486 = math.exp %485 : vector<8x8xf32>
    %cst_185 = arith.constant dense<0.000000e+00> : vector<8xf32>
    %487 = vector.multi_reduction <add>, %486, %cst_185 [1] : vector<8x8xf32> to vector<8xf32>
    %488 = vector.shape_cast %487 : vector<8xf32> to vector<8x1xf32>
    %489 = tpu.reciprocal %488 {approx = true} : vector<8x1xf32> -> vector<8x1xf32>
    %490 = vector.broadcast %489 : vector<8x1xf32> to vector<8x8xf32>
    %491 = arith.mulf %486, %490 : vector<8x8xf32>
    %492 = arith.truncf %491 : vector<8x8xf32> to vector<8x8xbf16>
    %493 = vector.extract_strided_slice %443 {offsets = [0, 16], sizes = [8, 8], strides = [1, 1]} : vector<8x32xbf16> to vector<8x8xbf16>
    %cst_186 = arith.constant dense<0.000000e+00> : vector<8x8xf32>
    %494 = tpu.matmul %492, %493, %cst_186 {dimension_numbers = #tpu.dot_dimension_numbers<[1], [0], [0], [1], [0, 0, 1, 1], [], []>} : vector<8x8xbf16>, vector<8x8xbf16>, vector<8x8xf32> -> vector<8x8xf32>
    %495 = vector.extract_strided_slice %441 {offsets = [0, 24], sizes = [8, 8], strides = [1, 1]} : vector<8x32xbf16> to vector<8x8xbf16>
    %496 = vector.extract_strided_slice %442 {offsets = [0, 24], sizes = [8, 8], strides = [1, 1]} : vector<8x32xbf16> to vector<8x8xbf16>
    %cst_187 = arith.constant dense<0.000000e+00> : vector<8x8xf32>
    %497 = tpu.matmul %495, %496, %cst_187 {dimension_numbers = #tpu.dot_dimension_numbers<[1], [1], [0], [0], [0, 0, 1, 0], [], []>} : vector<8x8xbf16>, vector<8x8xbf16>, vector<8x8xf32> -> vector<8x8xf32>
    %498 = arith.addf %497, %6 : vector<8x8xf32>
    %cst_188 = arith.constant dense<0xFF800000> : vector<8xf32>
    %499 = vector.multi_reduction <maximumf>, %498, %cst_188 [1] : vector<8x8xf32> to vector<8xf32>
    %500 = vector.shape_cast %499 : vector<8xf32> to vector<8x1xf32>
    %501 = vector.broadcast %500 : vector<8x1xf32> to vector<8x8xf32>
    %502 = arith.subf %498, %501 : vector<8x8xf32>
    %503 = math.exp %502 : vector<8x8xf32>
    %cst_189 = arith.constant dense<0.000000e+00> : vector<8xf32>
    %504 = vector.multi_reduction <add>, %503, %cst_189 [1] : vector<8x8xf32> to vector<8xf32>
    %505 = vector.shape_cast %504 : vector<8xf32> to vector<8x1xf32>
    %506 = tpu.reciprocal %505 {approx = true} : vector<8x1xf32> -> vector<8x1xf32>
    %507 = vector.broadcast %506 : vector<8x1xf32> to vector<8x8xf32>
    %508 = arith.mulf %503, %507 : vector<8x8xf32>
    %509 = arith.truncf %508 : vector<8x8xf32> to vector<8x8xbf16>
    %510 = vector.extract_strided_slice %443 {offsets = [0, 24], sizes = [8, 8], strides = [1, 1]} : vector<8x32xbf16> to vector<8x8xbf16>
    %cst_190 = arith.constant dense<0.000000e+00> : vector<8x8xf32>
    %511 = tpu.matmul %509, %510, %cst_190 {dimension_numbers = #tpu.dot_dimension_numbers<[1], [0], [0], [1], [0, 0, 1, 1], [], []>} : vector<8x8xbf16>, vector<8x8xbf16>, vector<8x8xf32> -> vector<8x8xf32>
    %512 = tpu.concatenate %460, %477, %494, %511 in 1 : vector<8x8xf32>, vector<8x8xf32>, vector<8x8xf32>, vector<8x8xf32> -> vector<8x32xf32>
    %513 = arith.truncf %512 : vector<8x32xf32> to vector<8x32xbf16>
    %cst_191 = arith.constant dense<0.000000e+00> : vector<8x32xf32>
    %514 = tpu.matmul %513, %424, %cst_191 {dimension_numbers = #tpu.dot_dimension_numbers<[1], [0], [0], [1], [0, 0, 1, 1], [], []>} : vector<8x32xbf16>, vector<32x32xbf16>, vector<8x32xf32> -> vector<8x32xf32>
    %515 = vector.broadcast %426 : vector<1x32xf32> to vector<8x32xf32>
    %516 = arith.addf %514, %515 : vector<8x32xf32>
    %517 = arith.addf %417, %516 : vector<8x32xf32>
    %c1_192 = arith.constant 1 : index
    %c0_193 = arith.constant 0 : index
    %c0_194 = arith.constant 0 : index
    %518 = vector.load %arg19[%c1_192, %c0_193, %c0_194] : memref<2x1x32xf32, #tpu.memory_space<vmem>>, vector<1x1x32xf32>
    %519 = vector.shape_cast %518 : vector<1x1x32xf32> to vector<1x32xf32>
    %c1_195 = arith.constant 1 : index
    %c0_196 = arith.constant 0 : index
    %c0_197 = arith.constant 0 : index
    %520 = vector.load %arg20[%c1_195, %c0_196, %c0_197] : memref<2x1x32xf32, #tpu.memory_space<vmem>>, vector<1x1x32xf32>
    %521 = vector.shape_cast %520 : vector<1x1x32xf32> to vector<1x32xf32>
    %cst_198 = arith.constant dense<0.000000e+00> : vector<8xf32>
    %522 = vector.multi_reduction <add>, %517, %cst_198 [1] : vector<8x32xf32> to vector<8xf32>
    %523 = vector.shape_cast %522 : vector<8xf32> to vector<8x1xf32>
    %cst_199 = arith.constant 3.200000e+01 : f32
    %524 = vector.broadcast %cst_199 : f32 to vector<8x1xf32>
    %525 = arith.divf %523, %524 : vector<8x1xf32>
    %526 = vector.broadcast %525 : vector<8x1xf32> to vector<8x32xf32>
    %527 = arith.subf %517, %526 : vector<8x32xf32>
    %528 = arith.mulf %527, %527 : vector<8x32xf32>
    %cst_200 = arith.constant dense<0.000000e+00> : vector<8xf32>
    %529 = vector.multi_reduction <add>, %528, %cst_200 [1] : vector<8x32xf32> to vector<8xf32>
    %530 = vector.shape_cast %529 : vector<8xf32> to vector<8x1xf32>
    %cst_201 = arith.constant 3.200000e+01 : f32
    %531 = vector.broadcast %cst_201 : f32 to vector<8x1xf32>
    %532 = arith.divf %530, %531 : vector<8x1xf32>
    %533 = vector.broadcast %525 : vector<8x1xf32> to vector<8x32xf32>
    %534 = arith.subf %517, %533 : vector<8x32xf32>
    %cst_202 = arith.constant 9.99999974E-6 : f32
    %535 = vector.broadcast %cst_202 : f32 to vector<8x1xf32>
    %536 = arith.addf %532, %535 : vector<8x1xf32>
    %537 = math.rsqrt %536 : vector<8x1xf32>
    %538 = vector.broadcast %537 : vector<8x1xf32> to vector<8x32xf32>
    %539 = arith.mulf %534, %538 : vector<8x32xf32>
    %540 = vector.broadcast %519 : vector<1x32xf32> to vector<8x32xf32>
    %541 = arith.mulf %539, %540 : vector<8x32xf32>
    %542 = vector.broadcast %521 : vector<1x32xf32> to vector<8x32xf32>
    %543 = arith.addf %541, %542 : vector<8x32xf32>
    %544 = arith.truncf %543 : vector<8x32xf32> to vector<8x32xbf16>
    %c1_203 = arith.constant 1 : index
    %c0_204 = arith.constant 0 : index
    %c0_205 = arith.constant 0 : index
    %545 = vector.load %arg13[%c1_203, %c0_204, %c0_205] : memref<2x32x64xbf16, #tpu.memory_space<vmem>>, vector<1x32x64xbf16>
    %546 = vector.shape_cast %545 : vector<1x32x64xbf16> to vector<32x64xbf16>
    %cst_206 = arith.constant dense<0.000000e+00> : vector<8x64xf32>
    %547 = tpu.matmul %544, %546, %cst_206 {dimension_numbers = #tpu.dot_dimension_numbers<[1], [0], [0], [1], [0, 0, 1, 1], [], []>} : vector<8x32xbf16>, vector<32x64xbf16>, vector<8x64xf32> -> vector<8x64xf32>
    %c1_207 = arith.constant 1 : index
    %c0_208 = arith.constant 0 : index
    %c0_209 = arith.constant 0 : index
    %548 = vector.load %arg14[%c1_207, %c0_208, %c0_209] : memref<2x1x64xf32, #tpu.memory_space<vmem>>, vector<1x1x64xf32>
    %549 = vector.shape_cast %548 : vector<1x1x64xf32> to vector<1x64xf32>
    %550 = vector.broadcast %549 : vector<1x64xf32> to vector<8x64xf32>
    %551 = arith.addf %547, %550 : vector<8x64xf32>
    %cst_210 = arith.constant 0.000000e+00 : f32
    %552 = vector.broadcast %cst_210 : f32 to vector<8x64xf32>
    %553 = arith.maximumf %551, %552 : vector<8x64xf32>
    %554 = arith.truncf %553 : vector<8x64xf32> to vector<8x64xbf16>
    %c1_211 = arith.constant 1 : index
    %c0_212 = arith.constant 0 : index
    %c0_213 = arith.constant 0 : index
    %555 = vector.load %arg15[%c1_211, %c0_212, %c0_213] : memref<2x64x32xbf16, #tpu.memory_space<vmem>>, vector<1x64x32xbf16>
    %556 = vector.shape_cast %555 : vector<1x64x32xbf16> to vector<64x32xbf16>
    %cst_214 = arith.constant dense<0.000000e+00> : vector<8x32xf32>
    %557 = tpu.matmul %554, %556, %cst_214 {dimension_numbers = #tpu.dot_dimension_numbers<[1], [0], [0], [1], [0, 0, 1, 1], [], []>} : vector<8x64xbf16>, vector<64x32xbf16>, vector<8x32xf32> -> vector<8x32xf32>
    %c1_215 = arith.constant 1 : index
    %c0_216 = arith.constant 0 : index
    %c0_217 = arith.constant 0 : index
    %558 = vector.load %arg16[%c1_215, %c0_216, %c0_217] : memref<2x1x32xf32, #tpu.memory_space<vmem>>, vector<1x1x32xf32>
    %559 = vector.shape_cast %558 : vector<1x1x32xf32> to vector<1x32xf32>
    %560 = vector.broadcast %559 : vector<1x32xf32> to vector<8x32xf32>
    %561 = arith.addf %557, %560 : vector<8x32xf32>
    %562 = arith.addf %543, %561 : vector<8x32xf32>
    %c1_218 = arith.constant 1 : index
    %c0_219 = arith.constant 0 : index
    %c0_220 = arith.constant 0 : index
    %563 = vector.load %arg21[%c1_218, %c0_219, %c0_220] : memref<2x1x32xf32, #tpu.memory_space<vmem>>, vector<1x1x32xf32>
    %564 = vector.shape_cast %563 : vector<1x1x32xf32> to vector<1x32xf32>
    %c1_221 = arith.constant 1 : index
    %c0_222 = arith.constant 0 : index
    %c0_223 = arith.constant 0 : index
    %565 = vector.load %arg22[%c1_221, %c0_222, %c0_223] : memref<2x1x32xf32, #tpu.memory_space<vmem>>, vector<1x1x32xf32>
    %566 = vector.shape_cast %565 : vector<1x1x32xf32> to vector<1x32xf32>
    %cst_224 = arith.constant dense<0.000000e+00> : vector<8xf32>
    %567 = vector.multi_reduction <add>, %562, %cst_224 [1] : vector<8x32xf32> to vector<8xf32>
    %568 = vector.shape_cast %567 : vector<8xf32> to vector<8x1xf32>
    %cst_225 = arith.constant 3.200000e+01 : f32
    %569 = vector.broadcast %cst_225 : f32 to vector<8x1xf32>
    %570 = arith.divf %568, %569 : vector<8x1xf32>
    %571 = vector.broadcast %570 : vector<8x1xf32> to vector<8x32xf32>
    %572 = arith.subf %562, %571 : vector<8x32xf32>
    %573 = arith.mulf %572, %572 : vector<8x32xf32>
    %cst_226 = arith.constant dense<0.000000e+00> : vector<8xf32>
    %574 = vector.multi_reduction <add>, %573, %cst_226 [1] : vector<8x32xf32> to vector<8xf32>
    %575 = vector.shape_cast %574 : vector<8xf32> to vector<8x1xf32>
    %cst_227 = arith.constant 3.200000e+01 : f32
    %576 = vector.broadcast %cst_227 : f32 to vector<8x1xf32>
    %577 = arith.divf %575, %576 : vector<8x1xf32>
    %578 = vector.broadcast %570 : vector<8x1xf32> to vector<8x32xf32>
    %579 = arith.subf %562, %578 : vector<8x32xf32>
    %cst_228 = arith.constant 9.99999974E-6 : f32
    %580 = vector.broadcast %cst_228 : f32 to vector<8x1xf32>
    %581 = arith.addf %577, %580 : vector<8x1xf32>
    %582 = math.rsqrt %581 : vector<8x1xf32>
    %583 = vector.broadcast %582 : vector<8x1xf32> to vector<8x32xf32>
    %584 = arith.mulf %579, %583 : vector<8x32xf32>
    %585 = vector.broadcast %564 : vector<1x32xf32> to vector<8x32xf32>
    %586 = arith.mulf %584, %585 : vector<8x32xf32>
    %587 = vector.broadcast %566 : vector<1x32xf32> to vector<8x32xf32>
    %588 = arith.addf %586, %587 : vector<8x32xf32>
    %c0_229 = arith.constant 0 : index
    %c0_230 = arith.constant 0 : index
    %c0_231 = arith.constant 0 : index
    %589 = vector.load %arg23[%c0_229, %c0_230, %c0_231] : memref<1x8x32xf32, #tpu.memory_space<vmem>>, vector<1x8x32xf32>
    %590 = vector.shape_cast %589 : vector<1x8x32xf32> to vector<8x32xf32>
    %591 = vector.shape_cast %588 : vector<8x32xf32> to vector<1x8x32xf32>
    tpu.vector_store %arg23[%c0_229, %c0_230, %c0_231], %591 {strides = array<i32>} : memref<1x8x32xf32, #tpu.memory_space<vmem>>, vector<1x8x32xf32>,
    return
  }
  func.func @transform_0(%arg0: i32) -> (i32, i32, i32) {
    %c0_i32 = arith.constant 0 : i32
    %c0_i32_0 = arith.constant 0 : i32
    %c0_i32_1 = arith.constant 0 : i32
    return %arg0, %c0_i32, %c0_i32_0 : i32, i32, i32
  }
  func.func @transform_1(%arg0: i32) -> (i32, i32, i32) {
    %c0_i32 = arith.constant 0 : i32
    %c0_i32_0 = arith.constant 0 : i32
    %c0_i32_1 = arith.constant 0 : i32
    return %arg0, %c0_i32, %c0_i32_0 : i32, i32, i32
  }
  func.func @transform_2(%arg0: i32) -> (i32, i32) {
    %c0_i32 = arith.constant 0 : i32
    %c0_i32_0 = arith.constant 0 : i32
    %c0_i32_1 = arith.constant 0 : i32
    return %c0_i32, %c0_i32_0 : i32, i32
  }
  func.func @transform_3(%arg0: i32) -> (i32, i32) {
    %c0_i32 = arith.constant 0 : i32
    %c0_i32_0 = arith.constant 0 : i32
    %c0_i32_1 = arith.constant 0 : i32
    return %c0_i32, %c0_i32_0 : i32, i32
  }
  func.func @transform_4(%arg0: i32) -> (i32, i32, i32) {
    %c0_i32 = arith.constant 0 : i32
    %c0_i32_0 = arith.constant 0 : i32
    %c0_i32_1 = arith.constant 0 : i32
    %c0_i32_2 = arith.constant 0 : i32
    return %c0_i32, %c0_i32_0, %c0_i32_1 : i32, i32, i32
  }
  func.func @transform_5(%arg0: i32) -> (i32, i32, i32) {
    %c0_i32 = arith.constant 0 : i32
    %c0_i32_0 = arith.constant 0 : i32
    %c0_i32_1 = arith.constant 0 : i32
    %c0_i32_2 = arith.constant 0 : i32
    return %c0_i32, %c0_i32_0, %c0_i32_1 : i32, i32, i32
  }
  func.func @transform_6(%arg0: i32) -> (i32, i32, i32) {
    %c0_i32 = arith.constant 0 : i32
    %c0_i32_0 = arith.constant 0 : i32
    %c0_i32_1 = arith.constant 0 : i32
    %c0_i32_2 = arith.constant 0 : i32
    return %c0_i32, %c0_i32_0, %c0_i32_1 : i32, i32, i32
  }
  func.func @transform_7(%arg0: i32) -> (i32, i32, i32) {
    %c0_i32 = arith.constant 0 : i32
    %c0_i32_0 = arith.constant 0 : i32
    %c0_i32_1 = arith.constant 0 : i32
    %c0_i32_2 = arith.constant 0 : i32
    return %c0_i32, %c0_i32_0, %c0_i32_1 : i32, i32, i32
  }
  func.func @transform_8(%arg0: i32) -> (i32, i32, i32) {
    %c0_i32 = arith.constant 0 : i32
    %c0_i32_0 = arith.constant 0 : i32
    %c0_i32_1 = arith.constant 0 : i32
    %c0_i32_2 = arith.constant 0 : i32
    return %c0_i32, %c0_i32_0, %c0_i32_1 : i32, i32, i32
  }
  func.func @transform_9(%arg0: i32) -> (i32, i32, i32) {
    %c0_i32 = arith.constant 0 : i32
    %c0_i32_0 = arith.constant 0 : i32
    %c0_i32_1 = arith.constant 0 : i32
    %c0_i32_2 = arith.constant 0 : i32
    return %c0_i32, %c0_i32_0, %c0_i32_1 : i32, i32, i32
  }
  func.func @transform_10(%arg0: i32) -> (i32, i32, i32) {
    %c0_i32 = arith.constant 0 : i32
    %c0_i32_0 = arith.constant 0 : i32
    %c0_i32_1 = arith.constant 0 : i32
    %c0_i32_2 = arith.constant 0 : i32
    return %c0_i32, %c0_i32_0, %c0_i32_1 : i32, i32, i32
  }
  func.func @transform_11(%arg0: i32) -> (i32, i32, i32) {
    %c0_i32 = arith.constant 0 : i32
    %c0_i32_0 = arith.constant 0 : i32
    %c0_i32_1 = arith.constant 0 : i32
    %c0_i32_2 = arith.constant 0 : i32
    return %c0_i32, %c0_i32_0, %c0_i32_1 : i32, i32, i32
  }
  func.func @transform_12(%arg0: i32) -> (i32, i32, i32) {
    %c0_i32 = arith.constant 0 : i32
    %c0_i32_0 = arith.constant 0 : i32
    %c0_i32_1 = arith.constant 0 : i32
    %c0_i32_2 = arith.constant 0 : i32
    return %c0_i32, %c0_i32_0, %c0_i32_1 : i32, i32, i32
  }
  func.func @transform_13(%arg0: i32) -> (i32, i32, i32) {
    %c0_i32 = arith.constant 0 : i32
    %c0_i32_0 = arith.constant 0 : i32
    %c0_i32_1 = arith.constant 0 : i32
    %c0_i32_2 = arith.constant 0 : i32
    return %c0_i32, %c0_i32_0, %c0_i32_1 : i32, i32, i32
  }
  func.func @transform_14(%arg0: i32) -> (i32, i32, i32) {
    %c0_i32 = arith.constant 0 : i32
    %c0_i32_0 = arith.constant 0 : i32
    %c0_i32_1 = arith.constant 0 : i32
    %c0_i32_2 = arith.constant 0 : i32
    return %c0_i32, %c0_i32_0, %c0_i32_1 : i32, i32, i32
  }
  func.func @transform_15(%arg0: i32) -> (i32, i32, i32) {
    %c0_i32 = arith.constant 0 : i32
    %c0_i32_0 = arith.constant 0 : i32
    %c0_i32_1 = arith.constant 0 : i32
    %c0_i32_2 = arith.constant 0 : i32
    return %c0_i32, %c0_i32_0, %c0_i32_1 : i32, i32, i32
  }
  func.func @transform_16(%arg0: i32) -> (i32, i32, i32) {
    %c0_i32 = arith.constant 0 : i32
    %c0_i32_0 = arith.constant 0 : i32
    %c0_i32_1 = arith.constant 0 : i32
    %c0_i32_2 = arith.constant 0 : i32
    return %c0_i32, %c0_i32_0, %c0_i32_1 : i32, i32, i32
  }
  func.func @transform_17(%arg0: i32) -> (i32, i32, i32) {
    %c0_i32 = arith.constant 0 : i32
    %c0_i32_0 = arith.constant 0 : i32
    %c0_i32_1 = arith.constant 0 : i32
    %c0_i32_2 = arith.constant 0 : i32
    return %c0_i32, %c0_i32_0, %c0_i32_1 : i32, i32, i32
  }
  func.func @transform_18(%arg0: i32) -> (i32, i32, i32) {
    %c0_i32 = arith.constant 0 : i32
    %c0_i32_0 = arith.constant 0 : i32
    %c0_i32_1 = arith.constant 0 : i32
    %c0_i32_2 = arith.constant 0 : i32
    return %c0_i32, %c0_i32_0, %c0_i32_1 : i32, i32, i32
  }
  func.func @transform_19(%arg0: i32) -> (i32, i32, i32) {
    %c0_i32 = arith.constant 0 : i32
    %c0_i32_0 = arith.constant 0 : i32
    %c0_i32_1 = arith.constant 0 : i32
    %c0_i32_2 = arith.constant 0 : i32
    return %c0_i32, %c0_i32_0, %c0_i32_1 : i32, i32, i32
  }
  func.func @transform_20(%arg0: i32) -> (i32, i32, i32) {
    %c0_i32 = arith.constant 0 : i32
    %c0_i32_0 = arith.constant 0 : i32
    %c0_i32_1 = arith.constant 0 : i32
    %c0_i32_2 = arith.constant 0 : i32
    return %c0_i32, %c0_i32_0, %c0_i32_1 : i32, i32, i32
  }
  func.func @transform_21(%arg0: i32) -> (i32, i32, i32) {
    %c0_i32 = arith.constant 0 : i32
    %c0_i32_0 = arith.constant 0 : i32
    %c0_i32_1 = arith.constant 0 : i32
    %c0_i32_2 = arith.constant 0 : i32
    return %c0_i32, %c0_i32_0, %c0_i32_1 : i32, i32, i32
  }
  func.func @transform_22(%arg0: i32) -> (i32, i32, i32) {
    %c0_i32 = arith.constant 0 : i32
    %c0_i32_0 = arith.constant 0 : i32
    %c0_i32_1 = arith.constant 0 : i32
    return %arg0, %c0_i32, %c0_i32_0 : i32, i32, i32
  }
}

</mosaic_0001>

<llo_original>
// kernel: transformer_decoder.1
$region0: #{transformer_decoder.1}
  #allocation0 [shape = 'u32[]', space=smem, size = 0x4, offset = 0x4, fixed_abs, tag = 'smem constant byte address 0x4 - core index']
  #allocation1 [shape = 'u32[72,128]{1,0:T(1,128)}', space=vmem, size = 0x9000, scoped, tag = 'internal scratch']
  %s0 = inlined_call_operand.vmem [shape: f32[2,8,32], index: 0, kind: input, shape index: {}]
  %s1 = inlined_call_operand.vmem [shape: f32[2,8,32], index: 1, kind: input, shape index: {}]
  %s2 = inlined_call_operand.vmem [shape: f32[8,8], index: 2, kind: input, shape index: {}]
  %s3 = inlined_call_operand.vmem [shape: f32[8,8], index: 3, kind: input, shape index: {}]
  %s4 = inlined_call_operand.vmem [shape: bf16[2,32,96], index: 4, kind: input, shape index: {}]
  %s5 = inlined_call_operand.vmem [shape: f32[2,1,96], index: 5, kind: input, shape index: {}]
  %s6 = inlined_call_operand.vmem [shape: bf16[2,32,32], index: 6, kind: input, shape index: {}]
  %s7 = inlined_call_operand.vmem [shape: f32[2,1,32], index: 7, kind: input, shape index: {}]
  %s8 = inlined_call_operand.vmem [shape: bf16[2,32,96], index: 8, kind: input, shape index: {}]
  %s9 = inlined_call_operand.vmem [shape: f32[2,1,96], index: 9, kind: input, shape index: {}]
  %s10 = inlined_call_operand.vmem [shape: bf16[2,32,32], index: 10, kind: input, shape index: {}]
  %s11 = inlined_call_operand.vmem [shape: f32[2,1,32], index: 11, kind: input, shape index: {}]
  %s12 = inlined_call_operand.vmem [shape: bf16[2,32,64], index: 12, kind: input, shape index: {}]
  %s13 = inlined_call_operand.vmem [shape: f32[2,1,64], index: 13, kind: input, shape index: {}]
  %s14 = inlined_call_operand.vmem [shape: bf16[2,64,32], index: 14, kind: input, shape index: {}]
  %s15 = inlined_call_operand.vmem [shape: f32[2,1,32], index: 15, kind: input, shape index: {}]
  %s16 = inlined_call_operand.vmem [shape: f32[2,1,32], index: 16, kind: input, shape index: {}]
  %s17 = inlined_call_operand.vmem [shape: f32[2,1,32], index: 17, kind: input, shape index: {}]
  %s18 = inlined_call_operand.vmem [shape: f32[2,1,32], index: 18, kind: input, shape index: {}]
  %s19 = inlined_call_operand.vmem [shape: f32[2,1,32], index: 19, kind: input, shape index: {}]
  %s20 = inlined_call_operand.vmem [shape: f32[2,1,32], index: 20, kind: input, shape index: {}]
  %s21 = inlined_call_operand.vmem [shape: f32[2,1,32], index: 21, kind: input, shape index: {}]
  %s22 = inlined_call_operand.hbm [shape: f32[2,8,32], index: 22, kind: output, shape index: {}]
  %s23 = sld [smem:[#allocation0]]
  $region121: #{transformer_decoder.1} parent=0
    _
  %s25 = ssub.s32 1, %s23
  %s26 = scalar_select 0, %s25, %s23
  $region1: #{transformer_decoder.1} parent=0
    #allocation2 [shape = 'u8[8192]{0}', space=vmem, size = 0x2000, scoped, tag = 'output window, operand 0']
    #allocation3 [shape = 's32[2]{0}', space=sflag, size = 0x8, scoped, tag = 'scoped memory for transformer_decoder.1']
    %27 = vsyncpa [#allocation3], 0
    %s28 = scalar_lea.sflag [#allocation3], 1
    %29 = vsyncpa %s28, 0
    loop: start=0, step=1, limit=4
    $region2: #{transformer_decoder.1} parent=1 // loop_pre_header
      _
    $region3: #{transformer_decoder.1} parent=1 // loop_header
      %s31 = sphi 0, %s35
      %p32 = scmp.ge.s32.totalorder %s31, 4
      %s41 = sphi 0, %s43
      %s44 = sphi 0, %s41
      %s45 = sphi 0, %s44
      %s61 = sphi 0, %s45
      %s67 = sphi 0, %s69
      %s70 = sphi 0, %s67
      %s71 = sphi 0, %s70
      %s87 = sphi 0, %s71
      %s91 = sphi 0, %s91
      %s93 = sphi 0, %s91
      %s94 = sphi 0, %s93
      %s108 = sphi 0, %s94
      %s112 = sphi 0, %s112
      %s114 = sphi 0, %s112
      %s115 = sphi 0, %s114
      %s129 = sphi 0, %s115
      %s133 = sphi 0, %s133
      %s135 = sphi 0, %s133
      %s136 = sphi 0, %s135
      %s150 = sphi 0, %s136
      %s154 = sphi 0, %s154
      %s156 = sphi 0, %s154
      %s157 = sphi 0, %s156
      %s171 = sphi 0, %s157
      %s175 = sphi 0, %s175
      %s177 = sphi 0, %s175
      %s178 = sphi 0, %s177
      %s192 = sphi 0, %s178
      %s196 = sphi 0, %s196
      %s198 = sphi 0, %s196
      %s199 = sphi 0, %s198
      %s213 = sphi 0, %s199
      %s217 = sphi 0, %s217
      %s219 = sphi 0, %s217
      %s220 = sphi 0, %s219
      %s234 = sphi 0, %s220
      %s238 = sphi 0, %s238
      %s240 = sphi 0, %s238
      %s241 = sphi 0, %s240
      %s255 = sphi 0, %s241
      %s259 = sphi 0, %s259
      %s261 = sphi 0, %s259
      %s262 = sphi 0, %s261
      %s276 = sphi 0, %s262
      %s280 = sphi 0, %s280
      %s282 = sphi 0, %s280
      %s283 = sphi 0, %s282
      %s297 = sphi 0, %s283
      %s301 = sphi 0, %s301
      %s303 = sphi 0, %s301
      %s304 = sphi 0, %s303
      %s318 = sphi 0, %s304
      %s322 = sphi 0, %s322
      %s324 = sphi 0, %s322
      %s325 = sphi 0, %s324
      %s339 = sphi 0, %s325
      %s343 = sphi 0, %s343
      %s345 = sphi 0, %s343
      %s346 = sphi 0, %s345
      %s360 = sphi 0, %s346
      %s364 = sphi 0, %s364
      %s366 = sphi 0, %s364
      %s367 = sphi 0, %s366
      %s381 = sphi 0, %s367
      %s385 = sphi 0, %s385
      %s387 = sphi 0, %s385
      %s388 = sphi 0, %s387
      %s402 = sphi 0, %s388
      %s406 = sphi 0, %s406
      %s408 = sphi 0, %s406
      %s409 = sphi 0, %s408
      %s423 = sphi 0, %s409
      %s427 = sphi 0, %s427
      %s429 = sphi 0, %s427
      %s430 = sphi 0, %s429
      %s444 = sphi 0, %s430
      %s448 = sphi 0, %s448
      %s450 = sphi 0, %s448
      %s451 = sphi 0, %s450
      %s465 = sphi 0, %s451
      %s469 = sphi 0, %s469
      %s471 = sphi 0, %s469
      %s472 = sphi 0, %s471
      %s486 = sphi 0, %s472
      %s490 = sphi 0, %s490
      %s492 = sphi 0, %s490
      %s493 = sphi 0, %s492
      %s507 = sphi 0, %s493
      %s513 = sphi 0, %s515
      %s516 = sphi 0, %s513
      %s517 = sphi 0, %s516
      %s533 = sphi 0, %s517
    $region4: #{transformer_decoder.1} parent=1 // loop_header_branch
      %34 = sbr.rel (%p32) target = $region8
    $region5: #{transformer_decoder.1} parent=1 // loop_body
      %s36 = ssub.s32 %s31, 1
      %s37 = ssub.s32 %s31, 2
      %s38 = sadd.s32 %s31, 1
      %s39 = ssub.s32 %s31, %s38
      %p40 = scmp.eq.s32.totalorder %s39, 0
      %s42 = sadd.s32 %s41, 1
      %s43 = scalar_select %p40, %s41, %s42
      %p46 = pneg %p40
      %p47 = scmp.eq.s32.totalorder %s31, 1
      %p48 = por %p46, %p47
      %p49 = scmp.ne.s32.totalorder %s41, %s44
      %p50 = scmp.eq.s32.totalorder %s31, 0
      %p51 = por %p49, %p50
      %p52 = scmp.ne.s32.totalorder %s41, %s44
      %p53 = scmp.eq.s32.totalorder %s36, 1
      %p54 = por %p52, %p53
      %p55 = scmp.ne.s32.totalorder %s44, %s45
      %p56 = scmp.eq.s32.totalorder %s36, 0
      %p57 = por %p55, %p56
      %p58 = scmp.ne.s32.totalorder %s44, %s45
      %p59 = scmp.eq.s32.totalorder %s37, 1
      %p60 = por %p58, %p59
      %p62 = scmp.ne.s32.totalorder %s45, %s61
      %p63 = scmp.eq.s32.totalorder %s37, 0
      %p64 = por %p62, %p63
      %s65 = ssub.s32 %s31, %s38
      %p66 = scmp.eq.s32.totalorder %s65, 0
      %s68 = sadd.s32 %s67, 1
      %s69 = scalar_select %p66, %s67, %s68
      %p72 = pneg %p66
      %p73 = scmp.eq.s32.totalorder %s31, 1
      %p74 = por %p72, %p73
      %p75 = scmp.ne.s32.totalorder %s67, %s70
      %p76 = scmp.eq.s32.totalorder %s31, 0
      %p77 = por %p75, %p76
      %p78 = scmp.ne.s32.totalorder %s67, %s70
      %p79 = scmp.eq.s32.totalorder %s36, 1
      %p80 = por %p78, %p79
      %p81 = scmp.ne.s32.totalorder %s70, %s71
      %p82 = scmp.eq.s32.totalorder %s36, 0
      %p83 = por %p81, %p82
      %p84 = scmp.ne.s32.totalorder %s70, %s71
      %p85 = scmp.eq.s32.totalorder %s37, 1
      %p86 = por %p84, %p85
      %p88 = scmp.ne.s32.totalorder %s71, %s87
      %p89 = scmp.eq.s32.totalorder %s37, 0
      %p90 = por %p88, %p89
      %s92 = sadd.s32 %s91, 1
      %p95 = scmp.eq.s32.totalorder %s31, 1
      %p96 = scmp.ne.s32.totalorder %s91, %s93
      %p97 = scmp.eq.s32.totalorder %s31, 0
      %p98 = por %p96, %p97
      %p99 = scmp.ne.s32.totalorder %s91, %s93
      %p100 = scmp.eq.s32.totalorder %s36, 1
      %p101 = por %p99, %p100
      %p102 = scmp.ne.s32.totalorder %s93, %s94
      %p103 = scmp.eq.s32.totalorder %s36, 0
      %p104 = por %p102, %p103
      %p105 = scmp.ne.s32.totalorder %s93, %s94
      %p106 = scmp.eq.s32.totalorder %s37, 1
      %p107 = por %p105, %p106
      %p109 = scmp.ne.s32.totalorder %s94, %s108
      %p110 = scmp.eq.s32.totalorder %s37, 0
      %p111 = por %p109, %p110
      %s113 = sadd.s32 %s112, 1
      %p116 = scmp.eq.s32.totalorder %s31, 1
      %p117 = scmp.ne.s32.totalorder %s112, %s114
      %p118 = scmp.eq.s32.totalorder %s31, 0
      %p119 = por %p117, %p118
      %p120 = scmp.ne.s32.totalorder %s112, %s114
      %p121 = scmp.eq.s32.totalorder %s36, 1
      %p122 = por %p120, %p121
      %p123 = scmp.ne.s32.totalorder %s114, %s115
      %p124 = scmp.eq.s32.totalorder %s36, 0
      %p125 = por %p123, %p124
      %p126 = scmp.ne.s32.totalorder %s114, %s115
      %p127 = scmp.eq.s32.totalorder %s37, 1
      %p128 = por %p126, %p127
      %p130 = scmp.ne.s32.totalorder %s115, %s129
      %p131 = scmp.eq.s32.totalorder %s37, 0
      %p132 = por %p130, %p131
      %s134 = sadd.s32 %s133, 1
      %p137 = scmp.eq.s32.totalorder %s31, 1
      %p138 = scmp.ne.s32.totalorder %s133, %s135
      %p139 = scmp.eq.s32.totalorder %s31, 0
      %p140 = por %p138, %p139
      %p141 = scmp.ne.s32.totalorder %s133, %s135
      %p142 = scmp.eq.s32.totalorder %s36, 1
      %p143 = por %p141, %p142
      %p144 = scmp.ne.s32.totalorder %s135, %s136
      %p145 = scmp.eq.s32.totalorder %s36, 0
      %p146 = por %p144, %p145
      %p147 = scmp.ne.s32.totalorder %s135, %s136
      %p148 = scmp.eq.s32.totalorder %s37, 1
      %p149 = por %p147, %p148
      %p151 = scmp.ne.s32.totalorder %s136, %s150
      %p152 = scmp.eq.s32.totalorder %s37, 0
      %p153 = por %p151, %p152
      %s155 = sadd.s32 %s154, 1
      %p158 = scmp.eq.s32.totalorder %s31, 1
      %p159 = scmp.ne.s32.totalorder %s154, %s156
      %p160 = scmp.eq.s32.totalorder %s31, 0
      %p161 = por %p159, %p160
      %p162 = scmp.ne.s32.totalorder %s154, %s156
      %p163 = scmp.eq.s32.totalorder %s36, 1
      %p164 = por %p162, %p163
      %p165 = scmp.ne.s32.totalorder %s156, %s157
      %p166 = scmp.eq.s32.totalorder %s36, 0
      %p167 = por %p165, %p166
      %p168 = scmp.ne.s32.totalorder %s156, %s157
      %p169 = scmp.eq.s32.totalorder %s37, 1
      %p170 = por %p168, %p169
      %p172 = scmp.ne.s32.totalorder %s157, %s171
      %p173 = scmp.eq.s32.totalorder %s37, 0
      %p174 = por %p172, %p173
      %s176 = sadd.s32 %s175, 1
      %p179 = scmp.eq.s32.totalorder %s31, 1
      %p180 = scmp.ne.s32.totalorder %s175, %s177
      %p181 = scmp.eq.s32.totalorder %s31, 0
      %p182 = por %p180, %p181
      %p183 = scmp.ne.s32.totalorder %s175, %s177
      %p184 = scmp.eq.s32.totalorder %s36, 1
      %p185 = por %p183, %p184
      %p186 = scmp.ne.s32.totalorder %s177, %s178
      %p187 = scmp.eq.s32.totalorder %s36, 0
      %p188 = por %p186, %p187
      %p189 = scmp.ne.s32.totalorder %s177, %s178
      %p190 = scmp.eq.s32.totalorder %s37, 1
      %p191 = por %p189, %p190
      %p193 = scmp.ne.s32.totalorder %s178, %s192
      %p194 = scmp.eq.s32.totalorder %s37, 0
      %p195 = por %p193, %p194
      %s197 = sadd.s32 %s196, 1
      %p200 = scmp.eq.s32.totalorder %s31, 1
      %p201 = scmp.ne.s32.totalorder %s196, %s198
      %p202 = scmp.eq.s32.totalorder %s31, 0
      %p203 = por %p201, %p202
      %p204 = scmp.ne.s32.totalorder %s196, %s198
      %p205 = scmp.eq.s32.totalorder %s36, 1
      %p206 = por %p204, %p205
      %p207 = scmp.ne.s32.totalorder %s198, %s199
      %p208 = scmp.eq.s32.totalorder %s36, 0
      %p209 = por %p207, %p208
      %p210 = scmp.ne.s32.totalorder %s198, %s199
      %p211 = scmp.eq.s32.totalorder %s37, 1
      %p212 = por %p210, %p211
      %p214 = scmp.ne.s32.totalorder %s199, %s213
      %p215 = scmp.eq.s32.totalorder %s37, 0
      %p216 = por %p214, %p215
      %s218 = sadd.s32 %s217, 1
      %p221 = scmp.eq.s32.totalorder %s31, 1
      %p222 = scmp.ne.s32.totalorder %s217, %s219
      %p223 = scmp.eq.s32.totalorder %s31, 0
      %p224 = por %p222, %p223
      %p225 = scmp.ne.s32.totalorder %s217, %s219
      %p226 = scmp.eq.s32.totalorder %s36, 1
      %p227 = por %p225, %p226
      %p228 = scmp.ne.s32.totalorder %s219, %s220
      %p229 = scmp.eq.s32.totalorder %s36, 0
      %p230 = por %p228, %p229
      %p231 = scmp.ne.s32.totalorder %s219, %s220
      %p232 = scmp.eq.s32.totalorder %s37, 1
      %p233 = por %p231, %p232
      %p235 = scmp.ne.s32.totalorder %s220, %s234
      %p236 = scmp.eq.s32.totalorder %s37, 0
      %p237 = por %p235, %p236
      %s239 = sadd.s32 %s238, 1
      %p242 = scmp.eq.s32.totalorder %s31, 1
      %p243 = scmp.ne.s32.totalorder %s238, %s240
      %p244 = scmp.eq.s32.totalorder %s31, 0
      %p245 = por %p243, %p244
      %p246 = scmp.ne.s32.totalorder %s238, %s240
      %p247 = scmp.eq.s32.totalorder %s36, 1
      %p248 = por %p246, %p247
      %p249 = scmp.ne.s32.totalorder %s240, %s241
      %p250 = scmp.eq.s32.totalorder %s36, 0
      %p251 = por %p249, %p250
      %p252 = scmp.ne.s32.totalorder %s240, %s241
      %p253 = scmp.eq.s32.totalorder %s37, 1
      %p254 = por %p252, %p253
      %p256 = scmp.ne.s32.totalorder %s241, %s255
      %p257 = scmp.eq.s32.totalorder %s37, 0
      %p258 = por %p256, %p257
      %s260 = sadd.s32 %s259, 1
      %p263 = scmp.eq.s32.totalorder %s31, 1
      %p264 = scmp.ne.s32.totalorder %s259, %s261
      %p265 = scmp.eq.s32.totalorder %s31, 0
      %p266 = por %p264, %p265
      %p267 = scmp.ne.s32.totalorder %s259, %s261
      %p268 = scmp.eq.s32.totalorder %s36, 1
      %p269 = por %p267, %p268
      %p270 = scmp.ne.s32.totalorder %s261, %s262
      %p271 = scmp.eq.s32.totalorder %s36, 0
      %p272 = por %p270, %p271
      %p273 = scmp.ne.s32.totalorder %s261, %s262
      %p274 = scmp.eq.s32.totalorder %s37, 1
      %p275 = por %p273, %p274
      %p277 = scmp.ne.s32.totalorder %s262, %s276
      %p278 = scmp.eq.s32.totalorder %s37, 0
      %p279 = por %p277, %p278
      %s281 = sadd.s32 %s280, 1
      %p284 = scmp.eq.s32.totalorder %s31, 1
      %p285 = scmp.ne.s32.totalorder %s280, %s282
      %p286 = scmp.eq.s32.totalorder %s31, 0
      %p287 = por %p285, %p286
      %p288 = scmp.ne.s32.totalorder %s280, %s282
      %p289 = scmp.eq.s32.totalorder %s36, 1
      %p290 = por %p288, %p289
      %p291 = scmp.ne.s32.totalorder %s282, %s283
      %p292 = scmp.eq.s32.totalorder %s36, 0
      %p293 = por %p291, %p292
      %p294 = scmp.ne.s32.totalorder %s282, %s283
      %p295 = scmp.eq.s32.totalorder %s37, 1
      %p296 = por %p294, %p295
      %p298 = scmp.ne.s32.totalorder %s283, %s297
      %p299 = scmp.eq.s32.totalorder %s37, 0
      %p300 = por %p298, %p299
      %s302 = sadd.s32 %s301, 1
      %p305 = scmp.eq.s32.totalorder %s31, 1
      %p306 = scmp.ne.s32.totalorder %s301, %s303
      %p307 = scmp.eq.s32.totalorder %s31, 0
      %p308 = por %p306, %p307
      %p309 = scmp.ne.s32.totalorder %s301, %s303
      %p310 = scmp.eq.s32.totalorder %s36, 1
      %p311 = por %p309, %p310
      %p312 = scmp.ne.s32.totalorder %s303, %s304
      %p313 = scmp.eq.s32.totalorder %s36, 0
      %p314 = por %p312, %p313
      %p315 = scmp.ne.s32.totalorder %s303, %s304
      %p316 = scmp.eq.s32.totalorder %s37, 1
      %p317 = por %p315, %p316
      %p319 = scmp.ne.s32.totalorder %s304, %s318
      %p320 = scmp.eq.s32.totalorder %s37, 0
      %p321 = por %p319, %p320
      %s323 = sadd.s32 %s322, 1
      %p326 = scmp.eq.s32.totalorder %s31, 1
      %p327 = scmp.ne.s32.totalorder %s322, %s324
      %p328 = scmp.eq.s32.totalorder %s31, 0
      %p329 = por %p327, %p328
      %p330 = scmp.ne.s32.totalorder %s322, %s324
      %p331 = scmp.eq.s32.totalorder %s36, 1
      %p332 = por %p330, %p331
      %p333 = scmp.ne.s32.totalorder %s324, %s325
      %p334 = scmp.eq.s32.totalorder %s36, 0
      %p335 = por %p333, %p334
      %p336 = scmp.ne.s32.totalorder %s324, %s325
      %p337 = scmp.eq.s32.totalorder %s37, 1
      %p338 = por %p336, %p337
      %p340 = scmp.ne.s32.totalorder %s325, %s339
      %p341 = scmp.eq.s32.totalorder %s37, 0
      %p342 = por %p340, %p341
      %s344 = sadd.s32 %s343, 1
      %p347 = scmp.eq.s32.totalorder %s31, 1
      %p348 = scmp.ne.s32.totalorder %s343, %s345
      %p349 = scmp.eq.s32.totalorder %s31, 0
      %p350 = por %p348, %p349
      %p351 = scmp.ne.s32.totalorder %s343, %s345
      %p352 = scmp.eq.s32.totalorder %s36, 1
      %p353 = por %p351, %p352
      %p354 = scmp.ne.s32.totalorder %s345, %s346
      %p355 = scmp.eq.s32.totalorder %s36, 0
      %p356 = por %p354, %p355
      %p357 = scmp.ne.s32.totalorder %s345, %s346
      %p358 = scmp.eq.s32.totalorder %s37, 1
      %p359 = por %p357, %p358
      %p361 = scmp.ne.s32.totalorder %s346, %s360
      %p362 = scmp.eq.s32.totalorder %s37, 0
      %p363 = por %p361, %p362
      %s365 = sadd.s32 %s364, 1
      %p368 = scmp.eq.s32.totalorder %s31, 1
      %p369 = scmp.ne.s32.totalorder %s364, %s366
      %p370 = scmp.eq.s32.totalorder %s31, 0
      %p371 = por %p369, %p370
      %p372 = scmp.ne.s32.totalorder %s364, %s366
      %p373 = scmp.eq.s32.totalorder %s36, 1
      %p374 = por %p372, %p373
      %p375 = scmp.ne.s32.totalorder %s366, %s367
      %p376 = scmp.eq.s32.totalorder %s36, 0
      %p377 = por %p375, %p376
      %p378 = scmp.ne.s32.totalorder %s366, %s367
      %p379 = scmp.eq.s32.totalorder %s37, 1
      %p380 = por %p378, %p379
      %p382 = scmp.ne.s32.totalorder %s367, %s381
      %p383 = scmp.eq.s32.totalorder %s37, 0
      %p384 = por %p382, %p383
      %s386 = sadd.s32 %s385, 1
      %p389 = scmp.eq.s32.totalorder %s31, 1
      %p390 = scmp.ne.s32.totalorder %s385, %s387
      %p391 = scmp.eq.s32.totalorder %s31, 0
      %p392 = por %p390, %p391
      %p393 = scmp.ne.s32.totalorder %s385, %s387
      %p394 = scmp.eq.s32.totalorder %s36, 1
      %p395 = por %p393, %p394
      %p396 = scmp.ne.s32.totalorder %s387, %s388
      %p397 = scmp.eq.s32.totalorder %s36, 0
      %p398 = por %p396, %p397
      %p399 = scmp.ne.s32.totalorder %s387, %s388
      %p400 = scmp.eq.s32.totalorder %s37, 1
      %p401 = por %p399, %p400
      %p403 = scmp.ne.s32.totalorder %s388, %s402
      %p404 = scmp.eq.s32.totalorder %s37, 0
      %p405 = por %p403, %p404
      %s407 = sadd.s32 %s406, 1
      %p410 = scmp.eq.s32.totalorder %s31, 1
      %p411 = scmp.ne.s32.totalorder %s406, %s408
      %p412 = scmp.eq.s32.totalorder %s31, 0
      %p413 = por %p411, %p412
      %p414 = scmp.ne.s32.totalorder %s406, %s408
      %p415 = scmp.eq.s32.totalorder %s36, 1
      %p416 = por %p414, %p415
      %p417 = scmp.ne.s32.totalorder %s408, %s409
      %p418 = scmp.eq.s32.totalorder %s36, 0
      %p419 = por %p417, %p418
      %p420 = scmp.ne.s32.totalorder %s408, %s409
      %p421 = scmp.eq.s32.totalorder %s37, 1
      %p422 = por %p420, %p421
      %p424 = scmp.ne.s32.totalorder %s409, %s423
      %p425 = scmp.eq.s32.totalorder %s37, 0
      %p426 = por %p424, %p425
      %s428 = sadd.s32 %s427, 1
      %p431 = scmp.eq.s32.totalorder %s31, 1
      %p432 = scmp.ne.s32.totalorder %s427, %s429
      %p433 = scmp.eq.s32.totalorder %s31, 0
      %p434 = por %p432, %p433
      %p435 = scmp.ne.s32.totalorder %s427, %s429
      %p436 = scmp.eq.s32.totalorder %s36, 1
      %p437 = por %p435, %p436
      %p438 = scmp.ne.s32.totalorder %s429, %s430
      %p439 = scmp.eq.s32.totalorder %s36, 0
      %p440 = por %p438, %p439
      %p441 = scmp.ne.s32.totalorder %s429, %s430
      %p442 = scmp.eq.s32.totalorder %s37, 1
      %p443 = por %p441, %p442
      %p445 = scmp.ne.s32.totalorder %s430, %s444
      %p446 = scmp.eq.s32.totalorder %s37, 0
      %p447 = por %p445, %p446
      %s449 = sadd.s32 %s448, 1
      %p452 = scmp.eq.s32.totalorder %s31, 1
      %p453 = scmp.ne.s32.totalorder %s448, %s450
      %p454 = scmp.eq.s32.totalorder %s31, 0
      %p455 = por %p453, %p454
      %p456 = scmp.ne.s32.totalorder %s448, %s450
      %p457 = scmp.eq.s32.totalorder %s36, 1
      %p458 = por %p456, %p457
      %p459 = scmp.ne.s32.totalorder %s450, %s451
      %p460 = scmp.eq.s32.totalorder %s36, 0
      %p461 = por %p459, %p460
      %p462 = scmp.ne.s32.totalorder %s450, %s451
      %p463 = scmp.eq.s32.totalorder %s37, 1
      %p464 = por %p462, %p463
      %p466 = scmp.ne.s32.totalorder %s451, %s465
      %p467 = scmp.eq.s32.totalorder %s37, 0
      %p468 = por %p466, %p467
      %s470 = sadd.s32 %s469, 1
      %p473 = scmp.eq.s32.totalorder %s31, 1
      %p474 = scmp.ne.s32.totalorder %s469, %s471
      %p475 = scmp.eq.s32.totalorder %s31, 0
      %p476 = por %p474, %p475
      %p477 = scmp.ne.s32.totalorder %s469, %s471
      %p478 = scmp.eq.s32.totalorder %s36, 1
      %p479 = por %p477, %p478
      %p480 = scmp.ne.s32.totalorder %s471, %s472
      %p481 = scmp.eq.s32.totalorder %s36, 0
      %p482 = por %p480, %p481
      %p483 = scmp.ne.s32.totalorder %s471, %s472
      %p484 = scmp.eq.s32.totalorder %s37, 1
      %p485 = por %p483, %p484
      %p487 = scmp.ne.s32.totalorder %s472, %s486
      %p488 = scmp.eq.s32.totalorder %s37, 0
      %p489 = por %p487, %p488
      %s491 = sadd.s32 %s490, 1
      %p494 = scmp.eq.s32.totalorder %s31, 1
      %p495 = scmp.ne.s32.totalorder %s490, %s492
      %p496 = scmp.eq.s32.totalorder %s31, 0
      %p497 = por %p495, %p496
      %p498 = scmp.ne.s32.totalorder %s490, %s492
      %p499 = scmp.eq.s32.totalorder %s36, 1
      %p500 = por %p498, %p499
      %p501 = scmp.ne.s32.totalorder %s492, %s493
      %p502 = scmp.eq.s32.totalorder %s36, 0
      %p503 = por %p501, %p502
      %p504 = scmp.ne.s32.totalorder %s492, %s493
      %p505 = scmp.eq.s32.totalorder %s37, 1
      %p506 = por %p504, %p505
      %p508 = scmp.ne.s32.totalorder %s493, %s507
      %p509 = scmp.eq.s32.totalorder %s37, 0
      %p510 = por %p508, %p509
      %s511 = ssub.s32 %s31, %s38
      %p512 = scmp.eq.s32.totalorder %s511, 0
      %s514 = sadd.s32 %s513, 1
      %s515 = scalar_select %p512, %s513, %s514
      %p518 = pneg %p512
      %p519 = scmp.eq.s32.totalorder %s31, 1
      %p520 = por %p518, %p519
      %p521 = scmp.ne.s32.totalorder %s513, %s516
      %p522 = scmp.eq.s32.totalorder %s31, 0
      %p523 = por %p521, %p522
      %p524 = scmp.ne.s32.totalorder %s513, %s516
      %p525 = scmp.eq.s32.totalorder %s36, 1
      %p526 = por %p524, %p525
      %p527 = scmp.ne.s32.totalorder %s516, %s517
      %p528 = scmp.eq.s32.totalorder %s36, 0
      %p529 = por %p527, %p528
      %p530 = scmp.ne.s32.totalorder %s516, %s517
      %p531 = scmp.eq.s32.totalorder %s37, 1
      %p532 = por %p530, %p531
      %p534 = scmp.ne.s32.totalorder %s517, %s533
      %p535 = scmp.eq.s32.totalorder %s37, 0
      %p536 = por %p534, %p535
      %p537 = scmp.le.s32.totalorder 1, %s31
      %p538 = scmp.lt.s32.totalorder %s31, 3
      %p539 = pnand %p537, %p538
      %p540 = pneg %p539
      // Predicated region
      $region9: #{transformer_decoder.1} parent=5 // pred_check
        _
      $region10: #{transformer_decoder.1} parent=5 // pred_check_branch
        %542 = sbr.rel (%p539) target = $region12
      $region11: #{transformer_decoder.1} parent=5 // pred_region
        %s543 = ssub.s32 %s31, 1
        // Predicated region
        $region13: #{transformer_decoder.1} parent=11 // pred_check
          %p544 = pneg %p104
        $region14: #{transformer_decoder.1} parent=11 // pred_check_branch
          %546 = sbr.rel (%p544) target = $region16
        $region15: #{transformer_decoder.1} parent=11 // pred_region
          _
        $region16: #{transformer_decoder.1} parent=11 // pred_fallthru
          _
        // Predicated region
        $region17: #{transformer_decoder.1} parent=11 // pred_check
          %p547 = pneg %p125
        $region18: #{transformer_decoder.1} parent=11 // pred_check_branch
          %549 = sbr.rel (%p547) target = $region20
        $region19: #{transformer_decoder.1} parent=11 // pred_region
          _
        $region20: #{transformer_decoder.1} parent=11 // pred_fallthru
          _
        // Predicated region
        $region21: #{transformer_decoder.1} parent=11 // pred_check
          %p550 = pneg %p146
        $region22: #{transformer_decoder.1} parent=11 // pred_check_branch
          %552 = sbr.rel (%p550) target = $region24
        $region23: #{transformer_decoder.1} parent=11 // pred_region
          _
        $region24: #{transformer_decoder.1} parent=11 // pred_fallthru
          _
        // Predicated region
        $region25: #{transformer_decoder.1} parent=11 // pred_check
          %p553 = pneg %p167
        $region26: #{transformer_decoder.1} parent=11 // pred_check_branch
          %555 = sbr.rel (%p553) target = $region28
        $region27: #{transformer_decoder.1} parent=11 // pred_region
          _
        $region28: #{transformer_decoder.1} parent=11 // pred_fallthru
          _
        // Predicated region
        $region29: #{transformer_decoder.1} parent=11 // pred_check
          %p556 = pneg %p188
        $region30: #{transformer_decoder.1} parent=11 // pred_check_branch
          %558 = sbr.rel (%p556) target = $region32
        $region31: #{transformer_decoder.1} parent=11 // pred_region
          _
        $region32: #{transformer_decoder.1} parent=11 // pred_fallthru
          _
        // Predicated region
        $region33: #{transformer_decoder.1} parent=11 // pred_check
          %p559 = pneg %p209
        $region34: #{transformer_decoder.1} parent=11 // pred_check_branch
          %561 = sbr.rel (%p559) target = $region36
        $region35: #{transformer_decoder.1} parent=11 // pred_region
          _
        $region36: #{transformer_decoder.1} parent=11 // pred_fallthru
          _
        // Predicated region
        $region37: #{transformer_decoder.1} parent=11 // pred_check
          %p562 = pneg %p230
        $region38: #{transformer_decoder.1} parent=11 // pred_check_branch
          %564 = sbr.rel (%p562) target = $region40
        $region39: #{transformer_decoder.1} parent=11 // pred_region
          _
        $region40: #{transformer_decoder.1} parent=11 // pred_fallthru
          _
        // Predicated region
        $region41: #{transformer_decoder.1} parent=11 // pred_check
          %p565 = pneg %p251
        $region42: #{transformer_decoder.1} parent=11 // pred_check_branch
          %567 = sbr.rel (%p565) target = $region44
        $region43: #{transformer_decoder.1} parent=11 // pred_region
          _
        $region44: #{transformer_decoder.1} parent=11 // pred_fallthru
          _
        // Predicated region
        $region45: #{transformer_decoder.1} parent=11 // pred_check
          %p568 = pneg %p272
        $region46: #{transformer_decoder.1} parent=11 // pred_check_branch
          %570 = sbr.rel (%p568) target = $region48
        $region47: #{transformer_decoder.1} parent=11 // pred_region
          _
        $region48: #{transformer_decoder.1} parent=11 // pred_fallthru
          _
        // Predicated region
        $region49: #{transformer_decoder.1} parent=11 // pred_check
          %p571 = pneg %p293
        $region50: #{transformer_decoder.1} parent=11 // pred_check_branch
          %573 = sbr.rel (%p571) target = $region52
        $region51: #{transformer_decoder.1} parent=11 // pred_region
          _
        $region52: #{transformer_decoder.1} parent=11 // pred_fallthru
          _
        // Predicated region
        $region53: #{transformer_decoder.1} parent=11 // pred_check
          %p574 = pneg %p314
        $region54: #{transformer_decoder.1} parent=11 // pred_check_branch
          %576 = sbr.rel (%p574) target = $region56
        $region55: #{transformer_decoder.1} parent=11 // pred_region
          _
        $region56: #{transformer_decoder.1} parent=11 // pred_fallthru
          _
        // Predicated region
        $region57: #{transformer_decoder.1} parent=11 // pred_check
          %p577 = pneg %p335
        $region58: #{transformer_decoder.1} parent=11 // pred_check_branch
          %579 = sbr.rel (%p577) target = $region60
        $region59: #{transformer_decoder.1} parent=11 // pred_region
          _
        $region60: #{transformer_decoder.1} parent=11 // pred_fallthru
          _
        // Predicated region
        $region61: #{transformer_decoder.1} parent=11 // pred_check
          %p580 = pneg %p356
        $region62: #{transformer_decoder.1} parent=11 // pred_check_branch
          %582 = sbr.rel (%p580) target = $region64
        $region63: #{transformer_decoder.1} parent=11 // pred_region
          _
        $region64: #{transformer_decoder.1} parent=11 // pred_fallthru
          _
        // Predicated region
        $region65: #{transformer_decoder.1} parent=11 // pred_check
          %p583 = pneg %p377
        $region66: #{transformer_decoder.1} parent=11 // pred_check_branch
          %585 = sbr.rel (%p583) target = $region68
        $region67: #{transformer_decoder.1} parent=11 // pred_region
          _
        $region68: #{transformer_decoder.1} parent=11 // pred_fallthru
          _
        // Predicated region
        $region69: #{transformer_decoder.1} parent=11 // pred_check
          %p586 = pneg %p398
        $region70: #{transformer_decoder.1} parent=11 // pred_check_branch
          %588 = sbr.rel (%p586) target = $region72
        $region71: #{transformer_decoder.1} parent=11 // pred_region
          _
        $region72: #{transformer_decoder.1} parent=11 // pred_fallthru
          _
        // Predicated region
        $region73: #{transformer_decoder.1} parent=11 // pred_check
          %p589 = pneg %p419
        $region74: #{transformer_decoder.1} parent=11 // pred_check_branch
          %591 = sbr.rel (%p589) target = $region76
        $region75: #{transformer_decoder.1} parent=11 // pred_region
          _
        $region76: #{transformer_decoder.1} parent=11 // pred_fallthru
          _
        // Predicated region
        $region77: #{transformer_decoder.1} parent=11 // pred_check
          %p592 = pneg %p440
        $region78: #{transformer_decoder.1} parent=11 // pred_check_branch
          %594 = sbr.rel (%p592) target = $region80
        $region79: #{transformer_decoder.1} parent=11 // pred_region
          _
        $region80: #{transformer_decoder.1} parent=11 // pred_fallthru
          _
        // Predicated region
        $region81: #{transformer_decoder.1} parent=11 // pred_check
          %p595 = pneg %p461
        $region82: #{transformer_decoder.1} parent=11 // pred_check_branch
          %597 = sbr.rel (%p595) target = $region84
        $region83: #{transformer_decoder.1} parent=11 // pred_region
          _
        $region84: #{transformer_decoder.1} parent=11 // pred_fallthru
          _
        // Predicated region
        $region85: #{transformer_decoder.1} parent=11 // pred_check
          %p598 = pneg %p482
        $region86: #{transformer_decoder.1} parent=11 // pred_check_branch
          %600 = sbr.rel (%p598) target = $region88
        $region87: #{transformer_decoder.1} parent=11 // pred_region
          _
        $region88: #{transformer_decoder.1} parent=11 // pred_fallthru
          _
        // Predicated region
        $region89: #{transformer_decoder.1} parent=11 // pred_check
          %p601 = pneg %p503
        $region90: #{transformer_decoder.1} parent=11 // pred_check_branch
          %603 = sbr.rel (%p601) target = $region92
        $region91: #{transformer_decoder.1} parent=11 // pred_region
          _
        $region92: #{transformer_decoder.1} parent=11 // pred_fallthru
          _
      $region12: #{transformer_decoder.1} parent=5 // pred_fallthru
        _
      %p604 = scmp.lt.s32.totalorder %s31, 2
      // Predicated region
      $region93: #{transformer_decoder.1} parent=5 // pred_check
        %p605 = pneg %p604
      $region94: #{transformer_decoder.1} parent=5 // pred_check_branch
        %607 = sbr.rel (%p605) target = $region96
      $region95: #{transformer_decoder.1} parent=5 // pred_region
        // Predicated region
        $region97: #{transformer_decoder.1} parent=95 // pred_check
          %p608 = pneg %p51
        $region98: #{transformer_decoder.1} parent=95 // pred_check_branch
          %610 = sbr.rel (%p608) target = $region100
        $region99: #{transformer_decoder.1} parent=95 // pred_region
          %p611 = scmp.lt.s32.totalorder %s31, 1
          %s612 = scalar_select %p611, %s31, 1
          %s613 = smul.addr %s612, 8
          %s614 = scalar_lea.vmem %s0, %s613
        $region100: #{transformer_decoder.1} parent=95 // pred_fallthru
          _
        // Predicated region
        $region101: #{transformer_decoder.1} parent=95 // pred_check
          %p615 = pneg %p77
        $region102: #{transformer_decoder.1} parent=95 // pred_check_branch
          %617 = sbr.rel (%p615) target = $region104
        $region103: #{transformer_decoder.1} parent=95 // pred_region
          %p618 = scmp.lt.s32.totalorder %s31, 1
          %s619 = scalar_select %p618, %s31, 1
          %s620 = smul.addr %s619, 8
          %s621 = scalar_lea.vmem %s1, %s620
        $region104: #{transformer_decoder.1} parent=95 // pred_fallthru
          _
      $region96: #{transformer_decoder.1} parent=5 // pred_fallthru
        _
      %p622 = scmp.le.s32.totalorder 1, %s31
      %p623 = scmp.lt.s32.totalorder %s31, 3
      %p624 = pnand %p622, %p623
      %p625 = pneg %p624
      // Predicated region
      $region105: #{transformer_decoder.1} parent=5 // pred_check
        _
      $region106: #{transformer_decoder.1} parent=5 // pred_check_branch
        %627 = sbr.rel (%p624) target = $region108
      $region107: #{transformer_decoder.1} parent=5 // pred_region
        %s628 = ssub.s32 %s31, 1
        %p629 = scmp.lt.s32.totalorder %s36, 1
        %s630 = scalar_select %p629, %s36, 1
        %s631 = smul.addr %s630, 8
        %s632 = scalar_lea.vmem %s0, %s631
        %p633 = pneg %p57
        %p634 = pneg %p54
        %p635 = scmp.lt.s32.totalorder %s36, 1
        %s636 = scalar_select %p635, %s36, 1
        %s637 = smul.addr %s636, 8
        %s638 = scalar_lea.vmem %s1, %s637
        %p639 = pneg %p83
        %p640 = pneg %p80
        %p641 = pneg %p104
        %p642 = pneg %p101
        %p643 = pneg %p125
        %p644 = pneg %p122
        %p645 = pneg %p146
        %p646 = pneg %p143
        %p647 = pneg %p167
        %p648 = pneg %p164
        %p649 = pneg %p188
        %p650 = pneg %p185
        %p651 = pneg %p209
        %p652 = pneg %p206
        %p653 = pneg %p230
        %p654 = pneg %p227
        %p655 = pneg %p251
        %p656 = pneg %p248
        %p657 = pneg %p272
        %p658 = pneg %p269
        %p659 = pneg %p293
        %p660 = pneg %p290
        %p661 = pneg %p314
        %p662 = pneg %p311
        %p663 = pneg %p335
        %p664 = pneg %p332
        %p665 = pneg %p356
        %p666 = pneg %p353
        %p667 = pneg %p377
        %p668 = pneg %p374
        %p669 = pneg %p398
        %p670 = pneg %p395
        %p671 = pneg %p419
        %p672 = pneg %p416
        %p673 = pneg %p440
        %p674 = pneg %p437
        %p675 = pneg %p461
        %p676 = pneg %p458
        %p677 = pneg %p482
        %p678 = pneg %p479
        %p679 = pneg %p503
        %p680 = pneg %p500
        %p681 = pneg %p529
        %p682 = pneg %p526
        %s683 = sand.u32 %s516, 1
        %s684 = scalar_lea.sflag [#allocation3], %s683
        %s685 = sand.u32 %s516, 1
        %s686 = smul.addr %s685, 8
        %s687 = scalar_lea.vmem [#allocation2], %s686
        %p688 = scmp.lt.s32.totalorder %s36, 1
        %s689 = scalar_select %p688, %s36, 1
        %s690 = smul.addr %s689, 8
        %s691 = scalar_lea.vmem %s0, %s690
        %p692 = scmp.lt.s32.totalorder %s36, 1
        %s693 = scalar_select %p692, %s36, 1
        %s694 = smul.addr %s693, 8
        %s695 = scalar_lea.vmem %s1, %s694
        %v697 = vld [vmem:[%s691] sm:$0xff]
        %v698 = vld [vmem:[%s695] sm:$0xff]
        %v699 = vpack.c.bf16 %v698, %v698
        %v700 = vld [vmem:[%s2] sm:$0xff]
        %v701 = vld [vmem:[%s3] sm:$0xff]
        %v702 = vpack.c.bf16 %v697, %v697
        %v703 = vld [vmem:[%s4] sm:$0xf]
        %v704 = vld [vmem:[%s4 + $0x4] sm:$0xf]
        %v705 = vld [vmem:[%s4 + $0x8] sm:$0xf]
        %v706 = vld [vmem:[%s4 + $0xc] sm:$0xf]
        %v707 = vld [vmem:[%s5] sm:$0x1]
        %v708 = vld [vmem:[%s6] sm:$0xf]
        %v709 = vld [vmem:[%s6 + $0x4] sm:$0xf]
        %v710 = vld [vmem:[%s6 + $0x8] sm:$0xf]
        %v711 = vld [vmem:[%s6 + $0xc] sm:$0xf]
        %v712 = vld [vmem:[%s7] sm:$0x1]
        %v714 = vperm.slane %v707, 0
        %v720 = vunpack.c.l.b16 %v703
        %v721 = vunpack.c.l.b16 %v704
        %v722 = vunpack.c.l.b16 %v705
        %v723 = vunpack.c.l.b16 %v706
        %v724 = vpack.c.b16 %v721, %v720
        %v725 = vpack.c.b16 %v723, %v722
        %vm728 = vcmask 261120
        %v730 = vsel %vm728, %v702, 0
        %732 = vmatpush.bf16.msra.mxu0 0
        %733 = vmatpush.bf16.msra.mxu0 0
        %734 = vmatpush.bf16.msra.mxu0 0
        %735 = vmatpush.bf16.msra.mxu0 0
        %736 = vmatpush.bf16.msra.mxu0 0
        %737 = vmatpush.bf16.msra.mxu0 0
        %738 = vmatpush.bf16.msra.mxu0 %v725
        %739 = vmatpush.bf16.msra.mxu0 %v724
        %740 = vmatmul.bf16.gmra.mxu0 %v730
        %v741 = vpop.f32.mrf.mxu0
        %v742 = vadd.f32 %v714, %v741
        %v743 = vpop.f32.mrf.mxu0
        %744 = vdwg.mxu0
        %v745 = vmul.f32 %v742, 0.35355338
        %v746 = vpack.c.bf16 %v745, %v745
        %v747 = vpack.c.bf16 %v742, %v742
        %v749 = vunpack.c.l.b16 %v747
        %v750 = vpack.c.b16 %v749, %v749
        %751 = vrot.lane.b32.xlu0 %v750, 96
        %v752 = vpop.permute.xlu0 %751
        %vm753 = vcmask 64512
        %v755 = vsel %vm753, %v746, 0
        %v758 = vsel %vm753, %v752, 0
        %760 = vmatpush.bf16.xpose.msra.mxu0 0
        %761 = vmatpush.bf16.xpose.msra.mxu0 0
        %762 = vmatpush.bf16.xpose.msra.mxu0 0
        %763 = vmatpush.bf16.xpose.msra.mxu0 0
        %764 = vmatpush.bf16.xpose.msra.mxu0 0
        %765 = vmatpush.bf16.xpose.msra.mxu0 0
        %766 = vmatpush.bf16.xpose.msra.mxu0 0
        %767 = vmatpush.bf16.xpose.msra.mxu0 %v758
        %768 = vmatmul.bf16.gmra.mxu0 %v755
        %v769 = vpop.f32.mrf.mxu0
        %v770 = vadd.f32 %v700, %v769
        %v771 = vpop.f32.mrf.mxu0
        %772 = vdwg.mxu0
        %v773 = vsel %vm753, %v770, -inf
        %774 = vmax.xlane.f32.xlu0 %v773
        %v775 = vpop.xlane.xlu0 %774
        %v776 = vsub.f32 %v770, %v775
        %v777 = vmul.f32 %v776, 1.442695
        %v778 = vpow.pop %v777
        %v779 = vsel %vm753, %v778, 0.0
        %780 = vadd.xlane.f32.xlu0 %v779
        %v781 = vpop.xlane.xlu0 %780
        %v782 = vrcp.pop %v781
        %v783 = vmul.f32 %v778, %v782
        %v784 = vpack.c.bf16 %v783, %v783
        %785 = vrot.lane.b32.xlu0 %v750, 64
        %v786 = vpop.permute.xlu0 %785
        %v788 = vsel %vm753, %v784, 0
        %vm790 = vcmask 1043456
        %v792 = vsel %vm790, %v786, 0
        %794 = vmatpush.bf16.msra.mxu0 0
        %795 = vmatpush.bf16.msra.mxu0 0
        %796 = vmatpush.bf16.msra.mxu0 0
        %797 = vmatpush.bf16.msra.mxu0 0
        %798 = vmatpush.bf16.msra.mxu0 0
        %799 = vmatpush.bf16.msra.mxu0 0
        %800 = vmatpush.bf16.msra.mxu0 0
        %801 = vmatpush.bf16.msra.mxu0 %v792
        %802 = vmatmul.bf16.gmra.mxu0 %v788
        %v803 = vpop.f32.mrf.mxu0
        %v804 = vadd.f32 0.0, %v803
        %v805 = vpop.f32.mrf.mxu0
        %806 = vdwg.mxu0
        %v808 = vunpack.c.l.b16 %v746
        %v809 = vpack.c.b16 %v808, %v808
        %810 = vrot.lane.b32.xlu0 %v809, 120
        %v811 = vpop.permute.xlu0 %810
        %812 = vrot.lane.b32.xlu0 %v750, 88
        %v813 = vpop.permute.xlu0 %812
        %v815 = vsel %vm753, %v811, 0
        %v818 = vsel %vm753, %v813, 0
        %820 = vmatpush.bf16.xpose.msra.mxu0 0
        %821 = vmatpush.bf16.xpose.msra.mxu0 0
        %822 = vmatpush.bf16.xpose.msra.mxu0 0
        %823 = vmatpush.bf16.xpose.msra.mxu0 0
        %824 = vmatpush.bf16.xpose.msra.mxu0 0
        %825 = vmatpush.bf16.xpose.msra.mxu0 0
        %826 = vmatpush.bf16.xpose.msra.mxu0 0
        %827 = vmatpush.bf16.xpose.msra.mxu0 %v818
        %828 = vmatmul.bf16.gmra.mxu0 %v815
        %v829 = vpop.f32.mrf.mxu0
        %v830 = vadd.f32 %v700, %v829
        %v831 = vpop.f32.mrf.mxu0
        %832 = vdwg.mxu0
        %v833 = vsel %vm753, %v830, -inf
        %834 = vmax.xlane.f32.xlu0 %v833
        %v835 = vpop.xlane.xlu0 %834
        %v836 = vsub.f32 %v830, %v835
        %v837 = vmul.f32 %v836, 1.442695
        %v838 = vpow.pop %v837
        %v839 = vsel %vm753, %v838, 0.0
        %840 = vadd.xlane.f32.xlu0 %v839
        %v841 = vpop.xlane.xlu0 %840
        %v842 = vrcp.pop %v841
        %v843 = vmul.f32 %v838, %v842
        %v844 = vpack.c.bf16 %v843, %v843
        %845 = vrot.lane.b32.xlu0 %v750, 56
        %v846 = vpop.permute.xlu0 %845
        %v848 = vsel %vm753, %v844, 0
        %v851 = vsel %vm790, %v846, 0
        %853 = vmatpush.bf16.msra.mxu0 0
        %854 = vmatpush.bf16.msra.mxu0 0
        %855 = vmatpush.bf16.msra.mxu0 0
        %856 = vmatpush.bf16.msra.mxu0 0
        %857 = vmatpush.bf16.msra.mxu0 0
        %858 = vmatpush.bf16.msra.mxu0 0
        %859 = vmatpush.bf16.msra.mxu0 0
        %860 = vmatpush.bf16.msra.mxu0 %v851
        %861 = vmatmul.bf16.gmra.mxu0 %v848
        %v862 = vpop.f32.mrf.mxu0
        %v863 = vadd.f32 0.0, %v862
        %v864 = vpop.f32.mrf.mxu0
        %865 = vdwg.mxu0
        %866 = vrot.lane.b32.xlu0 %v809, 112
        %v867 = vpop.permute.xlu0 %866
        %868 = vrot.lane.b32.xlu0 %v750, 80
        %v869 = vpop.permute.xlu0 %868
        %v871 = vsel %vm753, %v867, 0
        %v874 = vsel %vm753, %v869, 0
        %876 = vmatpush.bf16.xpose.msra.mxu0 0
        %877 = vmatpush.bf16.xpose.msra.mxu0 0
        %878 = vmatpush.bf16.xpose.msra.mxu0 0
        %879 = vmatpush.bf16.xpose.msra.mxu0 0
        %880 = vmatpush.bf16.xpose.msra.mxu0 0
        %881 = vmatpush.bf16.xpose.msra.mxu0 0
        %882 = vmatpush.bf16.xpose.msra.mxu0 0
        %883 = vmatpush.bf16.xpose.msra.mxu0 %v874
        %884 = vmatmul.bf16.gmra.mxu0 %v871
        %v885 = vpop.f32.mrf.mxu0
        %v886 = vadd.f32 %v700, %v885
        %v887 = vpop.f32.mrf.mxu0
        %888 = vdwg.mxu0
        %v889 = vsel %vm753, %v886, -inf
        %890 = vmax.xlane.f32.xlu0 %v889
        %v891 = vpop.xlane.xlu0 %890
        %v892 = vsub.f32 %v886, %v891
        %v893 = vmul.f32 %v892, 1.442695
        %v894 = vpow.pop %v893
        %v895 = vsel %vm753, %v894, 0.0
        %896 = vadd.xlane.f32.xlu0 %v895
        %v897 = vpop.xlane.xlu0 %896
        %v898 = vrcp.pop %v897
        %v899 = vmul.f32 %v894, %v898
        %v900 = vpack.c.bf16 %v899, %v899
        %901 = vrot.lane.b32.xlu0 %v750, 48
        %v902 = vpop.permute.xlu0 %901
        %v904 = vsel %vm753, %v900, 0
        %v907 = vsel %vm790, %v902, 0
        %909 = vmatpush.bf16.msra.mxu0 0
        %910 = vmatpush.bf16.msra.mxu0 0
        %911 = vmatpush.bf16.msra.mxu0 0
        %912 = vmatpush.bf16.msra.mxu0 0
        %913 = vmatpush.bf16.msra.mxu0 0
        %914 = vmatpush.bf16.msra.mxu0 0
        %915 = vmatpush.bf16.msra.mxu0 0
        %916 = vmatpush.bf16.msra.mxu0 %v907
        %917 = vmatmul.bf16.gmra.mxu0 %v904
        %v918 = vpop.f32.mrf.mxu0
        %v919 = vadd.f32 0.0, %v918
        %v920 = vpop.f32.mrf.mxu0
        %921 = vdwg.mxu0
        %922 = vrot.lane.b32.xlu0 %v809, 104
        %v923 = vpop.permute.xlu0 %922
        %924 = vrot.lane.b32.xlu0 %v750, 72
        %v925 = vpop.permute.xlu0 %924
        %v927 = vsel %vm753, %v923, 0
        %v930 = vsel %vm753, %v925, 0
        %932 = vmatpush.bf16.xpose.msra.mxu0 0
        %933 = vmatpush.bf16.xpose.msra.mxu0 0
        %934 = vmatpush.bf16.xpose.msra.mxu0 0
        %935 = vmatpush.bf16.xpose.msra.mxu0 0
        %936 = vmatpush.bf16.xpose.msra.mxu0 0
        %937 = vmatpush.bf16.xpose.msra.mxu0 0
        %938 = vmatpush.bf16.xpose.msra.mxu0 0
        %939 = vmatpush.bf16.xpose.msra.mxu0 %v930
        %940 = vmatmul.bf16.gmra.mxu0 %v927
        %v941 = vpop.f32.mrf.mxu0
        %v942 = vadd.f32 %v700, %v941
        %v943 = vpop.f32.mrf.mxu0
        %944 = vdwg.mxu0
        %v945 = vsel %vm753, %v942, -inf
        %946 = vmax.xlane.f32.xlu0 %v945
        %v947 = vpop.xlane.xlu0 %946
        %v948 = vsub.f32 %v942, %v947
        %v949 = vmul.f32 %v948, 1.442695
        %v950 = vpow.pop %v949
        %v951 = vsel %vm753, %v950, 0.0
        %952 = vadd.xlane.f32.xlu0 %v951
        %v953 = vpop.xlane.xlu0 %952
        %v954 = vrcp.pop %v953
        %v955 = vmul.f32 %v950, %v954
        %v956 = vpack.c.bf16 %v955, %v955
        %957 = vrot.lane.b32.xlu0 %v750, 40
        %v958 = vpop.permute.xlu0 %957
        %v960 = vsel %vm753, %v956, 0
        %v963 = vsel %vm790, %v958, 0
        %965 = vmatpush.bf16.msra.mxu0 0
        %966 = vmatpush.bf16.msra.mxu0 0
        %967 = vmatpush.bf16.msra.mxu0 0
        %968 = vmatpush.bf16.msra.mxu0 0
        %969 = vmatpush.bf16.msra.mxu0 0
        %970 = vmatpush.bf16.msra.mxu0 0
        %971 = vmatpush.bf16.msra.mxu0 0
        %972 = vmatpush.bf16.msra.mxu0 %v963
        %973 = vmatmul.bf16.gmra.mxu0 %v960
        %v974 = vpop.f32.mrf.mxu0
        %v975 = vadd.f32 0.0, %v974
        %v976 = vpop.f32.mrf.mxu0
        %977 = vdwg.mxu0
        %979 = vrot.lane.b32.xlu0 %v863, 8
        %v980 = vpop.permute.xlu0 %979
        %983 = vrot.lane.b32.xlu0 %v919, 16
        %v984 = vpop.permute.xlu0 %983
        %987 = vrot.lane.b32.xlu0 %v975, 24
        %v988 = vpop.permute.xlu0 %987
        %v990 = vsel %vm753, %v804, %v980
        %vm991 = vcmask 130048
        %v992 = vsel %vm991, %v990, %v984
        %vm993 = vcmask 195584
        %v994 = vsel %vm993, %v992, %v988
        %v995 = vpack.c.bf16 %v994, %v994
        %v997 = vperm.slane %v712, 0
        %v1003 = vunpack.c.l.b16 %v708
        %v1004 = vunpack.c.l.b16 %v709
        %v1005 = vunpack.c.l.b16 %v710
        %v1006 = vunpack.c.l.b16 %v711
        %v1007 = vpack.c.b16 %v1004, %v1003
        %v1008 = vpack.c.b16 %v1006, %v1005
        %v1012 = vsel %vm728, %v995, 0
        %1014 = vmatpush.bf16.msra.mxu0 0
        %1015 = vmatpush.bf16.msra.mxu0 0
        %1016 = vmatpush.bf16.msra.mxu0 0
        %1017 = vmatpush.bf16.msra.mxu0 0
        %1018 = vmatpush.bf16.msra.mxu0 0
        %1019 = vmatpush.bf16.msra.mxu0 0
        %1020 = vmatpush.bf16.msra.mxu0 %v1008
        %1021 = vmatpush.bf16.msra.mxu0 %v1007
        %1022 = vmatmul.bf16.gmra.mxu0 %v1012
        %v1023 = vpop.f32.mrf.mxu0
        %v1024 = vadd.f32 %v997, %v1023
        %v1025 = vpop.f32.mrf.mxu0
        %1026 = vdwg.mxu0
        %v1027 = vadd.f32 %v697, %v1024
        %v1028 = vld [vmem:[%s16] sm:$0x1]
        %v1029 = vld [vmem:[%s17] sm:$0x1]
        %v1030 = vsel %vm728, %v1027, 0.0
        %1031 = vadd.xlane.f32.xlu0 %v1030
        %v1032 = vpop.xlane.xlu0 %1031
        %v1033 = vrcp.pop 32.0
        %v1034 = vmul.f32 32.0, %v1033
        %v1035 = vsub.f32 1.0, %v1034
        %v1036 = vmul.f32 %v1033, %v1035
        %v1037 = vadd.f32 %v1033, %v1036
        %vm1038 = vweird.f32 %v1033
        %v1039 = vsel %vm1038, %v1033, %v1037
        %v1040 = vmul.f32 %v1032, %v1039
        %v1041 = vsub.f32 %v1027, %v1040
        %v1042 = vmul.f32 %v1041, %v1041
        %v1043 = vsel %vm728, %v1042, 0.0
        %1044 = vadd.xlane.f32.xlu0 %v1043
        %v1045 = vpop.xlane.xlu0 %1044
        %v1046 = vmul.f32 %v1045, %v1039
        %v1047 = vadd.f32 %v1046, 1e-05
        %v1048 = vrsqrt.pop %v1047
        %v1049 = vmul.f32 %v1048, %v1047
        %v1050 = vmul.f32 %v1049, %v1048
        %v1051 = vmul.f32 0.5, %v1050
        %v1052 = vsub.f32 1.5, %v1051
        %v1053 = vmul.f32 %v1048, %v1052
        %vm1054 = vweird.f32 %v1047
        %vm1055 = vweird.f32 %v1048
        %vm1056 = vmor %vm1054, %vm1055
        %v1057 = vsel %vm1056, %v1048, %v1053
        %v1058 = vmul.f32 %v1041, %v1057
        %v1060 = vperm.slane %v1028, 0
        %v1062 = vmul.f32 %v1058, %v1060
        %v1064 = vperm.slane %v1029, 0
        %v1066 = vadd.f32 %v1062, %v1064
        %v1067 = vpack.c.bf16 %v1066, %v1066
        %v1068 = vld [vmem:[%s8] sm:$0xf]
        %v1069 = vld [vmem:[%s8 + $0x4] sm:$0xf]
        %v1070 = vld [vmem:[%s8 + $0x8] sm:$0xf]
        %v1071 = vld [vmem:[%s8 + $0xc] sm:$0xf]
        %v1072 = vld [vmem:[%s9] sm:$0x1]
        %v1073 = vld [vmem:[%s10] sm:$0xf]
        %v1074 = vld [vmem:[%s10 + $0x4] sm:$0xf]
        %v1075 = vld [vmem:[%s10 + $0x8] sm:$0xf]
        %v1076 = vld [vmem:[%s10 + $0xc] sm:$0xf]
        %v1077 = vld [vmem:[%s11] sm:$0x1]
        %v1079 = vperm.slane %v1072, 0
        %v1085 = vunpack.c.l.b16 %v1068
        %v1086 = vunpack.c.l.b16 %v1069
        %v1087 = vunpack.c.l.b16 %v1070
        %v1088 = vunpack.c.l.b16 %v1071
        %v1089 = vpack.c.b16 %v1086, %v1085
        %v1090 = vpack.c.b16 %v1088, %v1087
        %v1094 = vsel %vm728, %v1067, 0
        %1096 = vmatpush.bf16.msra.mxu0 0
        %1097 = vmatpush.bf16.msra.mxu0 0
        %1098 = vmatpush.bf16.msra.mxu0 0
        %1099 = vmatpush.bf16.msra.mxu0 0
        %1100 = vmatpush.bf16.msra.mxu0 0
        %1101 = vmatpush.bf16.msra.mxu0 0
        %1102 = vmatpush.bf16.msra.mxu0 %v1090
        %1103 = vmatpush.bf16.msra.mxu0 %v1089
        %1104 = vmatmul.bf16.gmra.mxu0 %v1094
        %v1105 = vpop.f32.mrf.mxu0
        %v1106 = vadd.f32 %v1079, %v1105
        %v1107 = vpop.f32.mrf.mxu0
        %1108 = vdwg.mxu0
        %1109 = vrot.lane.b32.xlu0 %v1089, 96
        %v1110 = vpop.permute.xlu0 %1109
        %1111 = vrot.lane.b32.xlu0 %v1090, 96
        %v1112 = vpop.permute.xlu0 %1111
        %1115 = vrot.lane.b32.xlu0 %v1079, 96
        %v1116 = vpop.permute.xlu0 %1115
        %v1119 = vsel %vm728, %v699, 0
        %1121 = vmatpush.bf16.msra.mxu0 0
        %1122 = vmatpush.bf16.msra.mxu0 0
        %1123 = vmatpush.bf16.msra.mxu0 0
        %1124 = vmatpush.bf16.msra.mxu0 0
        %1125 = vmatpush.bf16.msra.mxu0 0
        %1126 = vmatpush.bf16.msra.mxu0 0
        %1127 = vmatpush.bf16.msra.mxu0 %v1112
        %1128 = vmatpush.bf16.msra.mxu0 %v1110
        %1129 = vmatmul.bf16.gmra.mxu0 %v1119
        %v1130 = vpop.f32.mrf.mxu0
        %v1131 = vadd.f32 %v1116, %v1130
        %v1132 = vpop.f32.mrf.mxu0
        %1133 = vdwg.mxu0
        %v1134 = vmul.f32 %v1106, 0.35355338
        %v1135 = vpack.c.bf16 %v1134, %v1134
        %v1136 = vpack.c.bf16 %v1131, %v1131
        %v1138 = vsel %vm753, %v1135, 0
        %v1141 = vsel %vm753, %v1136, 0
        %1143 = vmatpush.bf16.xpose.msra.mxu0 0
        %1144 = vmatpush.bf16.xpose.msra.mxu0 0
        %1145 = vmatpush.bf16.xpose.msra.mxu0 0
        %1146 = vmatpush.bf16.xpose.msra.mxu0 0
        %1147 = vmatpush.bf16.xpose.msra.mxu0 0
        %1148 = vmatpush.bf16.xpose.msra.mxu0 0
        %1149 = vmatpush.bf16.xpose.msra.mxu0 0
        %1150 = vmatpush.bf16.xpose.msra.mxu0 %v1141
        %1151 = vmatmul.bf16.gmra.mxu0 %v1138
        %v1152 = vpop.f32.mrf.mxu0
        %v1153 = vadd.f32 %v701, %v1152
        %v1154 = vpop.f32.mrf.mxu0
        %1155 = vdwg.mxu0
        %v1156 = vsel %vm753, %v1153, -inf
        %1157 = vmax.xlane.f32.xlu0 %v1156
        %v1158 = vpop.xlane.xlu0 %1157
        %v1159 = vsub.f32 %v1153, %v1158
        %v1160 = vmul.f32 %v1159, 1.442695
        %v1161 = vpow.pop %v1160
        %v1162 = vsel %vm753, %v1161, 0.0
        %1163 = vadd.xlane.f32.xlu0 %v1162
        %v1164 = vpop.xlane.xlu0 %1163
        %v1165 = vrcp.pop %v1164
        %v1166 = vmul.f32 %v1161, %v1165
        %v1167 = vpack.c.bf16 %v1166, %v1166
        %v1169 = vunpack.c.l.b16 %v1136
        %v1170 = vpack.c.b16 %v1169, %v1169
        %1171 = vrot.lane.b32.xlu0 %v1170, 96
        %v1172 = vpop.permute.xlu0 %1171
        %v1174 = vsel %vm753, %v1167, 0
        %v1177 = vsel %vm790, %v1172, 0
        %1179 = vmatpush.bf16.msra.mxu0 0
        %1180 = vmatpush.bf16.msra.mxu0 0
        %1181 = vmatpush.bf16.msra.mxu0 0
        %1182 = vmatpush.bf16.msra.mxu0 0
        %1183 = vmatpush.bf16.msra.mxu0 0
        %1184 = vmatpush.bf16.msra.mxu0 0
        %1185 = vmatpush.bf16.msra.mxu0 0
        %1186 = vmatpush.bf16.msra.mxu0 %v1177
        %1187 = vmatmul.bf16.gmra.mxu0 %v1174
        %v1188 = vpop.f32.mrf.mxu0
        %v1189 = vadd.f32 0.0, %v1188
        %v1190 = vpop.f32.mrf.mxu0
        %1191 = vdwg.mxu0
        %v1193 = vunpack.c.l.b16 %v1135
        %v1194 = vpack.c.b16 %v1193, %v1193
        %1195 = vrot.lane.b32.xlu0 %v1194, 120
        %v1196 = vpop.permute.xlu0 %1195
        %1197 = vrot.lane.b32.xlu0 %v1170, 120
        %v1198 = vpop.permute.xlu0 %1197
        %v1200 = vsel %vm753, %v1196, 0
        %v1203 = vsel %vm753, %v1198, 0
        %1205 = vmatpush.bf16.xpose.msra.mxu0 0
        %1206 = vmatpush.bf16.xpose.msra.mxu0 0
        %1207 = vmatpush.bf16.xpose.msra.mxu0 0
        %1208 = vmatpush.bf16.xpose.msra.mxu0 0
        %1209 = vmatpush.bf16.xpose.msra.mxu0 0
        %1210 = vmatpush.bf16.xpose.msra.mxu0 0
        %1211 = vmatpush.bf16.xpose.msra.mxu0 0
        %1212 = vmatpush.bf16.xpose.msra.mxu0 %v1203
        %1213 = vmatmul.bf16.gmra.mxu0 %v1200
        %v1214 = vpop.f32.mrf.mxu0
        %v1215 = vadd.f32 %v701, %v1214
        %v1216 = vpop.f32.mrf.mxu0
        %1217 = vdwg.mxu0
        %v1218 = vsel %vm753, %v1215, -inf
        %1219 = vmax.xlane.f32.xlu0 %v1218
        %v1220 = vpop.xlane.xlu0 %1219
        %v1221 = vsub.f32 %v1215, %v1220
        %v1222 = vmul.f32 %v1221, 1.442695
        %v1223 = vpow.pop %v1222
        %v1224 = vsel %vm753, %v1223, 0.0
        %1225 = vadd.xlane.f32.xlu0 %v1224
        %v1226 = vpop.xlane.xlu0 %1225
        %v1227 = vrcp.pop %v1226
        %v1228 = vmul.f32 %v1223, %v1227
        %v1229 = vpack.c.bf16 %v1228, %v1228
        %1230 = vrot.lane.b32.xlu0 %v1170, 88
        %v1231 = vpop.permute.xlu0 %1230
        %v1233 = vsel %vm753, %v1229, 0
        %v1236 = vsel %vm790, %v1231, 0
        %1238 = vmatpush.bf16.msra.mxu0 0
        %1239 = vmatpush.bf16.msra.mxu0 0
        %1240 = vmatpush.bf16.msra.mxu0 0
        %1241 = vmatpush.bf16.msra.mxu0 0
        %1242 = vmatpush.bf16.msra.mxu0 0
        %1243 = vmatpush.bf16.msra.mxu0 0
        %1244 = vmatpush.bf16.msra.mxu0 0
        %1245 = vmatpush.bf16.msra.mxu0 %v1236
        %1246 = vmatmul.bf16.gmra.mxu0 %v1233
        %v1247 = vpop.f32.mrf.mxu0
        %v1248 = vadd.f32 0.0, %v1247
        %v1249 = vpop.f32.mrf.mxu0
        %1250 = vdwg.mxu0
        %1251 = vrot.lane.b32.xlu0 %v1194, 112
        %v1252 = vpop.permute.xlu0 %1251
        %1253 = vrot.lane.b32.xlu0 %v1170, 112
        %v1254 = vpop.permute.xlu0 %1253
        %v1256 = vsel %vm753, %v1252, 0
        %v1259 = vsel %vm753, %v1254, 0
        %1261 = vmatpush.bf16.xpose.msra.mxu0 0
        %1262 = vmatpush.bf16.xpose.msra.mxu0 0
        %1263 = vmatpush.bf16.xpose.msra.mxu0 0
        %1264 = vmatpush.bf16.xpose.msra.mxu0 0
        %1265 = vmatpush.bf16.xpose.msra.mxu0 0
        %1266 = vmatpush.bf16.xpose.msra.mxu0 0
        %1267 = vmatpush.bf16.xpose.msra.mxu0 0
        %1268 = vmatpush.bf16.xpose.msra.mxu0 %v1259
        %1269 = vmatmul.bf16.gmra.mxu0 %v1256
        %v1270 = vpop.f32.mrf.mxu0
        %v1271 = vadd.f32 %v701, %v1270
        %v1272 = vpop.f32.mrf.mxu0
        %1273 = vdwg.mxu0
        %v1274 = vsel %vm753, %v1271, -inf
        %1275 = vmax.xlane.f32.xlu0 %v1274
        %v1276 = vpop.xlane.xlu0 %1275
        %v1277 = vsub.f32 %v1271, %v1276
        %v1278 = vmul.f32 %v1277, 1.442695
        %v1279 = vpow.pop %v1278
        %v1280 = vsel %vm753, %v1279, 0.0
        %1281 = vadd.xlane.f32.xlu0 %v1280
        %v1282 = vpop.xlane.xlu0 %1281
        %v1283 = vrcp.pop %v1282
        %v1284 = vmul.f32 %v1279, %v1283
        %v1285 = vpack.c.bf16 %v1284, %v1284
        %1286 = vrot.lane.b32.xlu0 %v1170, 80
        %v1287 = vpop.permute.xlu0 %1286
        %v1289 = vsel %vm753, %v1285, 0
        %v1292 = vsel %vm790, %v1287, 0
        %1294 = vmatpush.bf16.msra.mxu0 0
        %1295 = vmatpush.bf16.msra.mxu0 0
        %1296 = vmatpush.bf16.msra.mxu0 0
        %1297 = vmatpush.bf16.msra.mxu0 0
        %1298 = vmatpush.bf16.msra.mxu0 0
        %1299 = vmatpush.bf16.msra.mxu0 0
        %1300 = vmatpush.bf16.msra.mxu0 0
        %1301 = vmatpush.bf16.msra.mxu0 %v1292
        %1302 = vmatmul.bf16.gmra.mxu0 %v1289
        %v1303 = vpop.f32.mrf.mxu0
        %v1304 = vadd.f32 0.0, %v1303
        %v1305 = vpop.f32.mrf.mxu0
        %1306 = vdwg.mxu0
        %1307 = vrot.lane.b32.xlu0 %v1194, 104
        %v1308 = vpop.permute.xlu0 %1307
        %1309 = vrot.lane.b32.xlu0 %v1170, 104
        %v1310 = vpop.permute.xlu0 %1309
        %v1312 = vsel %vm753, %v1308, 0
        %v1315 = vsel %vm753, %v1310, 0
        %1317 = vmatpush.bf16.xpose.msra.mxu0 0
        %1318 = vmatpush.bf16.xpose.msra.mxu0 0
        %1319 = vmatpush.bf16.xpose.msra.mxu0 0
        %1320 = vmatpush.bf16.xpose.msra.mxu0 0
        %1321 = vmatpush.bf16.xpose.msra.mxu0 0
        %1322 = vmatpush.bf16.xpose.msra.mxu0 0
        %1323 = vmatpush.bf16.xpose.msra.mxu0 0
        %1324 = vmatpush.bf16.xpose.msra.mxu0 %v1315
        %1325 = vmatmul.bf16.gmra.mxu0 %v1312
        %v1326 = vpop.f32.mrf.mxu0
        %v1327 = vadd.f32 %v701, %v1326
        %v1328 = vpop.f32.mrf.mxu0
        %1329 = vdwg.mxu0
        %v1330 = vsel %vm753, %v1327, -inf
        %1331 = vmax.xlane.f32.xlu0 %v1330
        %v1332 = vpop.xlane.xlu0 %1331
        %v1333 = vsub.f32 %v1327, %v1332
        %v1334 = vmul.f32 %v1333, 1.442695
        %v1335 = vpow.pop %v1334
        %v1336 = vsel %vm753, %v1335, 0.0
        %1337 = vadd.xlane.f32.xlu0 %v1336
        %v1338 = vpop.xlane.xlu0 %1337
        %v1339 = vrcp.pop %v1338
        %v1340 = vmul.f32 %v1335, %v1339
        %v1341 = vpack.c.bf16 %v1340, %v1340
        %1342 = vrot.lane.b32.xlu0 %v1170, 72
        %v1343 = vpop.permute.xlu0 %1342
        %v1345 = vsel %vm753, %v1341, 0
        %v1348 = vsel %vm790, %v1343, 0
        %1350 = vmatpush.bf16.msra.mxu0 0
        %1351 = vmatpush.bf16.msra.mxu0 0
        %1352 = vmatpush.bf16.msra.mxu0 0
        %1353 = vmatpush.bf16.msra.mxu0 0
        %1354 = vmatpush.bf16.msra.mxu0 0
        %1355 = vmatpush.bf16.msra.mxu0 0
        %1356 = vmatpush.bf16.msra.mxu0 0
        %1357 = vmatpush.bf16.msra.mxu0 %v1348
        %1358 = vmatmul.bf16.gmra.mxu0 %v1345
        %v1359 = vpop.f32.mrf.mxu0
        %v1360 = vadd.f32 0.0, %v1359
        %v1361 = vpop.f32.mrf.mxu0
        %1362 = vdwg.mxu0
        %1364 = vrot.lane.b32.xlu0 %v1248, 8
        %v1365 = vpop.permute.xlu0 %1364
        %1368 = vrot.lane.b32.xlu0 %v1304, 16
        %v1369 = vpop.permute.xlu0 %1368
        %1372 = vrot.lane.b32.xlu0 %v1360, 24
        %v1373 = vpop.permute.xlu0 %1372
        %v1375 = vsel %vm753, %v1189, %v1365
        %v1376 = vsel %vm991, %v1375, %v1369
        %v1377 = vsel %vm993, %v1376, %v1373
        %v1378 = vpack.c.bf16 %v1377, %v1377
        %v1380 = vperm.slane %v1077, 0
        %v1386 = vunpack.c.l.b16 %v1073
        %v1387 = vunpack.c.l.b16 %v1074
        %v1388 = vunpack.c.l.b16 %v1075
        %v1389 = vunpack.c.l.b16 %v1076
        %v1390 = vpack.c.b16 %v1387, %v1386
        %v1391 = vpack.c.b16 %v1389, %v1388
        %v1395 = vsel %vm728, %v1378, 0
        %1397 = vmatpush.bf16.msra.mxu0 0
        %1398 = vmatpush.bf16.msra.mxu0 0
        %1399 = vmatpush.bf16.msra.mxu0 0
        %1400 = vmatpush.bf16.msra.mxu0 0
        %1401 = vmatpush.bf16.msra.mxu0 0
        %1402 = vmatpush.bf16.msra.mxu0 0
        %1403 = vmatpush.bf16.msra.mxu0 %v1391
        %1404 = vmatpush.bf16.msra.mxu0 %v1390
        %1405 = vmatmul.bf16.gmra.mxu0 %v1395
        %v1406 = vpop.f32.mrf.mxu0
        %v1407 = vadd.f32 %v1380, %v1406
        %v1408 = vpop.f32.mrf.mxu0
        %1409 = vdwg.mxu0
        %v1410 = vadd.f32 %v1066, %v1407
        %v1411 = vld [vmem:[%s18] sm:$0x1]
        %v1412 = vld [vmem:[%s19] sm:$0x1]
        %v1413 = vsel %vm728, %v1410, 0.0
        %1414 = vadd.xlane.f32.xlu0 %v1413
        %v1415 = vpop.xlane.xlu0 %1414
        %v1416 = vmul.f32 %v1415, %v1039
        %v1417 = vsub.f32 %v1410, %v1416
        %v1418 = vmul.f32 %v1417, %v1417
        %v1419 = vsel %vm728, %v1418, 0.0
        %1420 = vadd.xlane.f32.xlu0 %v1419
        %v1421 = vpop.xlane.xlu0 %1420
        %v1422 = vmul.f32 %v1421, %v1039
        %v1423 = vadd.f32 %v1422, 1e-05
        %v1424 = vrsqrt.pop %v1423
        %v1425 = vmul.f32 %v1424, %v1423
        %v1426 = vmul.f32 %v1425, %v1424
        %v1427 = vmul.f32 0.5, %v1426
        %v1428 = vsub.f32 1.5, %v1427
        %v1429 = vmul.f32 %v1424, %v1428
        %vm1430 = vweird.f32 %v1423
        %vm1431 = vweird.f32 %v1424
        %vm1432 = vmor %vm1430, %vm1431
        %v1433 = vsel %vm1432, %v1424, %v1429
        %v1434 = vmul.f32 %v1417, %v1433
        %v1436 = vperm.slane %v1411, 0
        %v1438 = vmul.f32 %v1434, %v1436
        %v1440 = vperm.slane %v1412, 0
        %v1442 = vadd.f32 %v1438, %v1440
        %v1443 = vpack.c.bf16 %v1442, %v1442
        %v1444 = vld [vmem:[%s12] sm:$0xf]
        %v1445 = vld [vmem:[%s12 + $0x4] sm:$0xf]
        %v1446 = vld [vmem:[%s12 + $0x8] sm:$0xf]
        %v1447 = vld [vmem:[%s12 + $0xc] sm:$0xf]
        %v1448 = vld [vmem:[%s13] sm:$0x1]
        %v1450 = vperm.slane %v1448, 0
        %v1456 = vunpack.c.l.b16 %v1444
        %v1457 = vunpack.c.l.b16 %v1445
        %v1458 = vunpack.c.l.b16 %v1446
        %v1459 = vunpack.c.l.b16 %v1447
        %v1460 = vpack.c.b16 %v1457, %v1456
        %v1461 = vpack.c.b16 %v1459, %v1458
        %v1465 = vsel %vm728, %v1443, 0
        %1467 = vmatpush.bf16.msra.mxu0 0
        %1468 = vmatpush.bf16.msra.mxu0 0
        %1469 = vmatpush.bf16.msra.mxu0 0
        %1470 = vmatpush.bf16.msra.mxu0 0
        %1471 = vmatpush.bf16.msra.mxu0 0
        %1472 = vmatpush.bf16.msra.mxu0 0
        %1473 = vmatpush.bf16.msra.mxu0 %v1461
        %1474 = vmatpush.bf16.msra.mxu0 %v1460
        %1475 = vmatmul.bf16.gmra.mxu0 %v1465
        %v1476 = vpop.f32.mrf.mxu0
        %v1477 = vadd.f32 %v1450, %v1476
        %v1478 = vpop.f32.mrf.mxu0
        %1479 = vdwg.mxu0
        %v1480 = vmax.f32 %v1477, 0.0
        %v1481 = vpack.c.bf16 %v1480, %v1480
        %v1482 = vld [vmem:[%s14] sm:$0xf]
        %v1483 = vld [vmem:[%s14 + $0x4] sm:$0xf]
        %v1484 = vld [vmem:[%s14 + $0x8] sm:$0xf]
        %v1485 = vld [vmem:[%s14 + $0xc] sm:$0xf]
        %v1486 = vld [vmem:[%s14 + $0x10] sm:$0xf]
        %v1487 = vld [vmem:[%s14 + $0x14] sm:$0xf]
        %v1488 = vld [vmem:[%s14 + $0x18] sm:$0xf]
        %v1489 = vld [vmem:[%s14 + $0x1c] sm:$0xf]
        %v1490 = vld [vmem:[%s15] sm:$0x1]
        %v1492 = vperm.slane %v1490, 0
        %v1502 = vunpack.c.l.b16 %v1482
        %v1503 = vunpack.c.l.b16 %v1483
        %v1504 = vunpack.c.l.b16 %v1484
        %v1505 = vunpack.c.l.b16 %v1485
        %v1506 = vunpack.c.l.b16 %v1486
        %v1507 = vunpack.c.l.b16 %v1487
        %v1508 = vunpack.c.l.b16 %v1488
        %v1509 = vunpack.c.l.b16 %v1489
        %v1510 = vpack.c.b16 %v1503, %v1502
        %v1511 = vpack.c.b16 %v1505, %v1504
        %v1512 = vpack.c.b16 %v1507, %v1506
        %v1513 = vpack.c.b16 %v1509, %v1508
        %vm1518 = vcmask 523264
        %v1520 = vsel %vm1518, %v1481, 0
        %1522 = vmatpush.bf16.msra.mxu0 0
        %1523 = vmatpush.bf16.msra.mxu0 0
        %1524 = vmatpush.bf16.msra.mxu0 0
        %1525 = vmatpush.bf16.msra.mxu0 0
        %1526 = vmatpush.bf16.msra.mxu0 %v1513
        %1527 = vmatpush.bf16.msra.mxu0 %v1512
        %1528 = vmatpush.bf16.msra.mxu0 %v1511
        %1529 = vmatpush.bf16.msra.mxu0 %v1510
        %1530 = vmatmul.bf16.gmra.mxu0 %v1520
        %v1531 = vpop.f32.mrf.mxu0
        %v1532 = vadd.f32 %v1492, %v1531
        %v1533 = vpop.f32.mrf.mxu0
        %1534 = vdwg.mxu0
        %v1535 = vadd.f32 %v1442, %v1532
        %v1536 = vld [vmem:[%s20] sm:$0x1]
        %v1537 = vld [vmem:[%s21] sm:$0x1]
        %v1538 = vsel %vm728, %v1535, 0.0
        %1539 = vadd.xlane.f32.xlu0 %v1538
        %v1540 = vpop.xlane.xlu0 %1539
        %v1541 = vmul.f32 %v1540, %v1039
        %v1542 = vsub.f32 %v1535, %v1541
        %v1543 = vmul.f32 %v1542, %v1542
        %v1544 = vsel %vm728, %v1543, 0.0
        %1545 = vadd.xlane.f32.xlu0 %v1544
        %v1546 = vpop.xlane.xlu0 %1545
        %v1547 = vmul.f32 %v1546, %v1039
        %v1548 = vadd.f32 %v1547, 1e-05
        %v1549 = vrsqrt.pop %v1548
        %v1550 = vmul.f32 %v1549, %v1548
        %v1551 = vmul.f32 %v1550, %v1549
        %v1552 = vmul.f32 0.5, %v1551
        %v1553 = vsub.f32 1.5, %v1552
        %v1554 = vmul.f32 %v1549, %v1553
        %vm1555 = vweird.f32 %v1548
        %vm1556 = vweird.f32 %v1549
        %vm1557 = vmor %vm1555, %vm1556
        %v1558 = vsel %vm1557, %v1549, %v1554
        %v1559 = vmul.f32 %v1542, %v1558
        %v1561 = vperm.slane %v1536, 0
        %v1563 = vmul.f32 %v1559, %v1561
        %v1565 = vperm.slane %v1537, 0
        %v1567 = vadd.f32 %v1563, %v1565
        %v1568 = vpack.c.bf16 %v1567, %v1567
        %s1569 = scalar_lea.vmem %s4, 16
        %v1570 = vld [vmem:[%s1569] sm:$0xf]
        %v1571 = vld [vmem:[%s1569 + $0x4] sm:$0xf]
        %v1572 = vld [vmem:[%s1569 + $0x8] sm:$0xf]
        %v1573 = vld [vmem:[%s1569 + $0xc] sm:$0xf]
        %s1574 = scalar_lea.vmem %s5, 1
        %v1575 = vld [vmem:[%s1574] sm:$0x1]
        %s1576 = scalar_lea.vmem %s6, 16
        %v1577 = vld [vmem:[%s1576] sm:$0xf]
        %v1578 = vld [vmem:[%s1576 + $0x4] sm:$0xf]
        %v1579 = vld [vmem:[%s1576 + $0x8] sm:$0xf]
        %v1580 = vld [vmem:[%s1576 + $0xc] sm:$0xf]
        %s1581 = scalar_lea.vmem %s7, 1
        %v1582 = vld [vmem:[%s1581] sm:$0x1]
        %v1584 = vperm.slane %v1575, 0
        %v1590 = vunpack.c.l.b16 %v1570
        %v1591 = vunpack.c.l.b16 %v1571
        %v1592 = vunpack.c.l.b16 %v1572
        %v1593 = vunpack.c.l.b16 %v1573
        %v1594 = vpack.c.b16 %v1591, %v1590
        %v1595 = vpack.c.b16 %v1593, %v1592
        %v1599 = vsel %vm728, %v1568, 0
        %1601 = vmatpush.bf16.msra.mxu0 0
        %1602 = vmatpush.bf16.msra.mxu0 0
        %1603 = vmatpush.bf16.msra.mxu0 0
        %1604 = vmatpush.bf16.msra.mxu0 0
        %1605 = vmatpush.bf16.msra.mxu0 0
        %1606 = vmatpush.bf16.msra.mxu0 0
        %1607 = vmatpush.bf16.msra.mxu0 %v1595
        %1608 = vmatpush.bf16.msra.mxu0 %v1594
        %1609 = vmatmul.bf16.gmra.mxu0 %v1599
        %v1610 = vpop.f32.mrf.mxu0
        %v1611 = vadd.f32 %v1584, %v1610
        %v1612 = vpop.f32.mrf.mxu0
        %1613 = vdwg.mxu0
        %v1614 = vmul.f32 %v1611, 0.35355338
        %v1615 = vpack.c.bf16 %v1614, %v1614
        %v1616 = vpack.c.bf16 %v1611, %v1611
        %v1618 = vunpack.c.l.b16 %v1616
        %v1619 = vpack.c.b16 %v1618, %v1618
        %1620 = vrot.lane.b32.xlu0 %v1619, 96
        %v1621 = vpop.permute.xlu0 %1620
        %v1623 = vsel %vm753, %v1615, 0
        %v1626 = vsel %vm753, %v1621, 0
        %1628 = vmatpush.bf16.xpose.msra.mxu0 0
        %1629 = vmatpush.bf16.xpose.msra.mxu0 0
        %1630 = vmatpush.bf16.xpose.msra.mxu0 0
        %1631 = vmatpush.bf16.xpose.msra.mxu0 0
        %1632 = vmatpush.bf16.xpose.msra.mxu0 0
        %1633 = vmatpush.bf16.xpose.msra.mxu0 0
        %1634 = vmatpush.bf16.xpose.msra.mxu0 0
        %1635 = vmatpush.bf16.xpose.msra.mxu0 %v1626
        %1636 = vmatmul.bf16.gmra.mxu0 %v1623
        %v1637 = vpop.f32.mrf.mxu0
        %v1638 = vadd.f32 %v700, %v1637
        %v1639 = vpop.f32.mrf.mxu0
        %1640 = vdwg.mxu0
        %v1641 = vsel %vm753, %v1638, -inf
        %1642 = vmax.xlane.f32.xlu0 %v1641
        %v1643 = vpop.xlane.xlu0 %1642
        %v1644 = vsub.f32 %v1638, %v1643
        %v1645 = vmul.f32 %v1644, 1.442695
        %v1646 = vpow.pop %v1645
        %v1647 = vsel %vm753, %v1646, 0.0
        %1648 = vadd.xlane.f32.xlu0 %v1647
        %v1649 = vpop.xlane.xlu0 %1648
        %v1650 = vrcp.pop %v1649
        %v1651 = vmul.f32 %v1646, %v1650
        %v1652 = vpack.c.bf16 %v1651, %v1651
        %1653 = vrot.lane.b32.xlu0 %v1619, 64
        %v1654 = vpop.permute.xlu0 %1653
        %v1656 = vsel %vm753, %v1652, 0
        %v1659 = vsel %vm790, %v1654, 0
        %1661 = vmatpush.bf16.msra.mxu0 0
        %1662 = vmatpush.bf16.msra.mxu0 0
        %1663 = vmatpush.bf16.msra.mxu0 0
        %1664 = vmatpush.bf16.msra.mxu0 0
        %1665 = vmatpush.bf16.msra.mxu0 0
        %1666 = vmatpush.bf16.msra.mxu0 0
        %1667 = vmatpush.bf16.msra.mxu0 0
        %1668 = vmatpush.bf16.msra.mxu0 %v1659
        %1669 = vmatmul.bf16.gmra.mxu0 %v1656
        %v1670 = vpop.f32.mrf.mxu0
        %v1671 = vadd.f32 0.0, %v1670
        %v1672 = vpop.f32.mrf.mxu0
        %1673 = vdwg.mxu0
        %v1675 = vunpack.c.l.b16 %v1615
        %v1676 = vpack.c.b16 %v1675, %v1675
        %1677 = vrot.lane.b32.xlu0 %v1676, 120
        %v1678 = vpop.permute.xlu0 %1677
        %1679 = vrot.lane.b32.xlu0 %v1619, 88
        %v1680 = vpop.permute.xlu0 %1679
        %v1682 = vsel %vm753, %v1678, 0
        %v1685 = vsel %vm753, %v1680, 0
        %1687 = vmatpush.bf16.xpose.msra.mxu0 0
        %1688 = vmatpush.bf16.xpose.msra.mxu0 0
        %1689 = vmatpush.bf16.xpose.msra.mxu0 0
        %1690 = vmatpush.bf16.xpose.msra.mxu0 0
        %1691 = vmatpush.bf16.xpose.msra.mxu0 0
        %1692 = vmatpush.bf16.xpose.msra.mxu0 0
        %1693 = vmatpush.bf16.xpose.msra.mxu0 0
        %1694 = vmatpush.bf16.xpose.msra.mxu0 %v1685
        %1695 = vmatmul.bf16.gmra.mxu0 %v1682
        %v1696 = vpop.f32.mrf.mxu0
        %v1697 = vadd.f32 %v700, %v1696
        %v1698 = vpop.f32.mrf.mxu0
        %1699 = vdwg.mxu0
        %v1700 = vsel %vm753, %v1697, -inf
        %1701 = vmax.xlane.f32.xlu0 %v1700
        %v1702 = vpop.xlane.xlu0 %1701
        %v1703 = vsub.f32 %v1697, %v1702
        %v1704 = vmul.f32 %v1703, 1.442695
        %v1705 = vpow.pop %v1704
        %v1706 = vsel %vm753, %v1705, 0.0
        %1707 = vadd.xlane.f32.xlu0 %v1706
        %v1708 = vpop.xlane.xlu0 %1707
        %v1709 = vrcp.pop %v1708
        %v1710 = vmul.f32 %v1705, %v1709
        %v1711 = vpack.c.bf16 %v1710, %v1710
        %1712 = vrot.lane.b32.xlu0 %v1619, 56
        %v1713 = vpop.permute.xlu0 %1712
        %v1715 = vsel %vm753, %v1711, 0
        %v1718 = vsel %vm790, %v1713, 0
        %1720 = vmatpush.bf16.msra.mxu0 0
        %1721 = vmatpush.bf16.msra.mxu0 0
        %1722 = vmatpush.bf16.msra.mxu0 0
        %1723 = vmatpush.bf16.msra.mxu0 0
        %1724 = vmatpush.bf16.msra.mxu0 0
        %1725 = vmatpush.bf16.msra.mxu0 0
        %1726 = vmatpush.bf16.msra.mxu0 0
        %1727 = vmatpush.bf16.msra.mxu0 %v1718
        %1728 = vmatmul.bf16.gmra.mxu0 %v1715
        %v1729 = vpop.f32.mrf.mxu0
        %v1730 = vadd.f32 0.0, %v1729
        %v1731 = vpop.f32.mrf.mxu0
        %1732 = vdwg.mxu0
        %1733 = vrot.lane.b32.xlu0 %v1676, 112
        %v1734 = vpop.permute.xlu0 %1733
        %1735 = vrot.lane.b32.xlu0 %v1619, 80
        %v1736 = vpop.permute.xlu0 %1735
        %v1738 = vsel %vm753, %v1734, 0
        %v1741 = vsel %vm753, %v1736, 0
        %1743 = vmatpush.bf16.xpose.msra.mxu0 0
        %1744 = vmatpush.bf16.xpose.msra.mxu0 0
        %1745 = vmatpush.bf16.xpose.msra.mxu0 0
        %1746 = vmatpush.bf16.xpose.msra.mxu0 0
        %1747 = vmatpush.bf16.xpose.msra.mxu0 0
        %1748 = vmatpush.bf16.xpose.msra.mxu0 0
        %1749 = vmatpush.bf16.xpose.msra.mxu0 0
        %1750 = vmatpush.bf16.xpose.msra.mxu0 %v1741
        %1751 = vmatmul.bf16.gmra.mxu0 %v1738
        %v1752 = vpop.f32.mrf.mxu0
        %v1753 = vadd.f32 %v700, %v1752
        %v1754 = vpop.f32.mrf.mxu0
        %1755 = vdwg.mxu0
        %v1756 = vsel %vm753, %v1753, -inf
        %1757 = vmax.xlane.f32.xlu0 %v1756
        %v1758 = vpop.xlane.xlu0 %1757
        %v1759 = vsub.f32 %v1753, %v1758
        %v1760 = vmul.f32 %v1759, 1.442695
        %v1761 = vpow.pop %v1760
        %v1762 = vsel %vm753, %v1761, 0.0
        %1763 = vadd.xlane.f32.xlu0 %v1762
        %v1764 = vpop.xlane.xlu0 %1763
        %v1765 = vrcp.pop %v1764
        %v1766 = vmul.f32 %v1761, %v1765
        %v1767 = vpack.c.bf16 %v1766, %v1766
        %1768 = vrot.lane.b32.xlu0 %v1619, 48
        %v1769 = vpop.permute.xlu0 %1768
        %v1771 = vsel %vm753, %v1767, 0
        %v1774 = vsel %vm790, %v1769, 0
        %1776 = vmatpush.bf16.msra.mxu0 0
        %1777 = vmatpush.bf16.msra.mxu0 0
        %1778 = vmatpush.bf16.msra.mxu0 0
        %1779 = vmatpush.bf16.msra.mxu0 0
        %1780 = vmatpush.bf16.msra.mxu0 0
        %1781 = vmatpush.bf16.msra.mxu0 0
        %1782 = vmatpush.bf16.msra.mxu0 0
        %1783 = vmatpush.bf16.msra.mxu0 %v1774
        %1784 = vmatmul.bf16.gmra.mxu0 %v1771
        %v1785 = vpop.f32.mrf.mxu0
        %v1786 = vadd.f32 0.0, %v1785
        %v1787 = vpop.f32.mrf.mxu0
        %1788 = vdwg.mxu0
        %1789 = vrot.lane.b32.xlu0 %v1676, 104
        %v1790 = vpop.permute.xlu0 %1789
        %1791 = vrot.lane.b32.xlu0 %v1619, 72
        %v1792 = vpop.permute.xlu0 %1791
        %v1794 = vsel %vm753, %v1790, 0
        %v1797 = vsel %vm753, %v1792, 0
        %1799 = vmatpush.bf16.xpose.msra.mxu0 0
        %1800 = vmatpush.bf16.xpose.msra.mxu0 0
        %1801 = vmatpush.bf16.xpose.msra.mxu0 0
        %1802 = vmatpush.bf16.xpose.msra.mxu0 0
        %1803 = vmatpush.bf16.xpose.msra.mxu0 0
        %1804 = vmatpush.bf16.xpose.msra.mxu0 0
        %1805 = vmatpush.bf16.xpose.msra.mxu0 0
        %1806 = vmatpush.bf16.xpose.msra.mxu0 %v1797
        %1807 = vmatmul.bf16.gmra.mxu0 %v1794
        %v1808 = vpop.f32.mrf.mxu0
        %v1809 = vadd.f32 %v700, %v1808
        %v1810 = vpop.f32.mrf.mxu0
        %1811 = vdwg.mxu0
        %v1812 = vsel %vm753, %v1809, -inf
        %1813 = vmax.xlane.f32.xlu0 %v1812
        %v1814 = vpop.xlane.xlu0 %1813
        %v1815 = vsub.f32 %v1809, %v1814
        %v1816 = vmul.f32 %v1815, 1.442695
        %v1817 = vpow.pop %v1816
        %v1818 = vsel %vm753, %v1817, 0.0
        %1819 = vadd.xlane.f32.xlu0 %v1818
        %v1820 = vpop.xlane.xlu0 %1819
        %v1821 = vrcp.pop %v1820
        %v1822 = vmul.f32 %v1817, %v1821
        %v1823 = vpack.c.bf16 %v1822, %v1822
        %1824 = vrot.lane.b32.xlu0 %v1619, 40
        %v1825 = vpop.permute.xlu0 %1824
        %v1827 = vsel %vm753, %v1823, 0
        %v1830 = vsel %vm790, %v1825, 0
        %1832 = vmatpush.bf16.msra.mxu0 0
        %1833 = vmatpush.bf16.msra.mxu0 0
        %1834 = vmatpush.bf16.msra.mxu0 0
        %1835 = vmatpush.bf16.msra.mxu0 0
        %1836 = vmatpush.bf16.msra.mxu0 0
        %1837 = vmatpush.bf16.msra.mxu0 0
        %1838 = vmatpush.bf16.msra.mxu0 0
        %1839 = vmatpush.bf16.msra.mxu0 %v1830
        %1840 = vmatmul.bf16.gmra.mxu0 %v1827
        %v1841 = vpop.f32.mrf.mxu0
        %v1842 = vadd.f32 0.0, %v1841
        %v1843 = vpop.f32.mrf.mxu0
        %1844 = vdwg.mxu0
        %1846 = vrot.lane.b32.xlu0 %v1730, 8
        %v1847 = vpop.permute.xlu0 %1846
        %1850 = vrot.lane.b32.xlu0 %v1786, 16
        %v1851 = vpop.permute.xlu0 %1850
        %1854 = vrot.lane.b32.xlu0 %v1842, 24
        %v1855 = vpop.permute.xlu0 %1854
        %v1857 = vsel %vm753, %v1671, %v1847
        %v1858 = vsel %vm991, %v1857, %v1851
        %v1859 = vsel %vm993, %v1858, %v1855
        %v1860 = vpack.c.bf16 %v1859, %v1859
        %v1862 = vperm.slane %v1582, 0
        %v1868 = vunpack.c.l.b16 %v1577
        %v1869 = vunpack.c.l.b16 %v1578
        %v1870 = vunpack.c.l.b16 %v1579
        %v1871 = vunpack.c.l.b16 %v1580
        %v1872 = vpack.c.b16 %v1869, %v1868
        %v1873 = vpack.c.b16 %v1871, %v1870
        %v1877 = vsel %vm728, %v1860, 0
        %1879 = vmatpush.bf16.msra.mxu0 0
        %1880 = vmatpush.bf16.msra.mxu0 0
        %1881 = vmatpush.bf16.msra.mxu0 0
        %1882 = vmatpush.bf16.msra.mxu0 0
        %1883 = vmatpush.bf16.msra.mxu0 0
        %1884 = vmatpush.bf16.msra.mxu0 0
        %1885 = vmatpush.bf16.msra.mxu0 %v1873
        %1886 = vmatpush.bf16.msra.mxu0 %v1872
        %1887 = vmatmul.bf16.gmra.mxu0 %v1877
        %v1888 = vpop.f32.mrf.mxu0
        %v1889 = vadd.f32 %v1862, %v1888
        %v1890 = vpop.f32.mrf.mxu0
        %1891 = vdwg.mxu0
        %v1892 = vadd.f32 %v1567, %v1889
        %s1893 = scalar_lea.vmem %s16, 1
        %v1894 = vld [vmem:[%s1893] sm:$0x1]
        %s1895 = scalar_lea.vmem %s17, 1
        %v1896 = vld [vmem:[%s1895] sm:$0x1]
        %v1897 = vsel %vm728, %v1892, 0.0
        %1898 = vadd.xlane.f32.xlu0 %v1897
        %v1899 = vpop.xlane.xlu0 %1898
        %v1900 = vmul.f32 %v1899, %v1039
        %v1901 = vsub.f32 %v1892, %v1900
        %v1902 = vmul.f32 %v1901, %v1901
        %v1903 = vsel %vm728, %v1902, 0.0
        %1904 = vadd.xlane.f32.xlu0 %v1903
        %v1905 = vpop.xlane.xlu0 %1904
        %v1906 = vmul.f32 %v1905, %v1039
        %v1907 = vadd.f32 %v1906, 1e-05
        %v1908 = vrsqrt.pop %v1907
        %v1909 = vmul.f32 %v1908, %v1907
        %v1910 = vmul.f32 %v1909, %v1908
        %v1911 = vmul.f32 0.5, %v1910
        %v1912 = vsub.f32 1.5, %v1911
        %v1913 = vmul.f32 %v1908, %v1912
        %vm1914 = vweird.f32 %v1907
        %vm1915 = vweird.f32 %v1908
        %vm1916 = vmor %vm1914, %vm1915
        %v1917 = vsel %vm1916, %v1908, %v1913
        %v1918 = vmul.f32 %v1901, %v1917
        %v1920 = vperm.slane %v1894, 0
        %v1922 = vmul.f32 %v1918, %v1920
        %v1924 = vperm.slane %v1896, 0
        %v1926 = vadd.f32 %v1922, %v1924
        %v1927 = vpack.c.bf16 %v1926, %v1926
        %s1928 = scalar_lea.vmem %s8, 16
        %v1929 = vld [vmem:[%s1928] sm:$0xf]
        %v1930 = vld [vmem:[%s1928 + $0x4] sm:$0xf]
        %v1931 = vld [vmem:[%s1928 + $0x8] sm:$0xf]
        %v1932 = vld [vmem:[%s1928 + $0xc] sm:$0xf]
        %s1933 = scalar_lea.vmem %s9, 1
        %v1934 = vld [vmem:[%s1933] sm:$0x1]
        %s1935 = scalar_lea.vmem %s10, 16
        %v1936 = vld [vmem:[%s1935] sm:$0xf]
        %v1937 = vld [vmem:[%s1935 + $0x4] sm:$0xf]
        %v1938 = vld [vmem:[%s1935 + $0x8] sm:$0xf]
        %v1939 = vld [vmem:[%s1935 + $0xc] sm:$0xf]
        %s1940 = scalar_lea.vmem %s11, 1
        %v1941 = vld [vmem:[%s1940] sm:$0x1]
        %v1943 = vperm.slane %v1934, 0
        %v1949 = vunpack.c.l.b16 %v1929
        %v1950 = vunpack.c.l.b16 %v1930
        %v1951 = vunpack.c.l.b16 %v1931
        %v1952 = vunpack.c.l.b16 %v1932
        %v1953 = vpack.c.b16 %v1950, %v1949
        %v1954 = vpack.c.b16 %v1952, %v1951
        %v1958 = vsel %vm728, %v1927, 0
        %1960 = vmatpush.bf16.msra.mxu0 0
        %1961 = vmatpush.bf16.msra.mxu0 0
        %1962 = vmatpush.bf16.msra.mxu0 0
        %1963 = vmatpush.bf16.msra.mxu0 0
        %1964 = vmatpush.bf16.msra.mxu0 0
        %1965 = vmatpush.bf16.msra.mxu0 0
        %1966 = vmatpush.bf16.msra.mxu0 %v1954
        %1967 = vmatpush.bf16.msra.mxu0 %v1953
        %1968 = vmatmul.bf16.gmra.mxu0 %v1958
        %v1969 = vpop.f32.mrf.mxu0
        %v1970 = vadd.f32 %v1943, %v1969
        %v1971 = vpop.f32.mrf.mxu0
        %1972 = vdwg.mxu0
        %1973 = vrot.lane.b32.xlu0 %v1953, 96
        %v1974 = vpop.permute.xlu0 %1973
        %1975 = vrot.lane.b32.xlu0 %v1954, 96
        %v1976 = vpop.permute.xlu0 %1975
        %1979 = vrot.lane.b32.xlu0 %v1943, 96
        %v1980 = vpop.permute.xlu0 %1979
        %1982 = vmatpush.bf16.msra.mxu0 0
        %1983 = vmatpush.bf16.msra.mxu0 0
        %1984 = vmatpush.bf16.msra.mxu0 0
        %1985 = vmatpush.bf16.msra.mxu0 0
        %1986 = vmatpush.bf16.msra.mxu0 0
        %1987 = vmatpush.bf16.msra.mxu0 0
        %1988 = vmatpush.bf16.msra.mxu0 %v1976
        %1989 = vmatpush.bf16.msra.mxu0 %v1974
        %1990 = vmatmul.bf16.gmra.mxu0 %v1119
        %v1991 = vpop.f32.mrf.mxu0
        %v1992 = vadd.f32 %v1980, %v1991
        %v1993 = vpop.f32.mrf.mxu0
        %1994 = vdwg.mxu0
        %v1995 = vmul.f32 %v1970, 0.35355338
        %v1996 = vpack.c.bf16 %v1995, %v1995
        %v1997 = vpack.c.bf16 %v1992, %v1992
        %v1999 = vsel %vm753, %v1996, 0
        %v2002 = vsel %vm753, %v1997, 0
        %2004 = vmatpush.bf16.xpose.msra.mxu0 0
        %2005 = vmatpush.bf16.xpose.msra.mxu0 0
        %2006 = vmatpush.bf16.xpose.msra.mxu0 0
        %2007 = vmatpush.bf16.xpose.msra.mxu0 0
        %2008 = vmatpush.bf16.xpose.msra.mxu0 0
        %2009 = vmatpush.bf16.xpose.msra.mxu0 0
        %2010 = vmatpush.bf16.xpose.msra.mxu0 0
        %2011 = vmatpush.bf16.xpose.msra.mxu0 %v2002
        %2012 = vmatmul.bf16.gmra.mxu0 %v1999
        %v2013 = vpop.f32.mrf.mxu0
        %v2014 = vadd.f32 %v701, %v2013
        %v2015 = vpop.f32.mrf.mxu0
        %2016 = vdwg.mxu0
        %v2017 = vsel %vm753, %v2014, -inf
        %2018 = vmax.xlane.f32.xlu0 %v2017
        %v2019 = vpop.xlane.xlu0 %2018
        %v2020 = vsub.f32 %v2014, %v2019
        %v2021 = vmul.f32 %v2020, 1.442695
        %v2022 = vpow.pop %v2021
        %v2023 = vsel %vm753, %v2022, 0.0
        %2024 = vadd.xlane.f32.xlu0 %v2023
        %v2025 = vpop.xlane.xlu0 %2024
        %v2026 = vrcp.pop %v2025
        %v2027 = vmul.f32 %v2022, %v2026
        %v2028 = vpack.c.bf16 %v2027, %v2027
        %v2030 = vunpack.c.l.b16 %v1997
        %v2031 = vpack.c.b16 %v2030, %v2030
        %2032 = vrot.lane.b32.xlu0 %v2031, 96
        %v2033 = vpop.permute.xlu0 %2032
        %v2035 = vsel %vm753, %v2028, 0
        %v2038 = vsel %vm790, %v2033, 0
        %2040 = vmatpush.bf16.msra.mxu0 0
        %2041 = vmatpush.bf16.msra.mxu0 0
        %2042 = vmatpush.bf16.msra.mxu0 0
        %2043 = vmatpush.bf16.msra.mxu0 0
        %2044 = vmatpush.bf16.msra.mxu0 0
        %2045 = vmatpush.bf16.msra.mxu0 0
        %2046 = vmatpush.bf16.msra.mxu0 0
        %2047 = vmatpush.bf16.msra.mxu0 %v2038
        %2048 = vmatmul.bf16.gmra.mxu0 %v2035
        %v2049 = vpop.f32.mrf.mxu0
        %v2050 = vadd.f32 0.0, %v2049
        %v2051 = vpop.f32.mrf.mxu0
        %2052 = vdwg.mxu0
        %v2054 = vunpack.c.l.b16 %v1996
        %v2055 = vpack.c.b16 %v2054, %v2054
        %2056 = vrot.lane.b32.xlu0 %v2055, 120
        %v2057 = vpop.permute.xlu0 %2056
        %2058 = vrot.lane.b32.xlu0 %v2031, 120
        %v2059 = vpop.permute.xlu0 %2058
        %v2061 = vsel %vm753, %v2057, 0
        %v2064 = vsel %vm753, %v2059, 0
        %2066 = vmatpush.bf16.xpose.msra.mxu0 0
        %2067 = vmatpush.bf16.xpose.msra.mxu0 0
        %2068 = vmatpush.bf16.xpose.msra.mxu0 0
        %2069 = vmatpush.bf16.xpose.msra.mxu0 0
        %2070 = vmatpush.bf16.xpose.msra.mxu0 0
        %2071 = vmatpush.bf16.xpose.msra.mxu0 0
        %2072 = vmatpush.bf16.xpose.msra.mxu0 0
        %2073 = vmatpush.bf16.xpose.msra.mxu0 %v2064
        %2074 = vmatmul.bf16.gmra.mxu0 %v2061
        %v2075 = vpop.f32.mrf.mxu0
        %v2076 = vadd.f32 %v701, %v2075
        %v2077 = vpop.f32.mrf.mxu0
        %2078 = vdwg.mxu0
        %v2079 = vsel %vm753, %v2076, -inf
        %2080 = vmax.xlane.f32.xlu0 %v2079
        %v2081 = vpop.xlane.xlu0 %2080
        %v2082 = vsub.f32 %v2076, %v2081
        %v2083 = vmul.f32 %v2082, 1.442695
        %v2084 = vpow.pop %v2083
        %v2085 = vsel %vm753, %v2084, 0.0
        %2086 = vadd.xlane.f32.xlu0 %v2085
        %v2087 = vpop.xlane.xlu0 %2086
        %v2088 = vrcp.pop %v2087
        %v2089 = vmul.f32 %v2084, %v2088
        %v2090 = vpack.c.bf16 %v2089, %v2089
        %2091 = vrot.lane.b32.xlu0 %v2031, 88
        %v2092 = vpop.permute.xlu0 %2091
        %v2094 = vsel %vm753, %v2090, 0
        %v2097 = vsel %vm790, %v2092, 0
        %2099 = vmatpush.bf16.msra.mxu0 0
        %2100 = vmatpush.bf16.msra.mxu0 0
        %2101 = vmatpush.bf16.msra.mxu0 0
        %2102 = vmatpush.bf16.msra.mxu0 0
        %2103 = vmatpush.bf16.msra.mxu0 0
        %2104 = vmatpush.bf16.msra.mxu0 0
        %2105 = vmatpush.bf16.msra.mxu0 0
        %2106 = vmatpush.bf16.msra.mxu0 %v2097
        %2107 = vmatmul.bf16.gmra.mxu0 %v2094
        %v2108 = vpop.f32.mrf.mxu0
        %v2109 = vadd.f32 0.0, %v2108
        %v2110 = vpop.f32.mrf.mxu0
        %2111 = vdwg.mxu0
        %2112 = vrot.lane.b32.xlu0 %v2055, 112
        %v2113 = vpop.permute.xlu0 %2112
        %2114 = vrot.lane.b32.xlu0 %v2031, 112
        %v2115 = vpop.permute.xlu0 %2114
        %v2117 = vsel %vm753, %v2113, 0
        %v2120 = vsel %vm753, %v2115, 0
        %2122 = vmatpush.bf16.xpose.msra.mxu0 0
        %2123 = vmatpush.bf16.xpose.msra.mxu0 0
        %2124 = vmatpush.bf16.xpose.msra.mxu0 0
        %2125 = vmatpush.bf16.xpose.msra.mxu0 0
        %2126 = vmatpush.bf16.xpose.msra.mxu0 0
        %2127 = vmatpush.bf16.xpose.msra.mxu0 0
        %2128 = vmatpush.bf16.xpose.msra.mxu0 0
        %2129 = vmatpush.bf16.xpose.msra.mxu0 %v2120
        %2130 = vmatmul.bf16.gmra.mxu0 %v2117
        %v2131 = vpop.f32.mrf.mxu0
        %v2132 = vadd.f32 %v701, %v2131
        %v2133 = vpop.f32.mrf.mxu0
        %2134 = vdwg.mxu0
        %v2135 = vsel %vm753, %v2132, -inf
        %2136 = vmax.xlane.f32.xlu0 %v2135
        %v2137 = vpop.xlane.xlu0 %2136
        %v2138 = vsub.f32 %v2132, %v2137
        %v2139 = vmul.f32 %v2138, 1.442695
        %v2140 = vpow.pop %v2139
        %v2141 = vsel %vm753, %v2140, 0.0
        %2142 = vadd.xlane.f32.xlu0 %v2141
        %v2143 = vpop.xlane.xlu0 %2142
        %v2144 = vrcp.pop %v2143
        %v2145 = vmul.f32 %v2140, %v2144
        %v2146 = vpack.c.bf16 %v2145, %v2145
        %2147 = vrot.lane.b32.xlu0 %v2031, 80
        %v2148 = vpop.permute.xlu0 %2147
        %v2150 = vsel %vm753, %v2146, 0
        %v2153 = vsel %vm790, %v2148, 0
        %2155 = vmatpush.bf16.msra.mxu0 0
        %2156 = vmatpush.bf16.msra.mxu0 0
        %2157 = vmatpush.bf16.msra.mxu0 0
        %2158 = vmatpush.bf16.msra.mxu0 0
        %2159 = vmatpush.bf16.msra.mxu0 0
        %2160 = vmatpush.bf16.msra.mxu0 0
        %2161 = vmatpush.bf16.msra.mxu0 0
        %2162 = vmatpush.bf16.msra.mxu0 %v2153
        %2163 = vmatmul.bf16.gmra.mxu0 %v2150
        %v2164 = vpop.f32.mrf.mxu0
        %v2165 = vadd.f32 0.0, %v2164
        %v2166 = vpop.f32.mrf.mxu0
        %2167 = vdwg.mxu0
        %2168 = vrot.lane.b32.xlu0 %v2055, 104
        %v2169 = vpop.permute.xlu0 %2168
        %2170 = vrot.lane.b32.xlu0 %v2031, 104
        %v2171 = vpop.permute.xlu0 %2170
        %v2173 = vsel %vm753, %v2169, 0
        %v2176 = vsel %vm753, %v2171, 0
        %2178 = vmatpush.bf16.xpose.msra.mxu0 0
        %2179 = vmatpush.bf16.xpose.msra.mxu0 0
        %2180 = vmatpush.bf16.xpose.msra.mxu0 0
        %2181 = vmatpush.bf16.xpose.msra.mxu0 0
        %2182 = vmatpush.bf16.xpose.msra.mxu0 0
        %2183 = vmatpush.bf16.xpose.msra.mxu0 0
        %2184 = vmatpush.bf16.xpose.msra.mxu0 0
        %2185 = vmatpush.bf16.xpose.msra.mxu0 %v2176
        %2186 = vmatmul.bf16.gmra.mxu0 %v2173
        %v2187 = vpop.f32.mrf.mxu0
        %v2188 = vadd.f32 %v701, %v2187
        %v2189 = vpop.f32.mrf.mxu0
        %2190 = vdwg.mxu0
        %v2191 = vsel %vm753, %v2188, -inf
        %2192 = vmax.xlane.f32.xlu0 %v2191
        %v2193 = vpop.xlane.xlu0 %2192
        %v2194 = vsub.f32 %v2188, %v2193
        %v2195 = vmul.f32 %v2194, 1.442695
        %v2196 = vpow.pop %v2195
        %v2197 = vsel %vm753, %v2196, 0.0
        %2198 = vadd.xlane.f32.xlu0 %v2197
        %v2199 = vpop.xlane.xlu0 %2198
        %v2200 = vrcp.pop %v2199
        %v2201 = vmul.f32 %v2196, %v2200
        %v2202 = vpack.c.bf16 %v2201, %v2201
        %2203 = vrot.lane.b32.xlu0 %v2031, 72
        %v2204 = vpop.permute.xlu0 %2203
        %v2206 = vsel %vm753, %v2202, 0
        %v2209 = vsel %vm790, %v2204, 0
        %2211 = vmatpush.bf16.msra.mxu0 0
        %2212 = vmatpush.bf16.msra.mxu0 0
        %2213 = vmatpush.bf16.msra.mxu0 0
        %2214 = vmatpush.bf16.msra.mxu0 0
        %2215 = vmatpush.bf16.msra.mxu0 0
        %2216 = vmatpush.bf16.msra.mxu0 0
        %2217 = vmatpush.bf16.msra.mxu0 0
        %2218 = vmatpush.bf16.msra.mxu0 %v2209
        %2219 = vmatmul.bf16.gmra.mxu0 %v2206
        %v2220 = vpop.f32.mrf.mxu0
        %v2221 = vadd.f32 0.0, %v2220
        %v2222 = vpop.f32.mrf.mxu0
        %2223 = vdwg.mxu0
        %2225 = vrot.lane.b32.xlu0 %v2109, 8
        %v2226 = vpop.permute.xlu0 %2225
        %2229 = vrot.lane.b32.xlu0 %v2165, 16
        %v2230 = vpop.permute.xlu0 %2229
        %2233 = vrot.lane.b32.xlu0 %v2221, 24
        %v2234 = vpop.permute.xlu0 %2233
        %v2236 = vsel %vm753, %v2050, %v2226
        %v2237 = vsel %vm991, %v2236, %v2230
        %v2238 = vsel %vm993, %v2237, %v2234
        %v2239 = vpack.c.bf16 %v2238, %v2238
        %v2241 = vperm.slane %v1941, 0
        %v2247 = vunpack.c.l.b16 %v1936
        %v2248 = vunpack.c.l.b16 %v1937
        %v2249 = vunpack.c.l.b16 %v1938
        %v2250 = vunpack.c.l.b16 %v1939
        %v2251 = vpack.c.b16 %v2248, %v2247
        %v2252 = vpack.c.b16 %v2250, %v2249
        %v2256 = vsel %vm728, %v2239, 0
        %2258 = vmatpush.bf16.msra.mxu0 0
        %2259 = vmatpush.bf16.msra.mxu0 0
        %2260 = vmatpush.bf16.msra.mxu0 0
        %2261 = vmatpush.bf16.msra.mxu0 0
        %2262 = vmatpush.bf16.msra.mxu0 0
        %2263 = vmatpush.bf16.msra.mxu0 0
        %2264 = vmatpush.bf16.msra.mxu0 %v2252
        %2265 = vmatpush.bf16.msra.mxu0 %v2251
        %2266 = vmatmul.bf16.gmra.mxu0 %v2256
        %v2267 = vpop.f32.mrf.mxu0
        %v2268 = vadd.f32 %v2241, %v2267
        %v2269 = vpop.f32.mrf.mxu0
        %2270 = vdwg.mxu0
        %v2271 = vadd.f32 %v1926, %v2268
        %s2272 = scalar_lea.vmem %s18, 1
        %v2273 = vld [vmem:[%s2272] sm:$0x1]
        %s2274 = scalar_lea.vmem %s19, 1
        %v2275 = vld [vmem:[%s2274] sm:$0x1]
        %v2276 = vsel %vm728, %v2271, 0.0
        %2277 = vadd.xlane.f32.xlu0 %v2276
        %v2278 = vpop.xlane.xlu0 %2277
        %v2279 = vmul.f32 %v2278, %v1039
        %v2280 = vsub.f32 %v2271, %v2279
        %v2281 = vmul.f32 %v2280, %v2280
        %v2282 = vsel %vm728, %v2281, 0.0
        %2283 = vadd.xlane.f32.xlu0 %v2282
        %v2284 = vpop.xlane.xlu0 %2283
        %v2285 = vmul.f32 %v2284, %v1039
        %v2286 = vadd.f32 %v2285, 1e-05
        %v2287 = vrsqrt.pop %v2286
        %v2288 = vmul.f32 %v2287, %v2286
        %v2289 = vmul.f32 %v2288, %v2287
        %v2290 = vmul.f32 0.5, %v2289
        %v2291 = vsub.f32 1.5, %v2290
        %v2292 = vmul.f32 %v2287, %v2291
        %vm2293 = vweird.f32 %v2286
        %vm2294 = vweird.f32 %v2287
        %vm2295 = vmor %vm2293, %vm2294
        %v2296 = vsel %vm2295, %v2287, %v2292
        %v2297 = vmul.f32 %v2280, %v2296
        %v2299 = vperm.slane %v2273, 0
        %v2301 = vmul.f32 %v2297, %v2299
        %v2303 = vperm.slane %v2275, 0
        %v2305 = vadd.f32 %v2301, %v2303
        %v2306 = vpack.c.bf16 %v2305, %v2305
        %s2307 = scalar_lea.vmem %s12, 16
        %v2308 = vld [vmem:[%s2307] sm:$0xf]
        %v2309 = vld [vmem:[%s2307 + $0x4] sm:$0xf]
        %v2310 = vld [vmem:[%s2307 + $0x8] sm:$0xf]
        %v2311 = vld [vmem:[%s2307 + $0xc] sm:$0xf]
        %s2312 = scalar_lea.vmem %s13, 1
        %v2313 = vld [vmem:[%s2312] sm:$0x1]
        %v2315 = vperm.slane %v2313, 0
        %v2321 = vunpack.c.l.b16 %v2308
        %v2322 = vunpack.c.l.b16 %v2309
        %v2323 = vunpack.c.l.b16 %v2310
        %v2324 = vunpack.c.l.b16 %v2311
        %v2325 = vpack.c.b16 %v2322, %v2321
        %v2326 = vpack.c.b16 %v2324, %v2323
        %v2330 = vsel %vm728, %v2306, 0
        %2332 = vmatpush.bf16.msra.mxu0 0
        %2333 = vmatpush.bf16.msra.mxu0 0
        %2334 = vmatpush.bf16.msra.mxu0 0
        %2335 = vmatpush.bf16.msra.mxu0 0
        %2336 = vmatpush.bf16.msra.mxu0 0
        %2337 = vmatpush.bf16.msra.mxu0 0
        %2338 = vmatpush.bf16.msra.mxu0 %v2326
        %2339 = vmatpush.bf16.msra.mxu0 %v2325
        %2340 = vmatmul.bf16.gmra.mxu0 %v2330
        %v2341 = vpop.f32.mrf.mxu0
        %v2342 = vadd.f32 %v2315, %v2341
        %v2343 = vpop.f32.mrf.mxu0
        %2344 = vdwg.mxu0
        %v2345 = vmax.f32 %v2342, 0.0
        %v2346 = vpack.c.bf16 %v2345, %v2345
        %s2347 = scalar_lea.vmem %s14, 32
        %v2348 = vld [vmem:[%s2347] sm:$0xf]
        %v2349 = vld [vmem:[%s2347 + $0x4] sm:$0xf]
        %v2350 = vld [vmem:[%s2347 + $0x8] sm:$0xf]
        %v2351 = vld [vmem:[%s2347 + $0xc] sm:$0xf]
        %v2352 = vld [vmem:[%s2347 + $0x10] sm:$0xf]
        %v2353 = vld [vmem:[%s2347 + $0x14] sm:$0xf]
        %v2354 = vld [vmem:[%s2347 + $0x18] sm:$0xf]
        %v2355 = vld [vmem:[%s2347 + $0x1c] sm:$0xf]
        %s2356 = scalar_lea.vmem %s15, 1
        %v2357 = vld [vmem:[%s2356] sm:$0x1]
        %v2359 = vperm.slane %v2357, 0
        %v2369 = vunpack.c.l.b16 %v2348
        %v2370 = vunpack.c.l.b16 %v2349
        %v2371 = vunpack.c.l.b16 %v2350
        %v2372 = vunpack.c.l.b16 %v2351
        %v2373 = vunpack.c.l.b16 %v2352
        %v2374 = vunpack.c.l.b16 %v2353
        %v2375 = vunpack.c.l.b16 %v2354
        %v2376 = vunpack.c.l.b16 %v2355
        %v2377 = vpack.c.b16 %v2370, %v2369
        %v2378 = vpack.c.b16 %v2372, %v2371
        %v2379 = vpack.c.b16 %v2374, %v2373
        %v2380 = vpack.c.b16 %v2376, %v2375
        %v2386 = vsel %vm1518, %v2346, 0
        %2388 = vmatpush.bf16.msra.mxu0 0
        %2389 = vmatpush.bf16.msra.mxu0 0
        %2390 = vmatpush.bf16.msra.mxu0 0
        %2391 = vmatpush.bf16.msra.mxu0 0
        %2392 = vmatpush.bf16.msra.mxu0 %v2380
        %2393 = vmatpush.bf16.msra.mxu0 %v2379
        %2394 = vmatpush.bf16.msra.mxu0 %v2378
        %2395 = vmatpush.bf16.msra.mxu0 %v2377
        %2396 = vmatmul.bf16.gmra.mxu0 %v2386
        %v2397 = vpop.f32.mrf.mxu0
        %v2398 = vadd.f32 %v2359, %v2397
        %v2399 = vpop.f32.mrf.mxu0
        %2400 = vdwg.mxu0
        %v2401 = vadd.f32 %v2305, %v2398
        %s2402 = scalar_lea.vmem %s20, 1
        %v2403 = vld [vmem:[%s2402] sm:$0x1]
        %s2404 = scalar_lea.vmem %s21, 1
        %v2405 = vld [vmem:[%s2404] sm:$0x1]
        %v2406 = vsel %vm728, %v2401, 0.0
        %2407 = vadd.xlane.f32.xlu0 %v2406
        %v2408 = vpop.xlane.xlu0 %2407
        %v2409 = vmul.f32 %v2408, %v1039
        %v2410 = vsub.f32 %v2401, %v2409
        %v2411 = vmul.f32 %v2410, %v2410
        %v2412 = vsel %vm728, %v2411, 0.0
        %2413 = vadd.xlane.f32.xlu0 %v2412
        %v2414 = vpop.xlane.xlu0 %2413
        %v2415 = vmul.f32 %v2414, %v1039
        %v2416 = vadd.f32 %v2415, 1e-05
        %v2417 = vrsqrt.pop %v2416
        %v2418 = vmul.f32 %v2417, %v2416
        %v2419 = vmul.f32 %v2418, %v2417
        %v2420 = vmul.f32 0.5, %v2419
        %v2421 = vsub.f32 1.5, %v2420
        %v2422 = vmul.f32 %v2417, %v2421
        %vm2423 = vweird.f32 %v2416
        %vm2424 = vweird.f32 %v2417
        %vm2425 = vmor %vm2423, %vm2424
        %v2426 = vsel %vm2425, %v2417, %v2422
        %v2427 = vmul.f32 %v2410, %v2426
        %v2429 = vperm.slane %v2403, 0
        %v2431 = vmul.f32 %v2427, %v2429
        %v2433 = vperm.slane %v2405, 0
        %v2435 = vadd.f32 %v2431, %v2433
        %2436 = vst.msk [vmem:[%s687] sm:$0xff] %vm728, %v2435
        %s2437 = sand.u32 %s516, 1
        %s2438 = scalar_lea.sflag [#allocation3], %s2437
        %s2439 = sand.u32 %s516, 1
        %s2440 = smul.addr %s2439, 8
        %s2441 = scalar_lea.vmem [#allocation2], %s2440
        // Predicated region
        $region109: #{transformer_decoder.1} parent=107 // pred_check
          %p2442 = pneg %p526
        $region110: #{transformer_decoder.1} parent=107 // pred_check_branch
          %2444 = sbr.rel (%p2442) target = $region112
        $region111: #{transformer_decoder.1} parent=107 // pred_region
          %2446 = vsyncadd %s2438, 0
          %s2447 = smul.addr %s36, 8
          %s2448 = scalar_lea.hbm %s22, %s2447
          %s2450 = sshll.u32 %s2441, 4
          %s2451 = int_to_ptr.vmem [resolvable:$true] %s2450
          %s2452 = sshll.u32 %s2448, 4
          %s2453 = int_to_ptr.hbm [resolvable:$true] %s2452
          %2455 = dma.vmem_to_hbm [thread:$0]  %s2451, 128, %s2453, %s2438
        $region112: #{transformer_decoder.1} parent=107 // pred_fallthru
          _
      $region108: #{transformer_decoder.1} parent=5 // pred_fallthru
        _
      %p2456 = scmp.le.s32.totalorder 2, %s31
      // Predicated region
      $region113: #{transformer_decoder.1} parent=5 // pred_check
        %p2457 = pneg %p2456
      $region114: #{transformer_decoder.1} parent=5 // pred_check_branch
        %2459 = sbr.rel (%p2457) target = $region116
      $region115: #{transformer_decoder.1} parent=5 // pred_region
        %s2460 = ssub.s32 %s31, 2
        // Predicated region
        $region117: #{transformer_decoder.1} parent=115 // pred_check
          %p2461 = pneg %p532
        $region118: #{transformer_decoder.1} parent=115 // pred_check_branch
          %2463 = sbr.rel (%p2461) target = $region120
        $region119: #{transformer_decoder.1} parent=115 // pred_region
          %s2464 = sand.u32 %s517, 1
          %s2465 = scalar_lea.sflag [#allocation3], %s2464
          %s2466 = sand.u32 %s517, 1
          %s2467 = smul.addr %s2466, 8
          %s2468 = scalar_lea.vmem [#allocation2], %s2467
          %2470 = dma.done %s2465, 128
        $region120: #{transformer_decoder.1} parent=115 // pred_fallthru
          _
      $region116: #{transformer_decoder.1} parent=5 // pred_fallthru
        _
    $region6: #{transformer_decoder.1} parent=1 // loop_footer
      %s35 = sadd.s32 1, %s31
    $region7: #{transformer_decoder.1} parent=1 // loop_footer_branch
      %30 = sbr.rel target = $region3
    $region8: #{transformer_decoder.1} parent=1 // loop_exit
      _
    %2471 = vsyncpa [#allocation3], 1
    %s2472 = scalar_lea.sflag [#allocation3], 1
    %2473 = vsyncpa %s2472, 1

</llo_original>
